<compile_context>
chip_gen: v5e
topology: v5e:2x2
jax: 0.10.0
libtpu: 0.0.40
codegen_flags: <defaults>
</compile_context>

<pallas_src>
import functools
import math

import jax
import jax.numpy as jnp
from jax.experimental import pallas as pl
from jax.experimental.pallas import tpu as pltpu


# ----------------------------- chip-aware tiling helpers -----------------------------

def _vmem_bytes():
    try:
        return int(pltpu.get_tpu_info().vmem_capacity_bytes)
    except Exception:           # be conservative (v7x = 64 MiB) if query fails
        return 64 << 20


_BIG_VMEM = _vmem_bytes() >= (100 << 20)     # v5e/v6e: 128 MiB; v7x: 64 MiB
_Q_TILE_TARGET = 512 if _BIG_VMEM else 256   # attention query-tile rows
_M_TILE_TARGET = 512 if _BIG_VMEM else 256   # row-tile for FFN / output head


def _pick_tile(dim, target, align):
    """Largest multiple of `align` that divides `dim` and is <= `target`;
    falls back to the full dim (block == full array extent is always legal)."""
    if dim <= target:
        return dim
    t = (target // align) * align
    while t >= align:
        if dim % t == 0:
            return t
        t -= align
    return dim


def _pick_m_tile(M, target):
    """Row-tile: <= target, and expose >=2 grid steps when possible so the
    'parallel' axis can be sharded across TensorCores."""
    tm = _pick_tile(M, target, 8)
    if tm == M and M >= 16 and M % 16 == 0:
        tm = M // 2
    return tm


# ----------------------------- exact-erf GELU from Mosaic-safe ops -----------------------------

def _erf(x):
    # Abramowitz & Stegun 7.1.26 (|abs err| < 1.5e-7) — only exp / mul / add.
    a1, a2, a3, a4, a5 = 0.254829592, -0.284496736, 1.421413741, -1.453152027, 1.061405429
    pcoef = 0.3275911
    ax = jnp.abs(x)
    t = 1.0 / (1.0 + pcoef * ax)
    poly = ((((a5 * t + a4) * t + a3) * t + a2) * t + a1) * t
    y = 1.0 - poly * jnp.exp(-ax * ax)
    return jnp.where(x >= 0.0, y, -y)


def _gelu(x):
    # exact (erf) GELU, matching torch.nn.GELU() default
    return 0.5 * x * (1.0 + _erf(x * 0.7071067811865476))


# ----------------------------- fused x_encoder + y_encoder + concat -----------------------------

def _encode_kernel(x_ref, y_ref, wx_ref, bx_ref, wy_ref, by_ref, o_ref, *, train_size):
    x = x_ref[0]                                                          # (N, F) bf16
    s = jnp.dot(x, wx_ref[...], preferred_element_type=jnp.float32) + bx_ref[...]
    # y_encoder = Linear(1, d_model): K=1 matmul == VPU broadcast FMA (f32, v5e-safe).
    y_enc = y_ref[0] * wy_ref[...] + by_ref[...]                          # (N, D) f32
    row = jax.lax.broadcasted_iota(jnp.int32, (x.shape[0], 1), 0)
    s = s + jnp.where(row < train_size, y_enc, 0.0)                       # add only on train rows
    o_ref[0] = s.astype(o_ref.dtype)


def encode_inputs(x, y, wx, bx, wy, by, train_size):
    B, N, F = x.shape
    D = wx.shape[1]
    x_bf = x.astype(jnp.bfloat16)
    y3 = y.reshape(B, N, 1).astype(jnp.float32)
    cost = pl.CostEstimate(
        flops=2 * B * N * F * D + 4 * B * N * D,
        transcendentals=0,
        bytes_accessed=2 * (B * N * F + F * D + B * N * D) + 4 * (B * N + 4 * D),
    )
    return pl.pallas_call(
        functools.partial(_encode_kernel, train_size=train_size),
        out_shape=jax.ShapeDtypeStruct((B, N, D), jnp.bfloat16),
        grid=(B,),
        in_specs=[
            pl.BlockSpec((1, N, F), lambda b: (b, 0, 0)),
            pl.BlockSpec((1, N, 1), lambda b: (b, 0, 0)),
            pl.BlockSpec((F, D), lambda b: (0, 0)),
            pl.BlockSpec((1, D), lambda b: (0, 0)),
            pl.BlockSpec((1, D), lambda b: (0, 0)),
            pl.BlockSpec((1, D), lambda b: (0, 0)),
        ],
        out_specs=pl.BlockSpec((1, N, D), lambda b: (b, 0, 0)),
        compiler_params=pltpu.CompilerParams(dimension_semantics=("parallel",)),
        cost_estimate=cost,
    )(x_bf, y3, wx, bx, wy, by)


# ----------------------------- fused MHA + residual + LayerNorm1 -----------------------------
# cat([attn(q_left,k,v), attn(q_right,k,v)], dim=1) == attn(q_full, k, v)
# (softmax is row-wise), so one kernel covers the Encoder's left/right split.

def _attn_block_kernel(q_ref, kv_ref, wq_ref, bq_ref, wkv_ref, bkv_ref,
                       wo_ref, bo_ref, g_ref, beta_ref, o_ref,
                       *, n_heads, train_size, eps):
    d_model = wq_ref.shape[0]
    d_head = d_model // n_heads
    scale = 1.0 / math.sqrt(d_head)

    src_q = q_ref[0]                                   # (TQ, D) bf16 — query tile
    src_kv = kv_ref[0, :train_size, :]                 # (T, D)  bf16 — train slice (K/V source)

    # Wide projections: one (TQ,D)@(D,D) for Q, one (T,D)@(D,2D) for fused K|V.
    q = jnp.dot(src_q, wq_ref[...], preferred_element_type=jnp.float32) + bq_ref[...]
    q = (q * scale).astype(jnp.bfloat16)                               # (TQ, D)
    kv = jnp.dot(src_kv, wkv_ref[...], preferred_element_type=jnp.float32) + bkv_ref[...]
    kv = kv.astype(jnp.bfloat16)                                       # (T, 2D)

    heads = []
    for h in range(n_heads):                           # static head slices (Dh columns)
        lo, hi = h * d_head, (h + 1) * d_head
        q_h = q[:, lo:hi]                              # (TQ, Dh) bf16
        k_h = kv[:, lo:hi]                             # (T, Dh)  bf16
        v_h = kv[:, d_model + lo:d_model + hi]         # (T, Dh)  bf16
        s = jax.lax.dot_general(q_h, k_h, (((1,), (1,)), ((), ())),
                                preferred_element_type=jnp.float32)    # (TQ, T)
        m = jnp.max(s, axis=-1, keepdims=True)
        p = jnp.exp(s - m)
        l = jnp.sum(p, axis=-1, keepdims=True)
        o_h = jnp.dot(p.astype(jnp.bfloat16), v_h,
                      preferred_element_type=jnp.float32)              # (TQ, Dh)
        # Deferred softmax normalisation: scale the PV result, not the (TQ,T) matrix.
        heads.append(o_h * pl.reciprocal(l, approx=True))
    ctx = jnp.concatenate(heads, axis=-1).astype(jnp.bfloat16)         # (TQ, D)

    # Single wide output projection (== concat(heads) @ Wo).
    attn = jnp.dot(ctx, wo_ref[...], preferred_element_type=jnp.float32) + bo_ref[...]

    # fused residual add + LayerNorm1 (biased variance, like torch) in f32
    xres = src_q.astype(jnp.float32) + attn
    mean = jnp.mean(xres, axis=-1, keepdims=True)
    var = jnp.mean((xres - mean) ** 2, axis=-1, keepdims=True)
    yln = (xres - mean) * jax.lax.rsqrt(var + eps)
    yln = yln * g_ref[...] + beta_ref[...]
    o_ref[0] = yln.astype(o_ref.dtype)


def attention_block(src, p, n_heads, train_size, eps=1e-5):
    """LN1(src + MHA(q=src, k=v=src[:, :train_size])) in a single pallas_call,
    tiled over (dataset, query-tile)."""
    B, N, D = src.shape
    T = train_size
    tq = _pick_tile(N, _Q_TILE_TARGET, 8)
    # K/V block: just the train rows when they form a legal tile, else full N
    # (the kernel statically slices [:T] either way).
    tk = T if (T == N or (T % 8 == 0 and T > 0)) else N

    cost = pl.CostEstimate(
        flops=B * (4 * N * D * D + 4 * T * D * D + 4 * N * T * D),
        transcendentals=B * N * (T + 2),
        bytes_accessed=2 * (2 * B * N * D + B * T * D + 4 * D * D) + 4 * 8 * D,
    )
    return pl.pallas_call(
        functools.partial(_attn_block_kernel, n_heads=n_heads,
                          train_size=T, eps=eps),
        out_shape=jax.ShapeDtypeStruct((B, N, D), src.dtype),
        grid=(B, N // tq),
        in_specs=[
            pl.BlockSpec((1, tq, D), lambda b, qi: (b, qi, 0)),   # query tile
            pl.BlockSpec((1, tk, D), lambda b, qi: (b, 0, 0)),    # K/V (resident across qi)
            pl.BlockSpec((D, D), lambda b, qi: (0, 0)),           # Wq
            pl.BlockSpec((1, D), lambda b, qi: (0, 0)),           # bq
            pl.BlockSpec((D, 2 * D), lambda b, qi: (0, 0)),       # W[k|v]
            pl.BlockSpec((1, 2 * D), lambda b, qi: (0, 0)),       # b[k|v]
            pl.BlockSpec((D, D), lambda b, qi: (0, 0)),           # Wo
            pl.BlockSpec((1, D), lambda b, qi: (0, 0)),           # bo
            pl.BlockSpec((1, D), lambda b, qi: (0, 0)),           # ln1 gamma
            pl.BlockSpec((1, D), lambda b, qi: (0, 0)),           # ln1 beta
        ],
        out_specs=pl.BlockSpec((1, tq, D), lambda b, qi: (b, qi, 0)),
        compiler_params=pltpu.CompilerParams(
            dimension_semantics=("parallel", "parallel")),
        cost_estimate=cost,
    )(src, src, p["wq"], p["bq"], p["wkv"], p["bkv"], p["wo"], p["bo"],
      p["ln1_g"], p["ln1_b"])


# ----------------------------- fused FFN + residual + LayerNorm2 -----------------------------

def _ffn_ln_kernel(x_ref, w1_ref, b1_ref, w2_ref, b2_ref, g_ref, beta_ref,
                   o_ref, *, eps):
    x = x_ref[...]                                                       # (tm, D) bf16
    h = jnp.dot(x, w1_ref[...], preferred_element_type=jnp.float32) + b1_ref[...]
    h = jnp.maximum(h, 0.0).astype(jnp.bfloat16)                         # ReLU -> bf16 MXU input
    f = jnp.dot(h, w2_ref[...], preferred_element_type=jnp.float32) + b2_ref[...]
    xres = x.astype(jnp.float32) + f                                     # residual (f32)
    mean = jnp.mean(xres, axis=-1, keepdims=True)
    var = jnp.mean((xres - mean) ** 2, axis=-1, keepdims=True)
    yln = (xres - mean) * jax.lax.rsqrt(var + eps)
    yln = yln * g_ref[...] + beta_ref[...]
    o_ref[...] = yln.astype(o_ref.dtype)


def ffn_layernorm(x, w1, b1, w2, b2, gamma, beta, eps=1e-5):
    B, N, D = x.shape
    H = w1.shape[1]
    x2 = x.reshape(B * N, D)
    M = B * N
    bm = _pick_m_tile(M, _M_TILE_TARGET)
    cost = pl.CostEstimate(
        flops=4 * M * D * H,
        transcendentals=M,
        bytes_accessed=2 * (2 * M * D + 2 * D * H) + 4 * (H + 3 * D),
    )
    out = pl.pallas_call(
        functools.partial(_ffn_ln_kernel, eps=eps),
        out_shape=jax.ShapeDtypeStruct((M, D), x.dtype),
        grid=(M // bm,),
        in_specs=[
            pl.BlockSpec((bm, D), lambda i: (i, 0)),
            pl.BlockSpec((D, H), lambda i: (0, 0)),
            pl.BlockSpec((1, H), lambda i: (0, 0)),
            pl.BlockSpec((H, D), lambda i: (0, 0)),
            pl.BlockSpec((1, D), lambda i: (0, 0)),
            pl.BlockSpec((1, D), lambda i: (0, 0)),
            pl.BlockSpec((1, D), lambda i: (0, 0)),
        ],
        out_specs=pl.BlockSpec((bm, D), lambda i: (i, 0)),
        compiler_params=pltpu.CompilerParams(dimension_semantics=("parallel",)),
        cost_estimate=cost,
    )(x2, w1, b1, w2, b2, gamma, beta)
    return out.reshape(B, N, D)


# ----------------------------- fused output head: Linear -> GELU -> Linear -----------------------------

def _head_kernel(x_ref, w1_ref, b1_ref, w2_ref, b2_ref, o_ref):
    x = x_ref[...]                                                       # (tm, D) bf16
    h = jnp.dot(x, w1_ref[...], preferred_element_type=jnp.float32) + b1_ref[...]
    h = _gelu(h).astype(jnp.bfloat16)
    o = jnp.dot(h, w2_ref[...], preferred_element_type=jnp.float32) + b2_ref[...]
    # TODO(synk): n_out < 128 -> masked partial stores; tiny layer, left as-is.
    o_ref[...] = o.astype(o_ref.dtype)


def output_head(x, w1, b1, w2, b2):
    B, N, D = x.shape
    H = w1.shape[1]
    NO = w2.shape[1]
    x2 = x.reshape(B * N, D)
    M = B * N
    bm = _pick_m_tile(M, _M_TILE_TARGET)
    cost = pl.CostEstimate(
        flops=2 * M * D * H + 2 * M * H * NO,
        transcendentals=M * H,
        bytes_accessed=2 * (M * D + D * H + H * NO) + 4 * (M * NO + H + NO),
    )
    out = pl.pallas_call(
        _head_kernel,
        out_shape=jax.ShapeDtypeStruct((M, NO), jnp.float32),
        grid=(M // bm,),
        in_specs=[
            pl.BlockSpec((bm, D), lambda i: (i, 0)),
            pl.BlockSpec((D, H), lambda i: (0, 0)),
            pl.BlockSpec((1, H), lambda i: (0, 0)),
            pl.BlockSpec((H, NO), lambda i: (0, 0)),
            pl.BlockSpec((1, NO), lambda i: (0, 0)),
        ],
        out_specs=pl.BlockSpec((bm, NO), lambda i: (i, 0)),
        compiler_params=pltpu.CompilerParams(dimension_semantics=("parallel",)),
        cost_estimate=cost,
    )(x2, w1, b1, w2, b2)
    return out.reshape(B, N, NO)


# ----------------------------- model glue -----------------------------

def transformer_forward(params, x, y, trainset_size, n_heads):
    src = encode_inputs(x, y, params["xe_w"], params["xe_b"],
                        params["ye_w"], params["ye_b"], trainset_size)
    for lp in params["layers"]:
        src = attention_block(src, lp, n_heads, trainset_size)      # MHA + residual + LN1
        src = ffn_layernorm(src, lp["w1"], lp["b1"], lp["w2"], lp["b2"],
                            lp["ln2_g"], lp["ln2_b"])                # FFN + residual + LN2
    return output_head(src, params["out_w1"], params["out_b1"],
                       params["out_w2"], params["out_b2"])


# ----------------------------- deterministic init -----------------------------

def init_params(key, num_features, n_out, n_layers, d_model, n_heads, n_hidden):
    keys = iter(jax.random.split(key, 8 + n_layers * 8))
    bf16 = jnp.bfloat16

    def xavier(shape):
        bound = math.sqrt(6.0 / (shape[0] + shape[1]))
        return jax.random.uniform(next(keys), shape, jnp.float32, -bound, bound)

    z = lambda *s: jnp.zeros(s, jnp.float32)
    o = lambda *s: jnp.ones(s, jnp.float32)

    params = {
        "xe_w": xavier((num_features, d_model)).astype(bf16), "xe_b": z(1, d_model),
        "ye_w": xavier((1, d_model)),                         "ye_b": z(1, d_model),
        "out_w1": xavier((d_model, n_hidden)).astype(bf16),   "out_b1": z(1, n_hidden),
        "out_w2": xavier((n_hidden, n_out)).astype(bf16),     "out_b2": z(1, n_out),
        "layers": [],
    }
    for _ in range(n_layers):
        # Fused in-projection (== torch in_proj_weight.T, columns = [Q | K | V]).
        w_in = xavier((d_model, 3 * d_model))
        wq = w_in[:, :d_model]
        wkv = w_in[:, d_model:]
        wo = xavier((d_model, d_model))        # == out_proj.weight.T
        params["layers"].append({
            "wq": wq.astype(bf16),   "bq": z(1, d_model),
            "wkv": wkv.astype(bf16), "bkv": z(1, 2 * d_model),
            "wo": wo.astype(bf16),   "bo": z(1, d_model),
            "w1": xavier((d_model, n_hidden)).astype(bf16), "b1": z(1, n_hidden),
            "w2": xavier((n_hidden, d_model)).astype(bf16), "b2": z(1, d_model),
            "ln1_g": o(1, d_model), "ln1_b": z(1, d_model),
            "ln2_g": o(1, d_model), "ln2_b": z(1, d_model),
        })
    return params


# ----------------------------- main -----------------------------

if __name__ == "__main__":
    B, N, F = 2, 8, 4                 # num_datasets, num_points, num_features
    d_model, n_heads = 32, 4
    n_hidden, n_out, n_layers = 64, 3, 2
    trainset_size = 4

    key = jax.random.PRNGKey(0)
    kx, ky, kp = jax.random.split(key, 3)
    x = jax.random.normal(kx, (B, N, F), jnp.float32)
    y = jax.random.normal(ky, (B, N), jnp.float32)

    params = init_params(kp, F, n_out, n_layers, d_model, n_heads, n_hidden)

    fwd = jax.jit(functools.partial(transformer_forward,
                                    trainset_size=trainset_size,
                                    n_heads=n_heads))
    out = fwd(params, x, y)
    out = jax.block_until_ready(out)
    assert out.shape == (B, N, n_out), out.shape
    assert bool(jnp.all(jnp.isfinite(out)))
    print("KERNEL_OK")
</pallas_src>

<mosaic_0001>
module attributes {stable_mosaic.version = 11 : i64} {
  func.func @_encode_kernel(%arg0: i32, %arg1: memref<1x8x4xbf16, #tpu.memory_space<vmem>>, %arg2: memref<1x8x1xf32, #tpu.memory_space<vmem>>, %arg3: memref<4x32xbf16, #tpu.memory_space<vmem>>, %arg4: memref<1x32xf32, #tpu.memory_space<vmem>>, %arg5: memref<1x32xf32, #tpu.memory_space<vmem>>, %arg6: memref<1x32xf32, #tpu.memory_space<vmem>>, %arg7: memref<1x8x32xbf16, #tpu.memory_space<vmem>>) attributes {dimension_semantics = [#tpu.dimension_semantics<parallel>], iteration_bounds = array<i64: 2>, scalar_prefetch = 0 : i64, scratch_operands = 0 : i64, tpu.core_type = #tpu.core_type<tc>, window_params = [{transform_indices = @transform_0, window_bounds = array<i64: 1, 8, 4>}, {transform_indices = @transform_1, window_bounds = array<i64: 1, 8, 1>}, {pipeline_mode = #tpu.pipeline_mode<synchronous>, transform_indices = @transform_2, window_bounds = array<i64: 4, 32>}, {pipeline_mode = #tpu.pipeline_mode<synchronous>, transform_indices = @transform_3, window_bounds = array<i64: 1, 32>}, {pipeline_mode = #tpu.pipeline_mode<synchronous>, transform_indices = @transform_4, window_bounds = array<i64: 1, 32>}, {pipeline_mode = #tpu.pipeline_mode<synchronous>, transform_indices = @transform_5, window_bounds = array<i64: 1, 32>}, {transform_indices = @transform_6, window_bounds = array<i64: 1, 8, 32>}]} {
    %c0 = arith.constant 0 : index
    %c0_0 = arith.constant 0 : index
    %c0_1 = arith.constant 0 : index
    %0 = vector.load %arg1[%c0, %c0_0, %c0_1] : memref<1x8x4xbf16, #tpu.memory_space<vmem>>, vector<1x8x4xbf16>
    %1 = vector.shape_cast %0 : vector<1x8x4xbf16> to vector<8x4xbf16>
    %c0_2 = arith.constant 0 : index
    %c0_3 = arith.constant 0 : index
    %2 = vector.load %arg3[%c0_2, %c0_3] : memref<4x32xbf16, #tpu.memory_space<vmem>>, vector<4x32xbf16>
    %cst = arith.constant dense<0.000000e+00> : vector<8x32xf32>
    %3 = tpu.matmul %1, %2, %cst {dimension_numbers = #tpu.dot_dimension_numbers<[1], [0], [0], [1], [0, 0, 1, 1], [], []>} : vector<8x4xbf16>, vector<4x32xbf16>, vector<8x32xf32> -> vector<8x32xf32>
    %c0_4 = arith.constant 0 : index
    %c0_5 = arith.constant 0 : index
    %4 = vector.load %arg4[%c0_4, %c0_5] : memref<1x32xf32, #tpu.memory_space<vmem>>, vector<1x32xf32>
    %5 = vector.broadcast %4 : vector<1x32xf32> to vector<8x32xf32>
    %6 = arith.addf %3, %5 : vector<8x32xf32>
    %c0_6 = arith.constant 0 : index
    %c0_7 = arith.constant 0 : index
    %c0_8 = arith.constant 0 : index
    %7 = vector.load %arg2[%c0_6, %c0_7, %c0_8] : memref<1x8x1xf32, #tpu.memory_space<vmem>>, vector<1x8x1xf32>
    %8 = vector.shape_cast %7 : vector<1x8x1xf32> to vector<8x1xf32>
    %c0_9 = arith.constant 0 : index
    %c0_10 = arith.constant 0 : index
    %9 = vector.load %arg5[%c0_9, %c0_10] : memref<1x32xf32, #tpu.memory_space<vmem>>, vector<1x32xf32>
    %10 = vector.broadcast %8 : vector<8x1xf32> to vector<8x32xf32>
    %11 = vector.broadcast %9 : vector<1x32xf32> to vector<8x32xf32>
    %12 = arith.mulf %10, %11 : vector<8x32xf32>
    %c0_11 = arith.constant 0 : index
    %c0_12 = arith.constant 0 : index
    %13 = vector.load %arg6[%c0_11, %c0_12] : memref<1x32xf32, #tpu.memory_space<vmem>>, vector<1x32xf32>
    %14 = vector.broadcast %13 : vector<1x32xf32> to vector<8x32xf32>
    %15 = arith.addf %12, %14 : vector<8x32xf32>
    %16 = tpu.iota {dimensions = array<i32: 0>} : vector<8x1xi32>
    %c4_i32 = arith.constant 4 : i32
    %17 = vector.broadcast %c4_i32 : i32 to vector<8x1xi32>
    %18 = arith.cmpi slt, %16, %17 : vector<8x1xi32>
    %cst_13 = arith.constant 0.000000e+00 : f32
    %19 = vector.shape_cast %18 : vector<8x1xi1> to vector<8x1xi1>
    %20 = vector.broadcast %19 : vector<8x1xi1> to vector<8x32xi1>
    %21 = vector.broadcast %cst_13 : f32 to vector<8x32xf32>
    %22 = arith.select %20, %15, %21 : vector<8x32xi1>, vector<8x32xf32>
    %23 = arith.addf %6, %22 : vector<8x32xf32>
    %24 = arith.truncf %23 : vector<8x32xf32> to vector<8x32xbf16>
    %c0_14 = arith.constant 0 : index
    %c0_15 = arith.constant 0 : index
    %c0_16 = arith.constant 0 : index
    %25 = vector.load %arg7[%c0_14, %c0_15, %c0_16] : memref<1x8x32xbf16, #tpu.memory_space<vmem>>, vector<1x8x32xbf16>
    %26 = vector.shape_cast %25 : vector<1x8x32xbf16> to vector<8x32xbf16>
    %27 = vector.shape_cast %24 : vector<8x32xbf16> to vector<1x8x32xbf16>
    tpu.vector_store %arg7[%c0_14, %c0_15, %c0_16], %27 {strides = array<i32>} : memref<1x8x32xbf16, #tpu.memory_space<vmem>>, vector<1x8x32xbf16>,
    return
  }
  func.func @transform_0(%arg0: i32) -> (i32, i32, i32) {
    %c0_i32 = arith.constant 0 : i32
    %c0_i32_0 = arith.constant 0 : i32
    %c0_i32_1 = arith.constant 0 : i32
    return %arg0, %c0_i32, %c0_i32_0 : i32, i32, i32
  }
  func.func @transform_1(%arg0: i32) -> (i32, i32, i32) {
    %c0_i32 = arith.constant 0 : i32
    %c0_i32_0 = arith.constant 0 : i32
    %c0_i32_1 = arith.constant 0 : i32
    return %arg0, %c0_i32, %c0_i32_0 : i32, i32, i32
  }
  func.func @transform_2(%arg0: i32) -> (i32, i32) {
    %c0_i32 = arith.constant 0 : i32
    %c0_i32_0 = arith.constant 0 : i32
    %c0_i32_1 = arith.constant 0 : i32
    return %c0_i32, %c0_i32_0 : i32, i32
  }
  func.func @transform_3(%arg0: i32) -> (i32, i32) {
    %c0_i32 = arith.constant 0 : i32
    %c0_i32_0 = arith.constant 0 : i32
    %c0_i32_1 = arith.constant 0 : i32
    return %c0_i32, %c0_i32_0 : i32, i32
  }
  func.func @transform_4(%arg0: i32) -> (i32, i32) {
    %c0_i32 = arith.constant 0 : i32
    %c0_i32_0 = arith.constant 0 : i32
    %c0_i32_1 = arith.constant 0 : i32
    return %c0_i32, %c0_i32_0 : i32, i32
  }
  func.func @transform_5(%arg0: i32) -> (i32, i32) {
    %c0_i32 = arith.constant 0 : i32
    %c0_i32_0 = arith.constant 0 : i32
    %c0_i32_1 = arith.constant 0 : i32
    return %c0_i32, %c0_i32_0 : i32, i32
  }
  func.func @transform_6(%arg0: i32) -> (i32, i32, i32) {
    %c0_i32 = arith.constant 0 : i32
    %c0_i32_0 = arith.constant 0 : i32
    %c0_i32_1 = arith.constant 0 : i32
    return %arg0, %c0_i32, %c0_i32_0 : i32, i32, i32
  }
}

module attributes {stable_mosaic.version = 11 : i64} {
  func.func @_ffn_ln_kernel(%arg0: i32, %arg1: memref<8x32xbf16, #tpu.memory_space<vmem>>, %arg2: memref<32x64xbf16, #tpu.memory_space<vmem>>, %arg3: memref<1x64xf32, #tpu.memory_space<vmem>>, %arg4: memref<64x32xbf16, #tpu.memory_space<vmem>>, %arg5: memref<1x32xf32, #tpu.memory_space<vmem>>, %arg6: memref<1x32xf32, #tpu.memory_space<vmem>>, %arg7: memref<1x32xf32, #tpu.memory_space<vmem>>, %arg8: memref<8x32xbf16, #tpu.memory_space<vmem>>) attributes {dimension_semantics = [#tpu.dimension_semantics<parallel>], iteration_bounds = array<i64: 2>, scalar_prefetch = 0 : i64, scratch_operands = 0 : i64, tpu.core_type = #tpu.core_type<tc>, window_params = [{transform_indices = @transform_0, window_bounds = array<i64: 8, 32>}, {pipeline_mode = #tpu.pipeline_mode<synchronous>, transform_indices = @transform_1, window_bounds = array<i64: 32, 64>}, {pipeline_mode = #tpu.pipeline_mode<synchronous>, transform_indices = @transform_2, window_bounds = array<i64: 1, 64>}, {pipeline_mode = #tpu.pipeline_mode<synchronous>, transform_indices = @transform_3, window_bounds = array<i64: 64, 32>}, {pipeline_mode = #tpu.pipeline_mode<synchronous>, transform_indices = @transform_4, window_bounds = array<i64: 1, 32>}, {pipeline_mode = #tpu.pipeline_mode<synchronous>, transform_indices = @transform_5, window_bounds = array<i64: 1, 32>}, {pipeline_mode = #tpu.pipeline_mode<synchronous>, transform_indices = @transform_6, window_bounds = array<i64: 1, 32>}, {transform_indices = @transform_7, window_bounds = array<i64: 8, 32>}]} {
    %c0 = arith.constant 0 : index
    %c0_0 = arith.constant 0 : index
    %0 = vector.load %arg1[%c0, %c0_0] : memref<8x32xbf16, #tpu.memory_space<vmem>>, vector<8x32xbf16>
    %c0_1 = arith.constant 0 : index
    %c0_2 = arith.constant 0 : index
    %1 = vector.load %arg2[%c0_1, %c0_2] : memref<32x64xbf16, #tpu.memory_space<vmem>>, vector<32x64xbf16>
    %cst = arith.constant dense<0.000000e+00> : vector<8x64xf32>
    %2 = tpu.matmul %0, %1, %cst {dimension_numbers = #tpu.dot_dimension_numbers<[1], [0], [0], [1], [0, 0, 1, 1], [], []>} : vector<8x32xbf16>, vector<32x64xbf16>, vector<8x64xf32> -> vector<8x64xf32>
    %c0_3 = arith.constant 0 : index
    %c0_4 = arith.constant 0 : index
    %3 = vector.load %arg3[%c0_3, %c0_4] : memref<1x64xf32, #tpu.memory_space<vmem>>, vector<1x64xf32>
    %4 = vector.broadcast %3 : vector<1x64xf32> to vector<8x64xf32>
    %5 = arith.addf %2, %4 : vector<8x64xf32>
    %cst_5 = arith.constant 0.000000e+00 : f32
    %6 = vector.broadcast %cst_5 : f32 to vector<8x64xf32>
    %7 = arith.maximumf %5, %6 : vector<8x64xf32>
    %8 = arith.truncf %7 : vector<8x64xf32> to vector<8x64xbf16>
    %c0_6 = arith.constant 0 : index
    %c0_7 = arith.constant 0 : index
    %9 = vector.load %arg4[%c0_6, %c0_7] : memref<64x32xbf16, #tpu.memory_space<vmem>>, vector<64x32xbf16>
    %cst_8 = arith.constant dense<0.000000e+00> : vector<8x32xf32>
    %10 = tpu.matmul %8, %9, %cst_8 {dimension_numbers = #tpu.dot_dimension_numbers<[1], [0], [0], [1], [0, 0, 1, 1], [], []>} : vector<8x64xbf16>, vector<64x32xbf16>, vector<8x32xf32> -> vector<8x32xf32>
    %c0_9 = arith.constant 0 : index
    %c0_10 = arith.constant 0 : index
    %11 = vector.load %arg5[%c0_9, %c0_10] : memref<1x32xf32, #tpu.memory_space<vmem>>, vector<1x32xf32>
    %12 = vector.broadcast %11 : vector<1x32xf32> to vector<8x32xf32>
    %13 = arith.addf %10, %12 : vector<8x32xf32>
    %14 = arith.extf %0 : vector<8x32xbf16> to vector<8x32xf32>
    %15 = arith.addf %14, %13 : vector<8x32xf32>
    %cst_11 = arith.constant dense<0.000000e+00> : vector<8xf32>
    %16 = vector.multi_reduction <add>, %15, %cst_11 [1] : vector<8x32xf32> to vector<8xf32>
    %17 = vector.shape_cast %16 : vector<8xf32> to vector<8x1xf32>
    %cst_12 = arith.constant 3.200000e+01 : f32
    %18 = vector.broadcast %cst_12 : f32 to vector<8x1xf32>
    %19 = arith.divf %17, %18 : vector<8x1xf32>
    %20 = vector.broadcast %19 : vector<8x1xf32> to vector<8x32xf32>
    %21 = arith.subf %15, %20 : vector<8x32xf32>
    %22 = arith.mulf %21, %21 : vector<8x32xf32>
    %cst_13 = arith.constant dense<0.000000e+00> : vector<8xf32>
    %23 = vector.multi_reduction <add>, %22, %cst_13 [1] : vector<8x32xf32> to vector<8xf32>
    %24 = vector.shape_cast %23 : vector<8xf32> to vector<8x1xf32>
    %cst_14 = arith.constant 3.200000e+01 : f32
    %25 = vector.broadcast %cst_14 : f32 to vector<8x1xf32>
    %26 = arith.divf %24, %25 : vector<8x1xf32>
    %27 = vector.broadcast %19 : vector<8x1xf32> to vector<8x32xf32>
    %28 = arith.subf %15, %27 : vector<8x32xf32>
    %cst_15 = arith.constant 9.99999974E-6 : f32
    %29 = vector.broadcast %cst_15 : f32 to vector<8x1xf32>
    %30 = arith.addf %26, %29 : vector<8x1xf32>
    %31 = math.rsqrt %30 : vector<8x1xf32>
    %32 = vector.broadcast %31 : vector<8x1xf32> to vector<8x32xf32>
    %33 = arith.mulf %28, %32 : vector<8x32xf32>
    %c0_16 = arith.constant 0 : index
    %c0_17 = arith.constant 0 : index
    %34 = vector.load %arg6[%c0_16, %c0_17] : memref<1x32xf32, #tpu.memory_space<vmem>>, vector<1x32xf32>
    %35 = vector.broadcast %34 : vector<1x32xf32> to vector<8x32xf32>
    %36 = arith.mulf %33, %35 : vector<8x32xf32>
    %c0_18 = arith.constant 0 : index
    %c0_19 = arith.constant 0 : index
    %37 = vector.load %arg7[%c0_18, %c0_19] : memref<1x32xf32, #tpu.memory_space<vmem>>, vector<1x32xf32>
    %38 = vector.broadcast %37 : vector<1x32xf32> to vector<8x32xf32>
    %39 = arith.addf %36, %38 : vector<8x32xf32>
    %40 = arith.truncf %39 : vector<8x32xf32> to vector<8x32xbf16>
    %c0_20 = arith.constant 0 : index
    %c0_21 = arith.constant 0 : index
    %41 = vector.load %arg8[%c0_20, %c0_21] : memref<8x32xbf16, #tpu.memory_space<vmem>>, vector<8x32xbf16>
    tpu.vector_store %arg8[%c0_20, %c0_21], %40 {strides = array<i32>} : memref<8x32xbf16, #tpu.memory_space<vmem>>, vector<8x32xbf16>,
    return
  }
  func.func @transform_0(%arg0: i32) -> (i32, i32) {
    %c0_i32 = arith.constant 0 : i32
    %c0_i32_0 = arith.constant 0 : i32
    return %arg0, %c0_i32 : i32, i32
  }
  func.func @transform_1(%arg0: i32) -> (i32, i32) {
    %c0_i32 = arith.constant 0 : i32
    %c0_i32_0 = arith.constant 0 : i32
    %c0_i32_1 = arith.constant 0 : i32
    return %c0_i32, %c0_i32_0 : i32, i32
  }
  func.func @transform_2(%arg0: i32) -> (i32, i32) {
    %c0_i32 = arith.constant 0 : i32
    %c0_i32_0 = arith.constant 0 : i32
    %c0_i32_1 = arith.constant 0 : i32
    return %c0_i32, %c0_i32_0 : i32, i32
  }
  func.func @transform_3(%arg0: i32) -> (i32, i32) {
    %c0_i32 = arith.constant 0 : i32
    %c0_i32_0 = arith.constant 0 : i32
    %c0_i32_1 = arith.constant 0 : i32
    return %c0_i32, %c0_i32_0 : i32, i32
  }
  func.func @transform_4(%arg0: i32) -> (i32, i32) {
    %c0_i32 = arith.constant 0 : i32
    %c0_i32_0 = arith.constant 0 : i32
    %c0_i32_1 = arith.constant 0 : i32
    return %c0_i32, %c0_i32_0 : i32, i32
  }
  func.func @transform_5(%arg0: i32) -> (i32, i32) {
    %c0_i32 = arith.constant 0 : i32
    %c0_i32_0 = arith.constant 0 : i32
    %c0_i32_1 = arith.constant 0 : i32
    return %c0_i32, %c0_i32_0 : i32, i32
  }
  func.func @transform_6(%arg0: i32) -> (i32, i32) {
    %c0_i32 = arith.constant 0 : i32
    %c0_i32_0 = arith.constant 0 : i32
    %c0_i32_1 = arith.constant 0 : i32
    return %c0_i32, %c0_i32_0 : i32, i32
  }
  func.func @transform_7(%arg0: i32) -> (i32, i32) {
    %c0_i32 = arith.constant 0 : i32
    %c0_i32_0 = arith.constant 0 : i32
    return %arg0, %c0_i32 : i32, i32
  }
}

module attributes {stable_mosaic.version = 11 : i64} {
  func.func @_attn_block_kernel(%arg0: i32, %arg1: i32, %arg2: memref<1x8x32xbf16, #tpu.memory_space<vmem>>, %arg3: memref<1x8x32xbf16, #tpu.memory_space<vmem>>, %arg4: memref<32x32xbf16, #tpu.memory_space<vmem>>, %arg5: memref<1x32xf32, #tpu.memory_space<vmem>>, %arg6: memref<32x64xbf16, #tpu.memory_space<vmem>>, %arg7: memref<1x64xf32, #tpu.memory_space<vmem>>, %arg8: memref<32x32xbf16, #tpu.memory_space<vmem>>, %arg9: memref<1x32xf32, #tpu.memory_space<vmem>>, %arg10: memref<1x32xf32, #tpu.memory_space<vmem>>, %arg11: memref<1x32xf32, #tpu.memory_space<vmem>>, %arg12: memref<1x8x32xbf16, #tpu.memory_space<vmem>>) attributes {dimension_semantics = [#tpu.dimension_semantics<parallel>, #tpu.dimension_semantics<parallel>], iteration_bounds = array<i64: 2, 1>, scalar_prefetch = 0 : i64, scratch_operands = 0 : i64, tpu.core_type = #tpu.core_type<tc>, window_params = [{transform_indices = @transform_0, window_bounds = array<i64: 1, 8, 32>}, {transform_indices = @transform_1, window_bounds = array<i64: 1, 8, 32>}, {pipeline_mode = #tpu.pipeline_mode<synchronous>, transform_indices = @transform_2, window_bounds = array<i64: 32, 32>}, {pipeline_mode = #tpu.pipeline_mode<synchronous>, transform_indices = @transform_3, window_bounds = array<i64: 1, 32>}, {pipeline_mode = #tpu.pipeline_mode<synchronous>, transform_indices = @transform_4, window_bounds = array<i64: 32, 64>}, {pipeline_mode = #tpu.pipeline_mode<synchronous>, transform_indices = @transform_5, window_bounds = array<i64: 1, 64>}, {pipeline_mode = #tpu.pipeline_mode<synchronous>, transform_indices = @transform_6, window_bounds = array<i64: 32, 32>}, {pipeline_mode = #tpu.pipeline_mode<synchronous>, transform_indices = @transform_7, window_bounds = array<i64: 1, 32>}, {pipeline_mode = #tpu.pipeline_mode<synchronous>, transform_indices = @transform_8, window_bounds = array<i64: 1, 32>}, {pipeline_mode = #tpu.pipeline_mode<synchronous>, transform_indices = @transform_9, window_bounds = array<i64: 1, 32>}, {transform_indices = @transform_10, window_bounds = array<i64: 1, 8, 32>}]} {
    %c0 = arith.constant 0 : index
    %c0_0 = arith.constant 0 : index
    %c0_1 = arith.constant 0 : index
    %0 = vector.load %arg2[%c0, %c0_0, %c0_1] : memref<1x8x32xbf16, #tpu.memory_space<vmem>>, vector<1x8x32xbf16>
    %1 = vector.shape_cast %0 : vector<1x8x32xbf16> to vector<8x32xbf16>
    %c0_2 = arith.constant 0 : index
    %c0_3 = arith.constant 0 : index
    %c0_4 = arith.constant 0 : index
    %2 = vector.load %arg3[%c0_2, %c0_3, %c0_4] : memref<1x8x32xbf16, #tpu.memory_space<vmem>>, vector<1x4x32xbf16>
    %3 = vector.shape_cast %2 : vector<1x4x32xbf16> to vector<4x32xbf16>
    %c0_5 = arith.constant 0 : index
    %c0_6 = arith.constant 0 : index
    %4 = vector.load %arg4[%c0_5, %c0_6] : memref<32x32xbf16, #tpu.memory_space<vmem>>, vector<32x32xbf16>
    %cst = arith.constant dense<0.000000e+00> : vector<8x32xf32>
    %5 = tpu.matmul %1, %4, %cst {dimension_numbers = #tpu.dot_dimension_numbers<[1], [0], [0], [1], [0, 0, 1, 1], [], []>} : vector<8x32xbf16>, vector<32x32xbf16>, vector<8x32xf32> -> vector<8x32xf32>
    %c0_7 = arith.constant 0 : index
    %c0_8 = arith.constant 0 : index
    %6 = vector.load %arg5[%c0_7, %c0_8] : memref<1x32xf32, #tpu.memory_space<vmem>>, vector<1x32xf32>
    %7 = vector.broadcast %6 : vector<1x32xf32> to vector<8x32xf32>
    %8 = arith.addf %5, %7 : vector<8x32xf32>
    %cst_9 = arith.constant 0.353553385 : f32
    %9 = vector.broadcast %cst_9 : f32 to vector<8x32xf32>
    %10 = arith.mulf %8, %9 : vector<8x32xf32>
    %11 = arith.truncf %10 : vector<8x32xf32> to vector<8x32xbf16>
    %c0_10 = arith.constant 0 : index
    %c0_11 = arith.constant 0 : index
    %12 = vector.load %arg6[%c0_10, %c0_11] : memref<32x64xbf16, #tpu.memory_space<vmem>>, vector<32x64xbf16>
    %cst_12 = arith.constant dense<0.000000e+00> : vector<4x64xf32>
    %13 = tpu.matmul %3, %12, %cst_12 {dimension_numbers = #tpu.dot_dimension_numbers<[1], [0], [0], [1], [0, 0, 1, 1], [], []>} : vector<4x32xbf16>, vector<32x64xbf16>, vector<4x64xf32> -> vector<4x64xf32>
    %c0_13 = arith.constant 0 : index
    %c0_14 = arith.constant 0 : index
    %14 = vector.load %arg7[%c0_13, %c0_14] : memref<1x64xf32, #tpu.memory_space<vmem>>, vector<1x64xf32>
    %15 = vector.broadcast %14 : vector<1x64xf32> to vector<4x64xf32>
    %16 = arith.addf %13, %15 : vector<4x64xf32>
    %17 = arith.truncf %16 : vector<4x64xf32> to vector<4x64xbf16>
    %18 = vector.extract_strided_slice %11 {offsets = [0, 0], sizes = [8, 8], strides = [1, 1]} : vector<8x32xbf16> to vector<8x8xbf16>
    %19 = vector.extract_strided_slice %17 {offsets = [0, 0], sizes = [4, 8], strides = [1, 1]} : vector<4x64xbf16> to vector<4x8xbf16>
    %20 = vector.extract_strided_slice %17 {offsets = [0, 32], sizes = [4, 8], strides = [1, 1]} : vector<4x64xbf16> to vector<4x8xbf16>
    %cst_15 = arith.constant dense<0.000000e+00> : vector<8x4xf32>
    %21 = tpu.matmul %18, %19, %cst_15 {dimension_numbers = #tpu.dot_dimension_numbers<[1], [1], [0], [0], [0, 0, 1, 0], [], []>} : vector<8x8xbf16>, vector<4x8xbf16>, vector<8x4xf32> -> vector<8x4xf32>
    %cst_16 = arith.constant dense<0xFF800000> : vector<8xf32>
    %22 = vector.multi_reduction <maximumf>, %21, %cst_16 [1] : vector<8x4xf32> to vector<8xf32>
    %23 = vector.shape_cast %22 : vector<8xf32> to vector<8x1xf32>
    %24 = vector.broadcast %23 : vector<8x1xf32> to vector<8x4xf32>
    %25 = arith.subf %21, %24 : vector<8x4xf32>
    %26 = math.exp %25 : vector<8x4xf32>
    %cst_17 = arith.constant dense<0.000000e+00> : vector<8xf32>
    %27 = vector.multi_reduction <add>, %26, %cst_17 [1] : vector<8x4xf32> to vector<8xf32>
    %28 = vector.shape_cast %27 : vector<8xf32> to vector<8x1xf32>
    %29 = arith.truncf %26 : vector<8x4xf32> to vector<8x4xbf16>
    %cst_18 = arith.constant dense<0.000000e+00> : vector<8x8xf32>
    %30 = tpu.matmul %29, %20, %cst_18 {dimension_numbers = #tpu.dot_dimension_numbers<[1], [0], [0], [1], [0, 0, 1, 1], [], []>} : vector<8x4xbf16>, vector<4x8xbf16>, vector<8x8xf32> -> vector<8x8xf32>
    %31 = tpu.reciprocal %28 {approx = true} : vector<8x1xf32> -> vector<8x1xf32>
    %32 = vector.broadcast %31 : vector<8x1xf32> to vector<8x8xf32>
    %33 = arith.mulf %30, %32 : vector<8x8xf32>
    %34 = vector.extract_strided_slice %11 {offsets = [0, 8], sizes = [8, 8], strides = [1, 1]} : vector<8x32xbf16> to vector<8x8xbf16>
    %35 = vector.extract_strided_slice %17 {offsets = [0, 8], sizes = [4, 8], strides = [1, 1]} : vector<4x64xbf16> to vector<4x8xbf16>
    %36 = vector.extract_strided_slice %17 {offsets = [0, 40], sizes = [4, 8], strides = [1, 1]} : vector<4x64xbf16> to vector<4x8xbf16>
    %cst_19 = arith.constant dense<0.000000e+00> : vector<8x4xf32>
    %37 = tpu.matmul %34, %35, %cst_19 {dimension_numbers = #tpu.dot_dimension_numbers<[1], [1], [0], [0], [0, 0, 1, 0], [], []>} : vector<8x8xbf16>, vector<4x8xbf16>, vector<8x4xf32> -> vector<8x4xf32>
    %cst_20 = arith.constant dense<0xFF800000> : vector<8xf32>
    %38 = vector.multi_reduction <maximumf>, %37, %cst_20 [1] : vector<8x4xf32> to vector<8xf32>
    %39 = vector.shape_cast %38 : vector<8xf32> to vector<8x1xf32>
    %40 = vector.broadcast %39 : vector<8x1xf32> to vector<8x4xf32>
    %41 = arith.subf %37, %40 : vector<8x4xf32>
    %42 = math.exp %41 : vector<8x4xf32>
    %cst_21 = arith.constant dense<0.000000e+00> : vector<8xf32>
    %43 = vector.multi_reduction <add>, %42, %cst_21 [1] : vector<8x4xf32> to vector<8xf32>
    %44 = vector.shape_cast %43 : vector<8xf32> to vector<8x1xf32>
    %45 = arith.truncf %42 : vector<8x4xf32> to vector<8x4xbf16>
    %cst_22 = arith.constant dense<0.000000e+00> : vector<8x8xf32>
    %46 = tpu.matmul %45, %36, %cst_22 {dimension_numbers = #tpu.dot_dimension_numbers<[1], [0], [0], [1], [0, 0, 1, 1], [], []>} : vector<8x4xbf16>, vector<4x8xbf16>, vector<8x8xf32> -> vector<8x8xf32>
    %47 = tpu.reciprocal %44 {approx = true} : vector<8x1xf32> -> vector<8x1xf32>
    %48 = vector.broadcast %47 : vector<8x1xf32> to vector<8x8xf32>
    %49 = arith.mulf %46, %48 : vector<8x8xf32>
    %50 = vector.extract_strided_slice %11 {offsets = [0, 16], sizes = [8, 8], strides = [1, 1]} : vector<8x32xbf16> to vector<8x8xbf16>
    %51 = vector.extract_strided_slice %17 {offsets = [0, 16], sizes = [4, 8], strides = [1, 1]} : vector<4x64xbf16> to vector<4x8xbf16>
    %52 = vector.extract_strided_slice %17 {offsets = [0, 48], sizes = [4, 8], strides = [1, 1]} : vector<4x64xbf16> to vector<4x8xbf16>
    %cst_23 = arith.constant dense<0.000000e+00> : vector<8x4xf32>
    %53 = tpu.matmul %50, %51, %cst_23 {dimension_numbers = #tpu.dot_dimension_numbers<[1], [1], [0], [0], [0, 0, 1, 0], [], []>} : vector<8x8xbf16>, vector<4x8xbf16>, vector<8x4xf32> -> vector<8x4xf32>
    %cst_24 = arith.constant dense<0xFF800000> : vector<8xf32>
    %54 = vector.multi_reduction <maximumf>, %53, %cst_24 [1] : vector<8x4xf32> to vector<8xf32>
    %55 = vector.shape_cast %54 : vector<8xf32> to vector<8x1xf32>
    %56 = vector.broadcast %55 : vector<8x1xf32> to vector<8x4xf32>
    %57 = arith.subf %53, %56 : vector<8x4xf32>
    %58 = math.exp %57 : vector<8x4xf32>
    %cst_25 = arith.constant dense<0.000000e+00> : vector<8xf32>
    %59 = vector.multi_reduction <add>, %58, %cst_25 [1] : vector<8x4xf32> to vector<8xf32>
    %60 = vector.shape_cast %59 : vector<8xf32> to vector<8x1xf32>
    %61 = arith.truncf %58 : vector<8x4xf32> to vector<8x4xbf16>
    %cst_26 = arith.constant dense<0.000000e+00> : vector<8x8xf32>
    %62 = tpu.matmul %61, %52, %cst_26 {dimension_numbers = #tpu.dot_dimension_numbers<[1], [0], [0], [1], [0, 0, 1, 1], [], []>} : vector<8x4xbf16>, vector<4x8xbf16>, vector<8x8xf32> -> vector<8x8xf32>
    %63 = tpu.reciprocal %60 {approx = true} : vector<8x1xf32> -> vector<8x1xf32>
    %64 = vector.broadcast %63 : vector<8x1xf32> to vector<8x8xf32>
    %65 = arith.mulf %62, %64 : vector<8x8xf32>
    %66 = vector.extract_strided_slice %11 {offsets = [0, 24], sizes = [8, 8], strides = [1, 1]} : vector<8x32xbf16> to vector<8x8xbf16>
    %67 = vector.extract_strided_slice %17 {offsets = [0, 24], sizes = [4, 8], strides = [1, 1]} : vector<4x64xbf16> to vector<4x8xbf16>
    %68 = vector.extract_strided_slice %17 {offsets = [0, 56], sizes = [4, 8], strides = [1, 1]} : vector<4x64xbf16> to vector<4x8xbf16>
    %cst_27 = arith.constant dense<0.000000e+00> : vector<8x4xf32>
    %69 = tpu.matmul %66, %67, %cst_27 {dimension_numbers = #tpu.dot_dimension_numbers<[1], [1], [0], [0], [0, 0, 1, 0], [], []>} : vector<8x8xbf16>, vector<4x8xbf16>, vector<8x4xf32> -> vector<8x4xf32>
    %cst_28 = arith.constant dense<0xFF800000> : vector<8xf32>
    %70 = vector.multi_reduction <maximumf>, %69, %cst_28 [1] : vector<8x4xf32> to vector<8xf32>
    %71 = vector.shape_cast %70 : vector<8xf32> to vector<8x1xf32>
    %72 = vector.broadcast %71 : vector<8x1xf32> to vector<8x4xf32>
    %73 = arith.subf %69, %72 : vector<8x4xf32>
    %74 = math.exp %73 : vector<8x4xf32>
    %cst_29 = arith.constant dense<0.000000e+00> : vector<8xf32>
    %75 = vector.multi_reduction <add>, %74, %cst_29 [1] : vector<8x4xf32> to vector<8xf32>
    %76 = vector.shape_cast %75 : vector<8xf32> to vector<8x1xf32>
    %77 = arith.truncf %74 : vector<8x4xf32> to vector<8x4xbf16>
    %cst_30 = arith.constant dense<0.000000e+00> : vector<8x8xf32>
    %78 = tpu.matmul %77, %68, %cst_30 {dimension_numbers = #tpu.dot_dimension_numbers<[1], [0], [0], [1], [0, 0, 1, 1], [], []>} : vector<8x4xbf16>, vector<4x8xbf16>, vector<8x8xf32> -> vector<8x8xf32>
    %79 = tpu.reciprocal %76 {approx = true} : vector<8x1xf32> -> vector<8x1xf32>
    %80 = vector.broadcast %79 : vector<8x1xf32> to vector<8x8xf32>
    %81 = arith.mulf %78, %80 : vector<8x8xf32>
    %82 = tpu.concatenate %33, %49, %65, %81 in 1 : vector<8x8xf32>, vector<8x8xf32>, vector<8x8xf32>, vector<8x8xf32> -> vector<8x32xf32>
    %83 = arith.truncf %82 : vector<8x32xf32> to vector<8x32xbf16>
    %c0_31 = arith.constant 0 : index
    %c0_32 = arith.constant 0 : index
    %84 = vector.load %arg8[%c0_31, %c0_32] : memref<32x32xbf16, #tpu.memory_space<vmem>>, vector<32x32xbf16>
    %cst_33 = arith.constant dense<0.000000e+00> : vector<8x32xf32>
    %85 = tpu.matmul %83, %84, %cst_33 {dimension_numbers = #tpu.dot_dimension_numbers<[1], [0], [0], [1], [0, 0, 1, 1], [], []>} : vector<8x32xbf16>, vector<32x32xbf16>, vector<8x32xf32> -> vector<8x32xf32>
    %c0_34 = arith.constant 0 : index
    %c0_35 = arith.constant 0 : index
    %86 = vector.load %arg9[%c0_34, %c0_35] : memref<1x32xf32, #tpu.memory_space<vmem>>, vector<1x32xf32>
    %87 = vector.broadcast %86 : vector<1x32xf32> to vector<8x32xf32>
    %88 = arith.addf %85, %87 : vector<8x32xf32>
    %89 = arith.extf %1 : vector<8x32xbf16> to vector<8x32xf32>
    %90 = arith.addf %89, %88 : vector<8x32xf32>
    %cst_36 = arith.constant dense<0.000000e+00> : vector<8xf32>
    %91 = vector.multi_reduction <add>, %90, %cst_36 [1] : vector<8x32xf32> to vector<8xf32>
    %92 = vector.shape_cast %91 : vector<8xf32> to vector<8x1xf32>
    %cst_37 = arith.constant 3.200000e+01 : f32
    %93 = vector.broadcast %cst_37 : f32 to vector<8x1xf32>
    %94 = arith.divf %92, %93 : vector<8x1xf32>
    %95 = vector.broadcast %94 : vector<8x1xf32> to vector<8x32xf32>
    %96 = arith.subf %90, %95 : vector<8x32xf32>
    %97 = arith.mulf %96, %96 : vector<8x32xf32>
    %cst_38 = arith.constant dense<0.000000e+00> : vector<8xf32>
    %98 = vector.multi_reduction <add>, %97, %cst_38 [1] : vector<8x32xf32> to vector<8xf32>
    %99 = vector.shape_cast %98 : vector<8xf32> to vector<8x1xf32>
    %cst_39 = arith.constant 3.200000e+01 : f32
    %100 = vector.broadcast %cst_39 : f32 to vector<8x1xf32>
    %101 = arith.divf %99, %100 : vector<8x1xf32>
    %102 = vector.broadcast %94 : vector<8x1xf32> to vector<8x32xf32>
    %103 = arith.subf %90, %102 : vector<8x32xf32>
    %cst_40 = arith.constant 9.99999974E-6 : f32
    %104 = vector.broadcast %cst_40 : f32 to vector<8x1xf32>
    %105 = arith.addf %101, %104 : vector<8x1xf32>
    %106 = math.rsqrt %105 : vector<8x1xf32>
    %107 = vector.broadcast %106 : vector<8x1xf32> to vector<8x32xf32>
    %108 = arith.mulf %103, %107 : vector<8x32xf32>
    %c0_41 = arith.constant 0 : index
    %c0_42 = arith.constant 0 : index
    %109 = vector.load %arg10[%c0_41, %c0_42] : memref<1x32xf32, #tpu.memory_space<vmem>>, vector<1x32xf32>
    %110 = vector.broadcast %109 : vector<1x32xf32> to vector<8x32xf32>
    %111 = arith.mulf %108, %110 : vector<8x32xf32>
    %c0_43 = arith.constant 0 : index
    %c0_44 = arith.constant 0 : index
    %112 = vector.load %arg11[%c0_43, %c0_44] : memref<1x32xf32, #tpu.memory_space<vmem>>, vector<1x32xf32>
    %113 = vector.broadcast %112 : vector<1x32xf32> to vector<8x32xf32>
    %114 = arith.addf %111, %113 : vector<8x32xf32>
    %115 = arith.truncf %114 : vector<8x32xf32> to vector<8x32xbf16>
    %c0_45 = arith.constant 0 : index
    %c0_46 = arith.constant 0 : index
    %c0_47 = arith.constant 0 : index
    %116 = vector.load %arg12[%c0_45, %c0_46, %c0_47] : memref<1x8x32xbf16, #tpu.memory_space<vmem>>, vector<1x8x32xbf16>
    %117 = vector.shape_cast %116 : vector<1x8x32xbf16> to vector<8x32xbf16>
    %118 = vector.shape_cast %115 : vector<8x32xbf16> to vector<1x8x32xbf16>
    tpu.vector_store %arg12[%c0_45, %c0_46, %c0_47], %118 {strides = array<i32>} : memref<1x8x32xbf16, #tpu.memory_space<vmem>>, vector<1x8x32xbf16>,
    return
  }
  func.func @transform_0(%arg0: i32, %arg1: i32) -> (i32, i32, i32) {
    %c0_i32 = arith.constant 0 : i32
    %c0_i32_0 = arith.constant 0 : i32
    return %arg0, %arg1, %c0_i32 : i32, i32, i32
  }
  func.func @transform_1(%arg0: i32, %arg1: i32) -> (i32, i32, i32) {
    %c0_i32 = arith.constant 0 : i32
    %c0_i32_0 = arith.constant 0 : i32
    %c0_i32_1 = arith.constant 0 : i32
    return %arg0, %c0_i32, %c0_i32_0 : i32, i32, i32
  }
  func.func @transform_2(%arg0: i32, %arg1: i32) -> (i32, i32) {
    %c0_i32 = arith.constant 0 : i32
    %c0_i32_0 = arith.constant 0 : i32
    %c0_i32_1 = arith.constant 0 : i32
    return %c0_i32, %c0_i32_0 : i32, i32
  }
  func.func @transform_3(%arg0: i32, %arg1: i32) -> (i32, i32) {
    %c0_i32 = arith.constant 0 : i32
    %c0_i32_0 = arith.constant 0 : i32
    %c0_i32_1 = arith.constant 0 : i32
    return %c0_i32, %c0_i32_0 : i32, i32
  }
  func.func @transform_4(%arg0: i32, %arg1: i32) -> (i32, i32) {
    %c0_i32 = arith.constant 0 : i32
    %c0_i32_0 = arith.constant 0 : i32
    %c0_i32_1 = arith.constant 0 : i32
    return %c0_i32, %c0_i32_0 : i32, i32
  }
  func.func @transform_5(%arg0: i32, %arg1: i32) -> (i32, i32) {
    %c0_i32 = arith.constant 0 : i32
    %c0_i32_0 = arith.constant 0 : i32
    %c0_i32_1 = arith.constant 0 : i32
    return %c0_i32, %c0_i32_0 : i32, i32
  }
  func.func @transform_6(%arg0: i32, %arg1: i32) -> (i32, i32) {
    %c0_i32 = arith.constant 0 : i32
    %c0_i32_0 = arith.constant 0 : i32
    %c0_i32_1 = arith.constant 0 : i32
    return %c0_i32, %c0_i32_0 : i32, i32
  }
  func.func @transform_7(%arg0: i32, %arg1: i32) -> (i32, i32) {
    %c0_i32 = arith.constant 0 : i32
    %c0_i32_0 = arith.constant 0 : i32
    %c0_i32_1 = arith.constant 0 : i32
    return %c0_i32, %c0_i32_0 : i32, i32
  }
  func.func @transform_8(%arg0: i32, %arg1: i32) -> (i32, i32) {
    %c0_i32 = arith.constant 0 : i32
    %c0_i32_0 = arith.constant 0 : i32
    %c0_i32_1 = arith.constant 0 : i32
    return %c0_i32, %c0_i32_0 : i32, i32
  }
  func.func @transform_9(%arg0: i32, %arg1: i32) -> (i32, i32) {
    %c0_i32 = arith.constant 0 : i32
    %c0_i32_0 = arith.constant 0 : i32
    %c0_i32_1 = arith.constant 0 : i32
    return %c0_i32, %c0_i32_0 : i32, i32
  }
  func.func @transform_10(%arg0: i32, %arg1: i32) -> (i32, i32, i32) {
    %c0_i32 = arith.constant 0 : i32
    %c0_i32_0 = arith.constant 0 : i32
    return %arg0, %arg1, %c0_i32 : i32, i32, i32
  }
}

module attributes {stable_mosaic.version = 11 : i64} {
  func.func @_attn_block_kernel(%arg0: i32, %arg1: i32, %arg2: memref<1x8x32xbf16, #tpu.memory_space<vmem>>, %arg3: memref<1x8x32xbf16, #tpu.memory_space<vmem>>, %arg4: memref<32x32xbf16, #tpu.memory_space<vmem>>, %arg5: memref<1x32xf32, #tpu.memory_space<vmem>>, %arg6: memref<32x64xbf16, #tpu.memory_space<vmem>>, %arg7: memref<1x64xf32, #tpu.memory_space<vmem>>, %arg8: memref<32x32xbf16, #tpu.memory_space<vmem>>, %arg9: memref<1x32xf32, #tpu.memory_space<vmem>>, %arg10: memref<1x32xf32, #tpu.memory_space<vmem>>, %arg11: memref<1x32xf32, #tpu.memory_space<vmem>>, %arg12: memref<1x8x32xbf16, #tpu.memory_space<vmem>>) attributes {dimension_semantics = [#tpu.dimension_semantics<parallel>, #tpu.dimension_semantics<parallel>], iteration_bounds = array<i64: 2, 1>, scalar_prefetch = 0 : i64, scratch_operands = 0 : i64, tpu.core_type = #tpu.core_type<tc>, window_params = [{transform_indices = @transform_0, window_bounds = array<i64: 1, 8, 32>}, {transform_indices = @transform_1, window_bounds = array<i64: 1, 8, 32>}, {pipeline_mode = #tpu.pipeline_mode<synchronous>, transform_indices = @transform_2, window_bounds = array<i64: 32, 32>}, {pipeline_mode = #tpu.pipeline_mode<synchronous>, transform_indices = @transform_3, window_bounds = array<i64: 1, 32>}, {pipeline_mode = #tpu.pipeline_mode<synchronous>, transform_indices = @transform_4, window_bounds = array<i64: 32, 64>}, {pipeline_mode = #tpu.pipeline_mode<synchronous>, transform_indices = @transform_5, window_bounds = array<i64: 1, 64>}, {pipeline_mode = #tpu.pipeline_mode<synchronous>, transform_indices = @transform_6, window_bounds = array<i64: 32, 32>}, {pipeline_mode = #tpu.pipeline_mode<synchronous>, transform_indices = @transform_7, window_bounds = array<i64: 1, 32>}, {pipeline_mode = #tpu.pipeline_mode<synchronous>, transform_indices = @transform_8, window_bounds = array<i64: 1, 32>}, {pipeline_mode = #tpu.pipeline_mode<synchronous>, transform_indices = @transform_9, window_bounds = array<i64: 1, 32>}, {transform_indices = @transform_10, window_bounds = array<i64: 1, 8, 32>}]} {
    %c0 = arith.constant 0 : index
    %c0_0 = arith.constant 0 : index
    %c0_1 = arith.constant 0 : index
    %0 = vector.load %arg2[%c0, %c0_0, %c0_1] : memref<1x8x32xbf16, #tpu.memory_space<vmem>>, vector<1x8x32xbf16>
    %1 = vector.shape_cast %0 : vector<1x8x32xbf16> to vector<8x32xbf16>
    %c0_2 = arith.constant 0 : index
    %c0_3 = arith.constant 0 : index
    %c0_4 = arith.constant 0 : index
    %2 = vector.load %arg3[%c0_2, %c0_3, %c0_4] : memref<1x8x32xbf16, #tpu.memory_space<vmem>>, vector<1x4x32xbf16>
    %3 = vector.shape_cast %2 : vector<1x4x32xbf16> to vector<4x32xbf16>
    %c0_5 = arith.constant 0 : index
    %c0_6 = arith.constant 0 : index
    %4 = vector.load %arg4[%c0_5, %c0_6] : memref<32x32xbf16, #tpu.memory_space<vmem>>, vector<32x32xbf16>
    %cst = arith.constant dense<0.000000e+00> : vector<8x32xf32>
    %5 = tpu.matmul %1, %4, %cst {dimension_numbers = #tpu.dot_dimension_numbers<[1], [0], [0], [1], [0, 0, 1, 1], [], []>} : vector<8x32xbf16>, vector<32x32xbf16>, vector<8x32xf32> -> vector<8x32xf32>
    %c0_7 = arith.constant 0 : index
    %c0_8 = arith.constant 0 : index
    %6 = vector.load %arg5[%c0_7, %c0_8] : memref<1x32xf32, #tpu.memory_space<vmem>>, vector<1x32xf32>
    %7 = vector.broadcast %6 : vector<1x32xf32> to vector<8x32xf32>
    %8 = arith.addf %5, %7 : vector<8x32xf32>
    %cst_9 = arith.constant 0.353553385 : f32
    %9 = vector.broadcast %cst_9 : f32 to vector<8x32xf32>
    %10 = arith.mulf %8, %9 : vector<8x32xf32>
    %11 = arith.truncf %10 : vector<8x32xf32> to vector<8x32xbf16>
    %c0_10 = arith.constant 0 : index
    %c0_11 = arith.constant 0 : index
    %12 = vector.load %arg6[%c0_10, %c0_11] : memref<32x64xbf16, #tpu.memory_space<vmem>>, vector<32x64xbf16>
    %cst_12 = arith.constant dense<0.000000e+00> : vector<4x64xf32>
    %13 = tpu.matmul %3, %12, %cst_12 {dimension_numbers = #tpu.dot_dimension_numbers<[1], [0], [0], [1], [0, 0, 1, 1], [], []>} : vector<4x32xbf16>, vector<32x64xbf16>, vector<4x64xf32> -> vector<4x64xf32>
    %c0_13 = arith.constant 0 : index
    %c0_14 = arith.constant 0 : index
    %14 = vector.load %arg7[%c0_13, %c0_14] : memref<1x64xf32, #tpu.memory_space<vmem>>, vector<1x64xf32>
    %15 = vector.broadcast %14 : vector<1x64xf32> to vector<4x64xf32>
    %16 = arith.addf %13, %15 : vector<4x64xf32>
    %17 = arith.truncf %16 : vector<4x64xf32> to vector<4x64xbf16>
    %18 = vector.extract_strided_slice %11 {offsets = [0, 0], sizes = [8, 8], strides = [1, 1]} : vector<8x32xbf16> to vector<8x8xbf16>
    %19 = vector.extract_strided_slice %17 {offsets = [0, 0], sizes = [4, 8], strides = [1, 1]} : vector<4x64xbf16> to vector<4x8xbf16>
    %20 = vector.extract_strided_slice %17 {offsets = [0, 32], sizes = [4, 8], strides = [1, 1]} : vector<4x64xbf16> to vector<4x8xbf16>
    %cst_15 = arith.constant dense<0.000000e+00> : vector<8x4xf32>
    %21 = tpu.matmul %18, %19, %cst_15 {dimension_numbers = #tpu.dot_dimension_numbers<[1], [1], [0], [0], [0, 0, 1, 0], [], []>} : vector<8x8xbf16>, vector<4x8xbf16>, vector<8x4xf32> -> vector<8x4xf32>
    %cst_16 = arith.constant dense<0xFF800000> : vector<8xf32>
    %22 = vector.multi_reduction <maximumf>, %21, %cst_16 [1] : vector<8x4xf32> to vector<8xf32>
    %23 = vector.shape_cast %22 : vector<8xf32> to vector<8x1xf32>
    %24 = vector.broadcast %23 : vector<8x1xf32> to vector<8x4xf32>
    %25 = arith.subf %21, %24 : vector<8x4xf32>
    %26 = math.exp %25 : vector<8x4xf32>
    %cst_17 = arith.constant dense<0.000000e+00> : vector<8xf32>
    %27 = vector.multi_reduction <add>, %26, %cst_17 [1] : vector<8x4xf32> to vector<8xf32>
    %28 = vector.shape_cast %27 : vector<8xf32> to vector<8x1xf32>
    %29 = arith.truncf %26 : vector<8x4xf32> to vector<8x4xbf16>
    %cst_18 = arith.constant dense<0.000000e+00> : vector<8x8xf32>
    %30 = tpu.matmul %29, %20, %cst_18 {dimension_numbers = #tpu.dot_dimension_numbers<[1], [0], [0], [1], [0, 0, 1, 1], [], []>} : vector<8x4xbf16>, vector<4x8xbf16>, vector<8x8xf32> -> vector<8x8xf32>
    %31 = tpu.reciprocal %28 {approx = true} : vector<8x1xf32> -> vector<8x1xf32>
    %32 = vector.broadcast %31 : vector<8x1xf32> to vector<8x8xf32>
    %33 = arith.mulf %30, %32 : vector<8x8xf32>
    %34 = vector.extract_strided_slice %11 {offsets = [0, 8], sizes = [8, 8], strides = [1, 1]} : vector<8x32xbf16> to vector<8x8xbf16>
    %35 = vector.extract_strided_slice %17 {offsets = [0, 8], sizes = [4, 8], strides = [1, 1]} : vector<4x64xbf16> to vector<4x8xbf16>
    %36 = vector.extract_strided_slice %17 {offsets = [0, 40], sizes = [4, 8], strides = [1, 1]} : vector<4x64xbf16> to vector<4x8xbf16>
    %cst_19 = arith.constant dense<0.000000e+00> : vector<8x4xf32>
    %37 = tpu.matmul %34, %35, %cst_19 {dimension_numbers = #tpu.dot_dimension_numbers<[1], [1], [0], [0], [0, 0, 1, 0], [], []>} : vector<8x8xbf16>, vector<4x8xbf16>, vector<8x4xf32> -> vector<8x4xf32>
    %cst_20 = arith.constant dense<0xFF800000> : vector<8xf32>
    %38 = vector.multi_reduction <maximumf>, %37, %cst_20 [1] : vector<8x4xf32> to vector<8xf32>
    %39 = vector.shape_cast %38 : vector<8xf32> to vector<8x1xf32>
    %40 = vector.broadcast %39 : vector<8x1xf32> to vector<8x4xf32>
    %41 = arith.subf %37, %40 : vector<8x4xf32>
    %42 = math.exp %41 : vector<8x4xf32>
    %cst_21 = arith.constant dense<0.000000e+00> : vector<8xf32>
    %43 = vector.multi_reduction <add>, %42, %cst_21 [1] : vector<8x4xf32> to vector<8xf32>
    %44 = vector.shape_cast %43 : vector<8xf32> to vector<8x1xf32>
    %45 = arith.truncf %42 : vector<8x4xf32> to vector<8x4xbf16>
    %cst_22 = arith.constant dense<0.000000e+00> : vector<8x8xf32>
    %46 = tpu.matmul %45, %36, %cst_22 {dimension_numbers = #tpu.dot_dimension_numbers<[1], [0], [0], [1], [0, 0, 1, 1], [], []>} : vector<8x4xbf16>, vector<4x8xbf16>, vector<8x8xf32> -> vector<8x8xf32>
    %47 = tpu.reciprocal %44 {approx = true} : vector<8x1xf32> -> vector<8x1xf32>
    %48 = vector.broadcast %47 : vector<8x1xf32> to vector<8x8xf32>
    %49 = arith.mulf %46, %48 : vector<8x8xf32>
    %50 = vector.extract_strided_slice %11 {offsets = [0, 16], sizes = [8, 8], strides = [1, 1]} : vector<8x32xbf16> to vector<8x8xbf16>
    %51 = vector.extract_strided_slice %17 {offsets = [0, 16], sizes = [4, 8], strides = [1, 1]} : vector<4x64xbf16> to vector<4x8xbf16>
    %52 = vector.extract_strided_slice %17 {offsets = [0, 48], sizes = [4, 8], strides = [1, 1]} : vector<4x64xbf16> to vector<4x8xbf16>
    %cst_23 = arith.constant dense<0.000000e+00> : vector<8x4xf32>
    %53 = tpu.matmul %50, %51, %cst_23 {dimension_numbers = #tpu.dot_dimension_numbers<[1], [1], [0], [0], [0, 0, 1, 0], [], []>} : vector<8x8xbf16>, vector<4x8xbf16>, vector<8x4xf32> -> vector<8x4xf32>
    %cst_24 = arith.constant dense<0xFF800000> : vector<8xf32>
    %54 = vector.multi_reduction <maximumf>, %53, %cst_24 [1] : vector<8x4xf32> to vector<8xf32>
    %55 = vector.shape_cast %54 : vector<8xf32> to vector<8x1xf32>
    %56 = vector.broadcast %55 : vector<8x1xf32> to vector<8x4xf32>
    %57 = arith.subf %53, %56 : vector<8x4xf32>
    %58 = math.exp %57 : vector<8x4xf32>
    %cst_25 = arith.constant dense<0.000000e+00> : vector<8xf32>
    %59 = vector.multi_reduction <add>, %58, %cst_25 [1] : vector<8x4xf32> to vector<8xf32>
    %60 = vector.shape_cast %59 : vector<8xf32> to vector<8x1xf32>
    %61 = arith.truncf %58 : vector<8x4xf32> to vector<8x4xbf16>
    %cst_26 = arith.constant dense<0.000000e+00> : vector<8x8xf32>
    %62 = tpu.matmul %61, %52, %cst_26 {dimension_numbers = #tpu.dot_dimension_numbers<[1], [0], [0], [1], [0, 0, 1, 1], [], []>} : vector<8x4xbf16>, vector<4x8xbf16>, vector<8x8xf32> -> vector<8x8xf32>
    %63 = tpu.reciprocal %60 {approx = true} : vector<8x1xf32> -> vector<8x1xf32>
    %64 = vector.broadcast %63 : vector<8x1xf32> to vector<8x8xf32>
    %65 = arith.mulf %62, %64 : vector<8x8xf32>
    %66 = vector.extract_strided_slice %11 {offsets = [0, 24], sizes = [8, 8], strides = [1, 1]} : vector<8x32xbf16> to vector<8x8xbf16>
    %67 = vector.extract_strided_slice %17 {offsets = [0, 24], sizes = [4, 8], strides = [1, 1]} : vector<4x64xbf16> to vector<4x8xbf16>
    %68 = vector.extract_strided_slice %17 {offsets = [0, 56], sizes = [4, 8], strides = [1, 1]} : vector<4x64xbf16> to vector<4x8xbf16>
    %cst_27 = arith.constant dense<0.000000e+00> : vector<8x4xf32>
    %69 = tpu.matmul %66, %67, %cst_27 {dimension_numbers = #tpu.dot_dimension_numbers<[1], [1], [0], [0], [0, 0, 1, 0], [], []>} : vector<8x8xbf16>, vector<4x8xbf16>, vector<8x4xf32> -> vector<8x4xf32>
    %cst_28 = arith.constant dense<0xFF800000> : vector<8xf32>
    %70 = vector.multi_reduction <maximumf>, %69, %cst_28 [1] : vector<8x4xf32> to vector<8xf32>
    %71 = vector.shape_cast %70 : vector<8xf32> to vector<8x1xf32>
    %72 = vector.broadcast %71 : vector<8x1xf32> to vector<8x4xf32>
    %73 = arith.subf %69, %72 : vector<8x4xf32>
    %74 = math.exp %73 : vector<8x4xf32>
    %cst_29 = arith.constant dense<0.000000e+00> : vector<8xf32>
    %75 = vector.multi_reduction <add>, %74, %cst_29 [1] : vector<8x4xf32> to vector<8xf32>
    %76 = vector.shape_cast %75 : vector<8xf32> to vector<8x1xf32>
    %77 = arith.truncf %74 : vector<8x4xf32> to vector<8x4xbf16>
    %cst_30 = arith.constant dense<0.000000e+00> : vector<8x8xf32>
    %78 = tpu.matmul %77, %68, %cst_30 {dimension_numbers = #tpu.dot_dimension_numbers<[1], [0], [0], [1], [0, 0, 1, 1], [], []>} : vector<8x4xbf16>, vector<4x8xbf16>, vector<8x8xf32> -> vector<8x8xf32>
    %79 = tpu.reciprocal %76 {approx = true} : vector<8x1xf32> -> vector<8x1xf32>
    %80 = vector.broadcast %79 : vector<8x1xf32> to vector<8x8xf32>
    %81 = arith.mulf %78, %80 : vector<8x8xf32>
    %82 = tpu.concatenate %33, %49, %65, %81 in 1 : vector<8x8xf32>, vector<8x8xf32>, vector<8x8xf32>, vector<8x8xf32> -> vector<8x32xf32>
    %83 = arith.truncf %82 : vector<8x32xf32> to vector<8x32xbf16>
    %c0_31 = arith.constant 0 : index
    %c0_32 = arith.constant 0 : index
    %84 = vector.load %arg8[%c0_31, %c0_32] : memref<32x32xbf16, #tpu.memory_space<vmem>>, vector<32x32xbf16>
    %cst_33 = arith.constant dense<0.000000e+00> : vector<8x32xf32>
    %85 = tpu.matmul %83, %84, %cst_33 {dimension_numbers = #tpu.dot_dimension_numbers<[1], [0], [0], [1], [0, 0, 1, 1], [], []>} : vector<8x32xbf16>, vector<32x32xbf16>, vector<8x32xf32> -> vector<8x32xf32>
    %c0_34 = arith.constant 0 : index
    %c0_35 = arith.constant 0 : index
    %86 = vector.load %arg9[%c0_34, %c0_35] : memref<1x32xf32, #tpu.memory_space<vmem>>, vector<1x32xf32>
    %87 = vector.broadcast %86 : vector<1x32xf32> to vector<8x32xf32>
    %88 = arith.addf %85, %87 : vector<8x32xf32>
    %89 = arith.extf %1 : vector<8x32xbf16> to vector<8x32xf32>
    %90 = arith.addf %89, %88 : vector<8x32xf32>
    %cst_36 = arith.constant dense<0.000000e+00> : vector<8xf32>
    %91 = vector.multi_reduction <add>, %90, %cst_36 [1] : vector<8x32xf32> to vector<8xf32>
    %92 = vector.shape_cast %91 : vector<8xf32> to vector<8x1xf32>
    %cst_37 = arith.constant 3.200000e+01 : f32
    %93 = vector.broadcast %cst_37 : f32 to vector<8x1xf32>
    %94 = arith.divf %92, %93 : vector<8x1xf32>
    %95 = vector.broadcast %94 : vector<8x1xf32> to vector<8x32xf32>
    %96 = arith.subf %90, %95 : vector<8x32xf32>
    %97 = arith.mulf %96, %96 : vector<8x32xf32>
    %cst_38 = arith.constant dense<0.000000e+00> : vector<8xf32>
    %98 = vector.multi_reduction <add>, %97, %cst_38 [1] : vector<8x32xf32> to vector<8xf32>
    %99 = vector.shape_cast %98 : vector<8xf32> to vector<8x1xf32>
    %cst_39 = arith.constant 3.200000e+01 : f32
    %100 = vector.broadcast %cst_39 : f32 to vector<8x1xf32>
    %101 = arith.divf %99, %100 : vector<8x1xf32>
    %102 = vector.broadcast %94 : vector<8x1xf32> to vector<8x32xf32>
    %103 = arith.subf %90, %102 : vector<8x32xf32>
    %cst_40 = arith.constant 9.99999974E-6 : f32
    %104 = vector.broadcast %cst_40 : f32 to vector<8x1xf32>
    %105 = arith.addf %101, %104 : vector<8x1xf32>
    %106 = math.rsqrt %105 : vector<8x1xf32>
    %107 = vector.broadcast %106 : vector<8x1xf32> to vector<8x32xf32>
    %108 = arith.mulf %103, %107 : vector<8x32xf32>
    %c0_41 = arith.constant 0 : index
    %c0_42 = arith.constant 0 : index
    %109 = vector.load %arg10[%c0_41, %c0_42] : memref<1x32xf32, #tpu.memory_space<vmem>>, vector<1x32xf32>
    %110 = vector.broadcast %109 : vector<1x32xf32> to vector<8x32xf32>
    %111 = arith.mulf %108, %110 : vector<8x32xf32>
    %c0_43 = arith.constant 0 : index
    %c0_44 = arith.constant 0 : index
    %112 = vector.load %arg11[%c0_43, %c0_44] : memref<1x32xf32, #tpu.memory_space<vmem>>, vector<1x32xf32>
    %113 = vector.broadcast %112 : vector<1x32xf32> to vector<8x32xf32>
    %114 = arith.addf %111, %113 : vector<8x32xf32>
    %115 = arith.truncf %114 : vector<8x32xf32> to vector<8x32xbf16>
    %c0_45 = arith.constant 0 : index
    %c0_46 = arith.constant 0 : index
    %c0_47 = arith.constant 0 : index
    %116 = vector.load %arg12[%c0_45, %c0_46, %c0_47] : memref<1x8x32xbf16, #tpu.memory_space<vmem>>, vector<1x8x32xbf16>
    %117 = vector.shape_cast %116 : vector<1x8x32xbf16> to vector<8x32xbf16>
    %118 = vector.shape_cast %115 : vector<8x32xbf16> to vector<1x8x32xbf16>
    tpu.vector_store %arg12[%c0_45, %c0_46, %c0_47], %118 {strides = array<i32>} : memref<1x8x32xbf16, #tpu.memory_space<vmem>>, vector<1x8x32xbf16>,
    return
  }
  func.func @transform_0(%arg0: i32, %arg1: i32) -> (i32, i32, i32) {
    %c0_i32 = arith.constant 0 : i32
    %c0_i32_0 = arith.constant 0 : i32
    return %arg0, %arg1, %c0_i32 : i32, i32, i32
  }
  func.func @transform_1(%arg0: i32, %arg1: i32) -> (i32, i32, i32) {
    %c0_i32 = arith.constant 0 : i32
    %c0_i32_0 = arith.constant 0 : i32
    %c0_i32_1 = arith.constant 0 : i32
    return %arg0, %c0_i32, %c0_i32_0 : i32, i32, i32
  }
  func.func @transform_2(%arg0: i32, %arg1: i32) -> (i32, i32) {
    %c0_i32 = arith.constant 0 : i32
    %c0_i32_0 = arith.constant 0 : i32
    %c0_i32_1 = arith.constant 0 : i32
    return %c0_i32, %c0_i32_0 : i32, i32
  }
  func.func @transform_3(%arg0: i32, %arg1: i32) -> (i32, i32) {
    %c0_i32 = arith.constant 0 : i32
    %c0_i32_0 = arith.constant 0 : i32
    %c0_i32_1 = arith.constant 0 : i32
    return %c0_i32, %c0_i32_0 : i32, i32
  }
  func.func @transform_4(%arg0: i32, %arg1: i32) -> (i32, i32) {
    %c0_i32 = arith.constant 0 : i32
    %c0_i32_0 = arith.constant 0 : i32
    %c0_i32_1 = arith.constant 0 : i32
    return %c0_i32, %c0_i32_0 : i32, i32
  }
  func.func @transform_5(%arg0: i32, %arg1: i32) -> (i32, i32) {
    %c0_i32 = arith.constant 0 : i32
    %c0_i32_0 = arith.constant 0 : i32
    %c0_i32_1 = arith.constant 0 : i32
    return %c0_i32, %c0_i32_0 : i32, i32
  }
  func.func @transform_6(%arg0: i32, %arg1: i32) -> (i32, i32) {
    %c0_i32 = arith.constant 0 : i32
    %c0_i32_0 = arith.constant 0 : i32
    %c0_i32_1 = arith.constant 0 : i32
    return %c0_i32, %c0_i32_0 : i32, i32
  }
  func.func @transform_7(%arg0: i32, %arg1: i32) -> (i32, i32) {
    %c0_i32 = arith.constant 0 : i32
    %c0_i32_0 = arith.constant 0 : i32
    %c0_i32_1 = arith.constant 0 : i32
    return %c0_i32, %c0_i32_0 : i32, i32
  }
  func.func @transform_8(%arg0: i32, %arg1: i32) -> (i32, i32) {
    %c0_i32 = arith.constant 0 : i32
    %c0_i32_0 = arith.constant 0 : i32
    %c0_i32_1 = arith.constant 0 : i32
    return %c0_i32, %c0_i32_0 : i32, i32
  }
  func.func @transform_9(%arg0: i32, %arg1: i32) -> (i32, i32) {
    %c0_i32 = arith.constant 0 : i32
    %c0_i32_0 = arith.constant 0 : i32
    %c0_i32_1 = arith.constant 0 : i32
    return %c0_i32, %c0_i32_0 : i32, i32
  }
  func.func @transform_10(%arg0: i32, %arg1: i32) -> (i32, i32, i32) {
    %c0_i32 = arith.constant 0 : i32
    %c0_i32_0 = arith.constant 0 : i32
    return %arg0, %arg1, %c0_i32 : i32, i32, i32
  }
}

module attributes {stable_mosaic.version = 11 : i64} {
  func.func @_head_kernel(%arg0: i32, %arg1: memref<8x32xbf16, #tpu.memory_space<vmem>>, %arg2: memref<32x64xbf16, #tpu.memory_space<vmem>>, %arg3: memref<1x64xf32, #tpu.memory_space<vmem>>, %arg4: memref<64x3xbf16, #tpu.memory_space<vmem>>, %arg5: memref<1x3xf32, #tpu.memory_space<vmem>>, %arg6: memref<8x3xf32, #tpu.memory_space<vmem>>) attributes {dimension_semantics = [#tpu.dimension_semantics<parallel>], iteration_bounds = array<i64: 2>, scalar_prefetch = 0 : i64, scratch_operands = 0 : i64, tpu.core_type = #tpu.core_type<tc>, window_params = [{transform_indices = @transform_0, window_bounds = array<i64: 8, 32>}, {pipeline_mode = #tpu.pipeline_mode<synchronous>, transform_indices = @transform_1, window_bounds = array<i64: 32, 64>}, {pipeline_mode = #tpu.pipeline_mode<synchronous>, transform_indices = @transform_2, window_bounds = array<i64: 1, 64>}, {pipeline_mode = #tpu.pipeline_mode<synchronous>, transform_indices = @transform_3, window_bounds = array<i64: 64, 3>}, {pipeline_mode = #tpu.pipeline_mode<synchronous>, transform_indices = @transform_4, window_bounds = array<i64: 1, 3>}, {transform_indices = @transform_5, window_bounds = array<i64: 8, 3>}]} {
    %c0 = arith.constant 0 : index
    %c0_0 = arith.constant 0 : index
    %0 = vector.load %arg1[%c0, %c0_0] : memref<8x32xbf16, #tpu.memory_space<vmem>>, vector<8x32xbf16>
    %c0_1 = arith.constant 0 : index
    %c0_2 = arith.constant 0 : index
    %1 = vector.load %arg2[%c0_1, %c0_2] : memref<32x64xbf16, #tpu.memory_space<vmem>>, vector<32x64xbf16>
    %cst = arith.constant dense<0.000000e+00> : vector<8x64xf32>
    %2 = tpu.matmul %0, %1, %cst {dimension_numbers = #tpu.dot_dimension_numbers<[1], [0], [0], [1], [0, 0, 1, 1], [], []>} : vector<8x32xbf16>, vector<32x64xbf16>, vector<8x64xf32> -> vector<8x64xf32>
    %c0_3 = arith.constant 0 : index
    %c0_4 = arith.constant 0 : index
    %3 = vector.load %arg3[%c0_3, %c0_4] : memref<1x64xf32, #tpu.memory_space<vmem>>, vector<1x64xf32>
    %4 = vector.broadcast %3 : vector<1x64xf32> to vector<8x64xf32>
    %5 = arith.addf %2, %4 : vector<8x64xf32>
    %cst_5 = arith.constant 5.000000e-01 : f32
    %6 = vector.broadcast %cst_5 : f32 to vector<8x64xf32>
    %7 = arith.mulf %6, %5 : vector<8x64xf32>
    %cst_6 = arith.constant 0.707106769 : f32
    %8 = vector.broadcast %cst_6 : f32 to vector<8x64xf32>
    %9 = arith.mulf %5, %8 : vector<8x64xf32>
    %10 = math.absf %9 : vector<8x64xf32>
    %cst_7 = arith.constant 0.327591091 : f32
    %11 = vector.broadcast %cst_7 : f32 to vector<8x64xf32>
    %12 = arith.mulf %11, %10 : vector<8x64xf32>
    %cst_8 = arith.constant 1.000000e+00 : f32
    %13 = vector.broadcast %cst_8 : f32 to vector<8x64xf32>
    %14 = arith.addf %13, %12 : vector<8x64xf32>
    %cst_9 = arith.constant 1.000000e+00 : f32
    %15 = vector.broadcast %cst_9 : f32 to vector<8x64xf32>
    %16 = arith.divf %15, %14 : vector<8x64xf32>
    %cst_10 = arith.constant 1.06140542 : f32
    %17 = vector.broadcast %cst_10 : f32 to vector<8x64xf32>
    %18 = arith.mulf %17, %16 : vector<8x64xf32>
    %cst_11 = arith.constant -1.45315206 : f32
    %19 = vector.broadcast %cst_11 : f32 to vector<8x64xf32>
    %20 = arith.addf %18, %19 : vector<8x64xf32>
    %21 = arith.mulf %20, %16 : vector<8x64xf32>
    %cst_12 = arith.constant 1.42141378 : f32
    %22 = vector.broadcast %cst_12 : f32 to vector<8x64xf32>
    %23 = arith.addf %21, %22 : vector<8x64xf32>
    %24 = arith.mulf %23, %16 : vector<8x64xf32>
    %cst_13 = arith.constant -0.284496725 : f32
    %25 = vector.broadcast %cst_13 : f32 to vector<8x64xf32>
    %26 = arith.addf %24, %25 : vector<8x64xf32>
    %27 = arith.mulf %26, %16 : vector<8x64xf32>
    %cst_14 = arith.constant 0.254829586 : f32
    %28 = vector.broadcast %cst_14 : f32 to vector<8x64xf32>
    %29 = arith.addf %27, %28 : vector<8x64xf32>
    %30 = arith.mulf %29, %16 : vector<8x64xf32>
    %cst_15 = arith.constant 0.000000e+00 : f32
    %31 = vector.broadcast %cst_15 : f32 to vector<8x64xf32>
    %32 = arith.subf %31, %10 : vector<8x64xf32>
    %33 = arith.mulf %32, %10 : vector<8x64xf32>
    %34 = math.exp %33 : vector<8x64xf32>
    %35 = arith.mulf %30, %34 : vector<8x64xf32>
    %cst_16 = arith.constant 1.000000e+00 : f32
    %36 = vector.broadcast %cst_16 : f32 to vector<8x64xf32>
    %37 = arith.subf %36, %35 : vector<8x64xf32>
    %cst_17 = arith.constant 0.000000e+00 : f32
    %38 = vector.broadcast %cst_17 : f32 to vector<8x64xf32>
    %39 = arith.cmpf oge, %9, %38 : vector<8x64xf32>
    %cst_18 = arith.constant 0.000000e+00 : f32
    %40 = vector.broadcast %cst_18 : f32 to vector<8x64xf32>
    %41 = arith.subf %40, %37 : vector<8x64xf32>
    %42 = arith.select %39, %37, %41 : vector<8x64xi1>, vector<8x64xf32>
    %cst_19 = arith.constant 1.000000e+00 : f32
    %43 = vector.broadcast %cst_19 : f32 to vector<8x64xf32>
    %44 = arith.addf %43, %42 : vector<8x64xf32>
    %45 = arith.mulf %7, %44 : vector<8x64xf32>
    %46 = arith.truncf %45 : vector<8x64xf32> to vector<8x64xbf16>
    %c0_20 = arith.constant 0 : index
    %c0_21 = arith.constant 0 : index
    %47 = vector.load %arg4[%c0_20, %c0_21] : memref<64x3xbf16, #tpu.memory_space<vmem>>, vector<64x3xbf16>
    %cst_22 = arith.constant dense<0.000000e+00> : vector<8x3xf32>
    %48 = tpu.matmul %46, %47, %cst_22 {dimension_numbers = #tpu.dot_dimension_numbers<[1], [0], [0], [1], [0, 0, 1, 1], [], []>} : vector<8x64xbf16>, vector<64x3xbf16>, vector<8x3xf32> -> vector<8x3xf32>
    %c0_23 = arith.constant 0 : index
    %c0_24 = arith.constant 0 : index
    %49 = vector.load %arg5[%c0_23, %c0_24] : memref<1x3xf32, #tpu.memory_space<vmem>>, vector<1x3xf32>
    %50 = vector.broadcast %49 : vector<1x3xf32> to vector<8x3xf32>
    %51 = arith.addf %48, %50 : vector<8x3xf32>
    %c0_25 = arith.constant 0 : index
    %c0_26 = arith.constant 0 : index
    %52 = vector.load %arg6[%c0_25, %c0_26] : memref<8x3xf32, #tpu.memory_space<vmem>>, vector<8x3xf32>
    tpu.vector_store %arg6[%c0_25, %c0_26], %51 {strides = array<i32>} : memref<8x3xf32, #tpu.memory_space<vmem>>, vector<8x3xf32>,
    return
  }
  func.func @transform_0(%arg0: i32) -> (i32, i32) {
    %c0_i32 = arith.constant 0 : i32
    %c0_i32_0 = arith.constant 0 : i32
    return %arg0, %c0_i32 : i32, i32
  }
  func.func @transform_1(%arg0: i32) -> (i32, i32) {
    %c0_i32 = arith.constant 0 : i32
    %c0_i32_0 = arith.constant 0 : i32
    %c0_i32_1 = arith.constant 0 : i32
    return %c0_i32, %c0_i32_0 : i32, i32
  }
  func.func @transform_2(%arg0: i32) -> (i32, i32) {
    %c0_i32 = arith.constant 0 : i32
    %c0_i32_0 = arith.constant 0 : i32
    %c0_i32_1 = arith.constant 0 : i32
    return %c0_i32, %c0_i32_0 : i32, i32
  }
  func.func @transform_3(%arg0: i32) -> (i32, i32) {
    %c0_i32 = arith.constant 0 : i32
    %c0_i32_0 = arith.constant 0 : i32
    %c0_i32_1 = arith.constant 0 : i32
    return %c0_i32, %c0_i32_0 : i32, i32
  }
  func.func @transform_4(%arg0: i32) -> (i32, i32) {
    %c0_i32 = arith.constant 0 : i32
    %c0_i32_0 = arith.constant 0 : i32
    %c0_i32_1 = arith.constant 0 : i32
    return %c0_i32, %c0_i32_0 : i32, i32
  }
  func.func @transform_5(%arg0: i32) -> (i32, i32) {
    %c0_i32 = arith.constant 0 : i32
    %c0_i32_0 = arith.constant 0 : i32
    return %arg0, %c0_i32 : i32, i32
  }
}

</mosaic_0001>

<llo_original>
// kernel: transformer_forward.8
$region0: #{transformer_forward.8}
  #allocation0 [shape = 'u32[]', space=smem, size = 0x4, offset = 0x4, fixed_abs, tag = 'smem constant byte address 0x4 - core index']
  #allocation1 [shape = 'u32[72,128]{1,0:T(1,128)}', space=vmem, size = 0x9000, scoped, tag = 'internal scratch']
  %s0 = inlined_call_operand.vmem [shape: bf16[16,32], index: 0, kind: input, shape index: {}]
  %s1 = inlined_call_operand.vmem [shape: bf16[32,64], index: 1, kind: input, shape index: {}]
  %s2 = inlined_call_operand.vmem [shape: f32[1,64], index: 2, kind: input, shape index: {}]
  %s3 = inlined_call_operand.vmem [shape: bf16[64,32], index: 3, kind: input, shape index: {}]
  %s4 = inlined_call_operand.vmem [shape: f32[1,32], index: 4, kind: input, shape index: {}]
  %s5 = inlined_call_operand.vmem [shape: f32[1,32], index: 5, kind: input, shape index: {}]
  %s6 = inlined_call_operand.vmem [shape: f32[1,32], index: 6, kind: input, shape index: {}]
  %s7 = inlined_call_operand.vmem [shape: bf16[16,32], index: 7, kind: output, shape index: {}]
  %s8 = sld [smem:[#allocation0]]
  $region61: #{transformer_forward.8} parent=0
    _
  %s10 = ssub.s32 1, %s8
  %s11 = scalar_select 0, %s10, %s8
  loop: start=0, step=1, limit=4
  $region2: #{transformer_forward.8} parent=0 // loop_pre_header
    _
  $region3: #{transformer_forward.8} parent=0 // loop_header
    %s13 = sphi 0, %s17
    %p14 = scmp.ge.s32.totalorder %s13, 4
    %s23 = sphi 0, %s25
    %s26 = sphi 0, %s23
    %s27 = sphi 0, %s26
    %s43 = sphi 0, %s27
    %s47 = sphi 0, %s47
    %s49 = sphi 0, %s47
    %s50 = sphi 0, %s49
    %s64 = sphi 0, %s50
    %s68 = sphi 0, %s68
    %s70 = sphi 0, %s68
    %s71 = sphi 0, %s70
    %s85 = sphi 0, %s71
    %s89 = sphi 0, %s89
    %s91 = sphi 0, %s89
    %s92 = sphi 0, %s91
    %s106 = sphi 0, %s92
    %s110 = sphi 0, %s110
    %s112 = sphi 0, %s110
    %s113 = sphi 0, %s112
    %s127 = sphi 0, %s113
    %s131 = sphi 0, %s131
    %s133 = sphi 0, %s131
    %s134 = sphi 0, %s133
    %s148 = sphi 0, %s134
    %s152 = sphi 0, %s152
    %s154 = sphi 0, %s152
    %s155 = sphi 0, %s154
    %s169 = sphi 0, %s155
    %s175 = sphi 0, %s177
    %s178 = sphi 0, %s175
    %s179 = sphi 0, %s178
    %s195 = sphi 0, %s179
  $region4: #{transformer_forward.8} parent=0 // loop_header_branch
    %16 = sbr.rel (%p14) target = $region8
  $region5: #{transformer_forward.8} parent=0 // loop_body
    %s18 = ssub.s32 %s13, 1
    %s19 = ssub.s32 %s13, 2
    %s20 = sadd.s32 %s13, 1
    %s21 = ssub.s32 %s13, %s20
    %p22 = scmp.eq.s32.totalorder %s21, 0
    %s24 = sadd.s32 %s23, 1
    %s25 = scalar_select %p22, %s23, %s24
    %p28 = pneg %p22
    %p29 = scmp.eq.s32.totalorder %s13, 1
    %p30 = por %p28, %p29
    %p31 = scmp.ne.s32.totalorder %s23, %s26
    %p32 = scmp.eq.s32.totalorder %s13, 0
    %p33 = por %p31, %p32
    %p34 = scmp.ne.s32.totalorder %s23, %s26
    %p35 = scmp.eq.s32.totalorder %s18, 1
    %p36 = por %p34, %p35
    %p37 = scmp.ne.s32.totalorder %s26, %s27
    %p38 = scmp.eq.s32.totalorder %s18, 0
    %p39 = por %p37, %p38
    %p40 = scmp.ne.s32.totalorder %s26, %s27
    %p41 = scmp.eq.s32.totalorder %s19, 1
    %p42 = por %p40, %p41
    %p44 = scmp.ne.s32.totalorder %s27, %s43
    %p45 = scmp.eq.s32.totalorder %s19, 0
    %p46 = por %p44, %p45
    %s48 = sadd.s32 %s47, 1
    %p51 = scmp.eq.s32.totalorder %s13, 1
    %p52 = scmp.ne.s32.totalorder %s47, %s49
    %p53 = scmp.eq.s32.totalorder %s13, 0
    %p54 = por %p52, %p53
    %p55 = scmp.ne.s32.totalorder %s47, %s49
    %p56 = scmp.eq.s32.totalorder %s18, 1
    %p57 = por %p55, %p56
    %p58 = scmp.ne.s32.totalorder %s49, %s50
    %p59 = scmp.eq.s32.totalorder %s18, 0
    %p60 = por %p58, %p59
    %p61 = scmp.ne.s32.totalorder %s49, %s50
    %p62 = scmp.eq.s32.totalorder %s19, 1
    %p63 = por %p61, %p62
    %p65 = scmp.ne.s32.totalorder %s50, %s64
    %p66 = scmp.eq.s32.totalorder %s19, 0
    %p67 = por %p65, %p66
    %s69 = sadd.s32 %s68, 1
    %p72 = scmp.eq.s32.totalorder %s13, 1
    %p73 = scmp.ne.s32.totalorder %s68, %s70
    %p74 = scmp.eq.s32.totalorder %s13, 0
    %p75 = por %p73, %p74
    %p76 = scmp.ne.s32.totalorder %s68, %s70
    %p77 = scmp.eq.s32.totalorder %s18, 1
    %p78 = por %p76, %p77
    %p79 = scmp.ne.s32.totalorder %s70, %s71
    %p80 = scmp.eq.s32.totalorder %s18, 0
    %p81 = por %p79, %p80
    %p82 = scmp.ne.s32.totalorder %s70, %s71
    %p83 = scmp.eq.s32.totalorder %s19, 1
    %p84 = por %p82, %p83
    %p86 = scmp.ne.s32.totalorder %s71, %s85
    %p87 = scmp.eq.s32.totalorder %s19, 0
    %p88 = por %p86, %p87
    %s90 = sadd.s32 %s89, 1
    %p93 = scmp.eq.s32.totalorder %s13, 1
    %p94 = scmp.ne.s32.totalorder %s89, %s91
    %p95 = scmp.eq.s32.totalorder %s13, 0
    %p96 = por %p94, %p95
    %p97 = scmp.ne.s32.totalorder %s89, %s91
    %p98 = scmp.eq.s32.totalorder %s18, 1
    %p99 = por %p97, %p98
    %p100 = scmp.ne.s32.totalorder %s91, %s92
    %p101 = scmp.eq.s32.totalorder %s18, 0
    %p102 = por %p100, %p101
    %p103 = scmp.ne.s32.totalorder %s91, %s92
    %p104 = scmp.eq.s32.totalorder %s19, 1
    %p105 = por %p103, %p104
    %p107 = scmp.ne.s32.totalorder %s92, %s106
    %p108 = scmp.eq.s32.totalorder %s19, 0
    %p109 = por %p107, %p108
    %s111 = sadd.s32 %s110, 1
    %p114 = scmp.eq.s32.totalorder %s13, 1
    %p115 = scmp.ne.s32.totalorder %s110, %s112
    %p116 = scmp.eq.s32.totalorder %s13, 0
    %p117 = por %p115, %p116
    %p118 = scmp.ne.s32.totalorder %s110, %s112
    %p119 = scmp.eq.s32.totalorder %s18, 1
    %p120 = por %p118, %p119
    %p121 = scmp.ne.s32.totalorder %s112, %s113
    %p122 = scmp.eq.s32.totalorder %s18, 0
    %p123 = por %p121, %p122
    %p124 = scmp.ne.s32.totalorder %s112, %s113
    %p125 = scmp.eq.s32.totalorder %s19, 1
    %p126 = por %p124, %p125
    %p128 = scmp.ne.s32.totalorder %s113, %s127
    %p129 = scmp.eq.s32.totalorder %s19, 0
    %p130 = por %p128, %p129
    %s132 = sadd.s32 %s131, 1
    %p135 = scmp.eq.s32.totalorder %s13, 1
    %p136 = scmp.ne.s32.totalorder %s131, %s133
    %p137 = scmp.eq.s32.totalorder %s13, 0
    %p138 = por %p136, %p137
    %p139 = scmp.ne.s32.totalorder %s131, %s133
    %p140 = scmp.eq.s32.totalorder %s18, 1
    %p141 = por %p139, %p140
    %p142 = scmp.ne.s32.totalorder %s133, %s134
    %p143 = scmp.eq.s32.totalorder %s18, 0
    %p144 = por %p142, %p143
    %p145 = scmp.ne.s32.totalorder %s133, %s134
    %p146 = scmp.eq.s32.totalorder %s19, 1
    %p147 = por %p145, %p146
    %p149 = scmp.ne.s32.totalorder %s134, %s148
    %p150 = scmp.eq.s32.totalorder %s19, 0
    %p151 = por %p149, %p150
    %s153 = sadd.s32 %s152, 1
    %p156 = scmp.eq.s32.totalorder %s13, 1
    %p157 = scmp.ne.s32.totalorder %s152, %s154
    %p158 = scmp.eq.s32.totalorder %s13, 0
    %p159 = por %p157, %p158
    %p160 = scmp.ne.s32.totalorder %s152, %s154
    %p161 = scmp.eq.s32.totalorder %s18, 1
    %p162 = por %p160, %p161
    %p163 = scmp.ne.s32.totalorder %s154, %s155
    %p164 = scmp.eq.s32.totalorder %s18, 0
    %p165 = por %p163, %p164
    %p166 = scmp.ne.s32.totalorder %s154, %s155
    %p167 = scmp.eq.s32.totalorder %s19, 1
    %p168 = por %p166, %p167
    %p170 = scmp.ne.s32.totalorder %s155, %s169
    %p171 = scmp.eq.s32.totalorder %s19, 0
    %p172 = por %p170, %p171
    %s173 = ssub.s32 %s13, %s20
    %p174 = scmp.eq.s32.totalorder %s173, 0
    %s176 = sadd.s32 %s175, 1
    %s177 = scalar_select %p174, %s175, %s176
    %p180 = pneg %p174
    %p181 = scmp.eq.s32.totalorder %s13, 1
    %p182 = por %p180, %p181
    %p183 = scmp.ne.s32.totalorder %s175, %s178
    %p184 = scmp.eq.s32.totalorder %s13, 0
    %p185 = por %p183, %p184
    %p186 = scmp.ne.s32.totalorder %s175, %s178
    %p187 = scmp.eq.s32.totalorder %s18, 1
    %p188 = por %p186, %p187
    %p189 = scmp.ne.s32.totalorder %s178, %s179
    %p190 = scmp.eq.s32.totalorder %s18, 0
    %p191 = por %p189, %p190
    %p192 = scmp.ne.s32.totalorder %s178, %s179
    %p193 = scmp.eq.s32.totalorder %s19, 1
    %p194 = por %p192, %p193
    %p196 = scmp.ne.s32.totalorder %s179, %s195
    %p197 = scmp.eq.s32.totalorder %s19, 0
    %p198 = por %p196, %p197
    %p199 = scmp.le.s32.totalorder 1, %s13
    %p200 = scmp.lt.s32.totalorder %s13, 3
    %p201 = pnand %p199, %p200
    %p202 = pneg %p201
    // Predicated region
    $region9: #{transformer_forward.8} parent=5 // pred_check
      _
    $region10: #{transformer_forward.8} parent=5 // pred_check_branch
      %204 = sbr.rel (%p201) target = $region12
    $region11: #{transformer_forward.8} parent=5 // pred_region
      %s205 = ssub.s32 %s13, 1
      // Predicated region
      $region13: #{transformer_forward.8} parent=11 // pred_check
        %p206 = pneg %p60
      $region14: #{transformer_forward.8} parent=11 // pred_check_branch
        %208 = sbr.rel (%p206) target = $region16
      $region15: #{transformer_forward.8} parent=11 // pred_region
        _
      $region16: #{transformer_forward.8} parent=11 // pred_fallthru
        _
      // Predicated region
      $region17: #{transformer_forward.8} parent=11 // pred_check
        %p209 = pneg %p81
      $region18: #{transformer_forward.8} parent=11 // pred_check_branch
        %211 = sbr.rel (%p209) target = $region20
      $region19: #{transformer_forward.8} parent=11 // pred_region
        _
      $region20: #{transformer_forward.8} parent=11 // pred_fallthru
        _
      // Predicated region
      $region21: #{transformer_forward.8} parent=11 // pred_check
        %p212 = pneg %p102
      $region22: #{transformer_forward.8} parent=11 // pred_check_branch
        %214 = sbr.rel (%p212) target = $region24
      $region23: #{transformer_forward.8} parent=11 // pred_region
        _
      $region24: #{transformer_forward.8} parent=11 // pred_fallthru
        _
      // Predicated region
      $region25: #{transformer_forward.8} parent=11 // pred_check
        %p215 = pneg %p123
      $region26: #{transformer_forward.8} parent=11 // pred_check_branch
        %217 = sbr.rel (%p215) target = $region28
      $region27: #{transformer_forward.8} parent=11 // pred_region
        _
      $region28: #{transformer_forward.8} parent=11 // pred_fallthru
        _
      // Predicated region
      $region29: #{transformer_forward.8} parent=11 // pred_check
        %p218 = pneg %p144
      $region30: #{transformer_forward.8} parent=11 // pred_check_branch
        %220 = sbr.rel (%p218) target = $region32
      $region31: #{transformer_forward.8} parent=11 // pred_region
        _
      $region32: #{transformer_forward.8} parent=11 // pred_fallthru
        _
      // Predicated region
      $region33: #{transformer_forward.8} parent=11 // pred_check
        %p221 = pneg %p165
      $region34: #{transformer_forward.8} parent=11 // pred_check_branch
        %223 = sbr.rel (%p221) target = $region36
      $region35: #{transformer_forward.8} parent=11 // pred_region
        _
      $region36: #{transformer_forward.8} parent=11 // pred_fallthru
        _
    $region12: #{transformer_forward.8} parent=5 // pred_fallthru
      _
    %p224 = scmp.lt.s32.totalorder %s13, 2
    // Predicated region
    $region37: #{transformer_forward.8} parent=5 // pred_check
      %p225 = pneg %p224
    $region38: #{transformer_forward.8} parent=5 // pred_check_branch
      %227 = sbr.rel (%p225) target = $region40
    $region39: #{transformer_forward.8} parent=5 // pred_region
      // Predicated region
      $region41: #{transformer_forward.8} parent=39 // pred_check
        %p228 = pneg %p33
      $region42: #{transformer_forward.8} parent=39 // pred_check_branch
        %230 = sbr.rel (%p228) target = $region44
      $region43: #{transformer_forward.8} parent=39 // pred_region
        %p231 = scmp.lt.s32.totalorder %s13, 1
        %s232 = scalar_select %p231, %s13, 1
        %s233 = smul.addr %s232, 4
        %s234 = scalar_lea.vmem %s0, %s233
      $region44: #{transformer_forward.8} parent=39 // pred_fallthru
        _
    $region40: #{transformer_forward.8} parent=5 // pred_fallthru
      _
    %p235 = scmp.le.s32.totalorder 1, %s13
    %p236 = scmp.lt.s32.totalorder %s13, 3
    %p237 = pnand %p235, %p236
    %p238 = pneg %p237
    // Predicated region
    $region45: #{transformer_forward.8} parent=5 // pred_check
      _
    $region46: #{transformer_forward.8} parent=5 // pred_check_branch
      %240 = sbr.rel (%p237) target = $region48
    $region47: #{transformer_forward.8} parent=5 // pred_region
      %s241 = ssub.s32 %s13, 1
      %p242 = scmp.lt.s32.totalorder %s18, 1
      %s243 = scalar_select %p242, %s18, 1
      %s244 = smul.addr %s243, 4
      %s245 = scalar_lea.vmem %s0, %s244
      %p246 = pneg %p39
      %p247 = pneg %p36
      %p248 = pneg %p60
      %p249 = pneg %p57
      %p250 = pneg %p81
      %p251 = pneg %p78
      %p252 = pneg %p102
      %p253 = pneg %p99
      %p254 = pneg %p123
      %p255 = pneg %p120
      %p256 = pneg %p144
      %p257 = pneg %p141
      %p258 = pneg %p165
      %p259 = pneg %p162
      %p260 = pneg %p191
      %p261 = pneg %p188
      %p262 = scmp.lt.s32.totalorder %s18, 1
      %s263 = scalar_select %p262, %s18, 1
      %s264 = smul.addr %s263, 4
      %s265 = scalar_lea.vmem %s7, %s264
      %p266 = scmp.lt.s32.totalorder %s18, 1
      %s267 = scalar_select %p266, %s18, 1
      %s268 = smul.addr %s267, 4
      %s269 = scalar_lea.vmem %s0, %s268
      %p270 = scmp.lt.s32.totalorder %s18, 1
      %s271 = scalar_select %p270, %s18, 1
      %s272 = smul.addr %s271, 4
      %s273 = scalar_lea.vmem %s7, %s272
      %v275 = vld [vmem:[%s269] sm:$0xf]
      %v276 = vld [vmem:[%s1] sm:$0xf]
      %v277 = vld [vmem:[%s1 + $0x4] sm:$0xf]
      %v278 = vld [vmem:[%s1 + $0x8] sm:$0xf]
      %v279 = vld [vmem:[%s1 + $0xc] sm:$0xf]
      %v280 = vld [vmem:[%s2] sm:$0x1]
      %v282 = vperm.slane %v280, 0
      %v288 = vunpack.c.l.b16 %v276
      %v289 = vunpack.c.l.b16 %v277
      %v290 = vunpack.c.l.b16 %v278
      %v291 = vunpack.c.l.b16 %v279
      %v292 = vpack.c.b16 %v289, %v288
      %v293 = vpack.c.b16 %v291, %v290
      %vm296 = vcmask 261120
      %v298 = vsel %vm296, %v275, 0
      %300 = vmatpush.bf16.msra.mxu0 0
      %301 = vmatpush.bf16.msra.mxu0 0
      %302 = vmatpush.bf16.msra.mxu0 0
      %303 = vmatpush.bf16.msra.mxu0 0
      %304 = vmatpush.bf16.msra.mxu0 0
      %305 = vmatpush.bf16.msra.mxu0 0
      %306 = vmatpush.bf16.msra.mxu0 %v293
      %307 = vmatpush.bf16.msra.mxu0 %v292
      %308 = vmatmul.bf16.gmra.mxu0 %v298
      %v309 = vpop.f32.mrf.mxu0
      %v310 = vadd.f32 %v282, %v309
      %v311 = vpop.f32.mrf.mxu0
      %312 = vdwg.mxu0
      %v313 = vmax.f32 %v310, 0.0
      %v314 = vpack.c.bf16 %v313, %v313
      %v315 = vld [vmem:[%s3] sm:$0xf]
      %v316 = vld [vmem:[%s3 + $0x4] sm:$0xf]
      %v317 = vld [vmem:[%s3 + $0x8] sm:$0xf]
      %v318 = vld [vmem:[%s3 + $0xc] sm:$0xf]
      %v319 = vld [vmem:[%s3 + $0x10] sm:$0xf]
      %v320 = vld [vmem:[%s3 + $0x14] sm:$0xf]
      %v321 = vld [vmem:[%s3 + $0x18] sm:$0xf]
      %v322 = vld [vmem:[%s3 + $0x1c] sm:$0xf]
      %v323 = vld [vmem:[%s4] sm:$0x1]
      %v325 = vperm.slane %v323, 0
      %v335 = vunpack.c.l.b16 %v315
      %v336 = vunpack.c.l.b16 %v316
      %v337 = vunpack.c.l.b16 %v317
      %v338 = vunpack.c.l.b16 %v318
      %v339 = vunpack.c.l.b16 %v319
      %v340 = vunpack.c.l.b16 %v320
      %v341 = vunpack.c.l.b16 %v321
      %v342 = vunpack.c.l.b16 %v322
      %v343 = vpack.c.b16 %v336, %v335
      %v344 = vpack.c.b16 %v338, %v337
      %v345 = vpack.c.b16 %v340, %v339
      %v346 = vpack.c.b16 %v342, %v341
      %vm351 = vcmask 523264
      %v353 = vsel %vm351, %v314, 0
      %355 = vmatpush.bf16.msra.mxu0 0
      %356 = vmatpush.bf16.msra.mxu0 0
      %357 = vmatpush.bf16.msra.mxu0 0
      %358 = vmatpush.bf16.msra.mxu0 0
      %359 = vmatpush.bf16.msra.mxu0 %v346
      %360 = vmatpush.bf16.msra.mxu0 %v345
      %361 = vmatpush.bf16.msra.mxu0 %v344
      %362 = vmatpush.bf16.msra.mxu0 %v343
      %363 = vmatmul.bf16.gmra.mxu0 %v353
      %v364 = vpop.f32.mrf.mxu0
      %v365 = vadd.f32 %v325, %v364
      %v366 = vpop.f32.mrf.mxu0
      %367 = vdwg.mxu0
      %v368 = vunpack.c.l.bf16 %v275
      %v369 = vadd.f32 %v368, %v365
      %v370 = vsel %vm296, %v369, 0.0
      %371 = vadd.xlane.f32.xlu0 %v370
      %v372 = vpop.xlane.xlu0 %371
      %v373 = vrcp.pop 32.0
      %v374 = vmul.f32 32.0, %v373
      %v375 = vsub.f32 1.0, %v374
      %v376 = vmul.f32 %v373, %v375
      %v377 = vadd.f32 %v373, %v376
      %vm378 = vweird.f32 %v373
      %v379 = vsel %vm378, %v373, %v377
      %v380 = vmul.f32 %v372, %v379
      %v381 = vsub.f32 %v369, %v380
      %v382 = vmul.f32 %v381, %v381
      %v383 = vsel %vm296, %v382, 0.0
      %384 = vadd.xlane.f32.xlu0 %v383
      %v385 = vpop.xlane.xlu0 %384
      %v386 = vmul.f32 %v385, %v379
      %v387 = vadd.f32 %v386, 1e-05
      %v388 = vrsqrt.pop %v387
      %v389 = vmul.f32 %v388, %v387
      %v390 = vmul.f32 %v389, %v388
      %v391 = vmul.f32 0.5, %v390
      %v392 = vsub.f32 1.5, %v391
      %v393 = vmul.f32 %v388, %v392
      %vm394 = vweird.f32 %v387
      %vm395 = vweird.f32 %v388
      %vm396 = vmor %vm394, %vm395
      %v397 = vsel %vm396, %v388, %v393
      %v398 = vmul.f32 %v381, %v397
      %v399 = vld [vmem:[%s5] sm:$0x1]
      %v401 = vperm.slane %v399, 0
      %v403 = vmul.f32 %v398, %v401
      %v404 = vld [vmem:[%s6] sm:$0x1]
      %v406 = vperm.slane %v404, 0
      %v408 = vadd.f32 %v403, %v406
      %v409 = vpack.c.bf16 %v408, %v408
      %vm410 = vcmask 257024
      %411 = vst.msk [vmem:[%s273] sm:$0xf] %vm410, %v409
      %p412 = scmp.lt.s32.totalorder %s18, 1
      %s413 = scalar_select %p412, %s18, 1
      %s414 = smul.addr %s413, 4
      %s415 = scalar_lea.vmem %s7, %s414
      // Predicated region
      $region49: #{transformer_forward.8} parent=47 // pred_check
        %p416 = pneg %p188
      $region50: #{transformer_forward.8} parent=47 // pred_check_branch
        %418 = sbr.rel (%p416) target = $region52
      $region51: #{transformer_forward.8} parent=47 // pred_region
        _
      $region52: #{transformer_forward.8} parent=47 // pred_fallthru
        _
    $region48: #{transformer_forward.8} parent=5 // pred_fallthru
      _
    %p419 = scmp.le.s32.totalorder 2, %s13
    // Predicated region
    $region53: #{transformer_forward.8} parent=5 // pred_check
      %p420 = pneg %p419
    $region54: #{transformer_forward.8} parent=5 // pred_check_branch
      %422 = sbr.rel (%p420) target = $region56
    $region55: #{transformer_forward.8} parent=5 // pred_region
      %s423 = ssub.s32 %s13, 2
      // Predicated region
      $region57: #{transformer_forward.8} parent=55 // pred_check
        %p424 = pneg %p194
      $region58: #{transformer_forward.8} parent=55 // pred_check_branch
        %426 = sbr.rel (%p424) target = $region60
      $region59: #{transformer_forward.8} parent=55 // pred_region
        %p427 = scmp.lt.s32.totalorder %s19, 1
        %s428 = scalar_select %p427, %s19, 1
        %s429 = smul.addr %s428, 4
        %s430 = scalar_lea.vmem %s7, %s429
      $region60: #{transformer_forward.8} parent=55 // pred_fallthru
        _
    $region56: #{transformer_forward.8} parent=5 // pred_fallthru
      _
  $region6: #{transformer_forward.8} parent=0 // loop_footer
    %s17 = sadd.s32 1, %s13
  $region7: #{transformer_forward.8} parent=0 // loop_footer_branch
    %12 = sbr.rel target = $region3
  $region8: #{transformer_forward.8} parent=0 // loop_exit
    _

// kernel: transformer_forward.7
$region0: #{transformer_forward.7}
  #allocation0 [shape = 'u32[]', space=smem, size = 0x4, offset = 0x4, fixed_abs, tag = 'smem constant byte address 0x4 - core index']
  #allocation1 [shape = 'u32[72,128]{1,0:T(1,128)}', space=vmem, size = 0x9000, scoped, tag = 'internal scratch']
  %s0 = inlined_call_operand.vmem [shape: bf16[2,8,32], index: 0, kind: input, shape index: {}, may-alias: {0,1}]
  %s1 = inlined_call_operand.vmem [shape: bf16[2,8,32], index: 1, kind: input, shape index: {}, may-alias: {0,1}]
  %s2 = inlined_call_operand.vmem [shape: bf16[32,32], index: 2, kind: input, shape index: {}]
  %s3 = inlined_call_operand.hbm [shape: f32[1,32], index: 3, kind: input, shape index: {}]
  %s4 = inlined_call_operand.vmem [shape: bf16[32,64], index: 4, kind: input, shape index: {}]
  %s5 = inlined_call_operand.hbm [shape: f32[1,64], index: 5, kind: input, shape index: {}]
  %s6 = inlined_call_operand.vmem [shape: bf16[32,32], index: 6, kind: input, shape index: {}]
  %s7 = inlined_call_operand.hbm [shape: f32[1,32], index: 7, kind: input, shape index: {}]
  %s8 = inlined_call_operand.hbm [shape: f32[1,32], index: 8, kind: input, shape index: {}]
  %s9 = inlined_call_operand.hbm [shape: f32[1,32], index: 9, kind: input, shape index: {}]
  %s10 = inlined_call_operand.vmem [shape: bf16[2,8,32], index: 10, kind: output, shape index: {}]
  %s11 = sld [smem:[#allocation0]]
  $region93: #{transformer_forward.7} parent=0
    _
  %s13 = ssub.s32 1, %s11
  %s14 = scalar_select 0, %s13, %s11
  $region1: #{transformer_forward.7} parent=0
    #allocation2 [shape = 'u8[512]{0}', space=vmem, size = 0x400, scoped, tag = 'input window, operand 3, single buffered']
    #allocation3 [shape = 's32[2]{0}', space=sflag, size = 0x8, scoped, tag = 'scoped memory for transformer_forward.7']
    #allocation4 [shape = 'u8[512]{0}', space=vmem, size = 0x400, scoped, tag = 'input window, operand 5, single buffered']
    #allocation5 [shape = 's32[1]{0}', space=sflag, size = 0x4, scoped, tag = 'scoped memory for transformer_forward.7']
    #allocation6 [shape = 'u8[512]{0}', space=vmem, size = 0x400, scoped, tag = 'input window, operand 7, single buffered']
    #allocation7 [shape = 'u8[512]{0}', space=vmem, size = 0x400, scoped, tag = 'input window, operand 8, single buffered']
    #allocation8 [shape = 's32[1]{0}', space=sflag, size = 0x4, scoped, tag = 'scoped memory for transformer_forward.7']
    #allocation9 [shape = 'u8[512]{0}', space=vmem, size = 0x400, scoped, tag = 'input window, operand 9, single buffered']
    %15 = vsyncpa [#allocation3], 0
    %16 = vsyncpa [#allocation5], 0
    %17 = vsyncpa [#allocation8], 0
    loop: start=0, step=1, limit=4
    $region2: #{transformer_forward.7} parent=1 // loop_pre_header
      _
    $region3: #{transformer_forward.7} parent=1 // loop_header
      %s19 = sphi 0, %s23
      %p20 = scmp.ge.s32.totalorder %s19, 4
      %s26 = sphi 0, %s38
      %s27 = sphi 0, %s34
      %s28 = sphi 0, %s26
      %s29 = sphi 0, %s27
      %s30 = sphi 0, %s28
      %s31 = sphi 0, %s29
      %s43 = sphi 0, %s45
      %s46 = sphi 0, %s43
      %s47 = sphi 0, %s46
      %s63 = sphi 0, %s47
      %s69 = sphi 0, %s71
      %s72 = sphi 0, %s69
      %s73 = sphi 0, %s72
      %s89 = sphi 0, %s73
      %s93 = sphi 0, %s93
      %s95 = sphi 0, %s93
      %s96 = sphi 0, %s95
      %s110 = sphi 0, %s96
      %s114 = sphi 0, %s114
      %s116 = sphi 0, %s114
      %s117 = sphi 0, %s116
      %s131 = sphi 0, %s117
      %s135 = sphi 0, %s135
      %s137 = sphi 0, %s135
      %s138 = sphi 0, %s137
      %s152 = sphi 0, %s138
      %s156 = sphi 0, %s156
      %s158 = sphi 0, %s156
      %s159 = sphi 0, %s158
      %s173 = sphi 0, %s159
      %s177 = sphi 0, %s177
      %s179 = sphi 0, %s177
      %s180 = sphi 0, %s179
      %s194 = sphi 0, %s180
      %s198 = sphi 0, %s198
      %s200 = sphi 0, %s198
      %s201 = sphi 0, %s200
      %s215 = sphi 0, %s201
      %s219 = sphi 0, %s219
      %s221 = sphi 0, %s219
      %s222 = sphi 0, %s221
      %s236 = sphi 0, %s222
      %s240 = sphi 0, %s240
      %s242 = sphi 0, %s240
      %s243 = sphi 0, %s242
      %s257 = sphi 0, %s243
      %s265 = sphi 0, %s267
      %s268 = sphi 0, %s265
      %s269 = sphi 0, %s268
      %s285 = sphi 0, %s269
    $region4: #{transformer_forward.7} parent=1 // loop_header_branch
      %22 = sbr.rel (%p20) target = $region8
    $region5: #{transformer_forward.7} parent=1 // loop_body
      %s24 = ssub.s32 %s19, 1
      %s25 = ssub.s32 %s19, 2
      %s32 = sadd.s32 1, %s27
      %p33 = scmp.ge.s32.totalorder %s32, 1
      %s34 = scalar_select %p33, 0, %s32
      %s35 = sadd.s32 1, %s26
      %s36 = scalar_select %p33, %s35, %s26
      %p37 = scmp.ge.s32.totalorder %s36, 2
      %s38 = scalar_select %p37, 0, %s36
      %s39 = ssub.s32 %s26, %s38
      %s40 = ssub.s32 %s27, %s34
      %s41 = sor.u32 %s39, %s40
      %p42 = scmp.eq.s32.totalorder %s41, 0
      %s44 = sadd.s32 %s43, 1
      %s45 = scalar_select %p42, %s43, %s44
      %p48 = pneg %p42
      %p49 = scmp.eq.s32.totalorder %s19, 1
      %p50 = por %p48, %p49
      %p51 = scmp.ne.s32.totalorder %s43, %s46
      %p52 = scmp.eq.s32.totalorder %s19, 0
      %p53 = por %p51, %p52
      %p54 = scmp.ne.s32.totalorder %s43, %s46
      %p55 = scmp.eq.s32.totalorder %s24, 1
      %p56 = por %p54, %p55
      %p57 = scmp.ne.s32.totalorder %s46, %s47
      %p58 = scmp.eq.s32.totalorder %s24, 0
      %p59 = por %p57, %p58
      %p60 = scmp.ne.s32.totalorder %s46, %s47
      %p61 = scmp.eq.s32.totalorder %s25, 1
      %p62 = por %p60, %p61
      %p64 = scmp.ne.s32.totalorder %s47, %s63
      %p65 = scmp.eq.s32.totalorder %s25, 0
      %p66 = por %p64, %p65
      %s67 = ssub.s32 %s26, %s38
      %p68 = scmp.eq.s32.totalorder %s67, 0
      %s70 = sadd.s32 %s69, 1
      %s71 = scalar_select %p68, %s69, %s70
      %p74 = pneg %p68
      %p75 = scmp.eq.s32.totalorder %s19, 1
      %p76 = por %p74, %p75
      %p77 = scmp.ne.s32.totalorder %s69, %s72
      %p78 = scmp.eq.s32.totalorder %s19, 0
      %p79 = por %p77, %p78
      %p80 = scmp.ne.s32.totalorder %s69, %s72
      %p81 = scmp.eq.s32.totalorder %s24, 1
      %p82 = por %p80, %p81
      %p83 = scmp.ne.s32.totalorder %s72, %s73
      %p84 = scmp.eq.s32.totalorder %s24, 0
      %p85 = por %p83, %p84
      %p86 = scmp.ne.s32.totalorder %s72, %s73
      %p87 = scmp.eq.s32.totalorder %s25, 1
      %p88 = por %p86, %p87
      %p90 = scmp.ne.s32.totalorder %s73, %s89
      %p91 = scmp.eq.s32.totalorder %s25, 0
      %p92 = por %p90, %p91
      %s94 = sadd.s32 %s93, 1
      %p97 = scmp.eq.s32.totalorder %s19, 1
      %p98 = scmp.ne.s32.totalorder %s93, %s95
      %p99 = scmp.eq.s32.totalorder %s19, 0
      %p100 = por %p98, %p99
      %p101 = scmp.ne.s32.totalorder %s93, %s95
      %p102 = scmp.eq.s32.totalorder %s24, 1
      %p103 = por %p101, %p102
      %p104 = scmp.ne.s32.totalorder %s95, %s96
      %p105 = scmp.eq.s32.totalorder %s24, 0
      %p106 = por %p104, %p105
      %p107 = scmp.ne.s32.totalorder %s95, %s96
      %p108 = scmp.eq.s32.totalorder %s25, 1
      %p109 = por %p107, %p108
      %p111 = scmp.ne.s32.totalorder %s96, %s110
      %p112 = scmp.eq.s32.totalorder %s25, 0
      %p113 = por %p111, %p112
      %s115 = sadd.s32 %s114, 1
      %p118 = scmp.eq.s32.totalorder %s19, 1
      %p119 = scmp.ne.s32.totalorder %s114, %s116
      %p120 = scmp.eq.s32.totalorder %s19, 0
      %p121 = por %p119, %p120
      %p122 = scmp.ne.s32.totalorder %s114, %s116
      %p123 = scmp.eq.s32.totalorder %s24, 1
      %p124 = por %p122, %p123
      %p125 = scmp.ne.s32.totalorder %s116, %s117
      %p126 = scmp.eq.s32.totalorder %s24, 0
      %p127 = por %p125, %p126
      %p128 = scmp.ne.s32.totalorder %s116, %s117
      %p129 = scmp.eq.s32.totalorder %s25, 1
      %p130 = por %p128, %p129
      %p132 = scmp.ne.s32.totalorder %s117, %s131
      %p133 = scmp.eq.s32.totalorder %s25, 0
      %p134 = por %p132, %p133
      %s136 = sadd.s32 %s135, 1
      %p139 = scmp.eq.s32.totalorder %s19, 1
      %p140 = scmp.ne.s32.totalorder %s135, %s137
      %p141 = scmp.eq.s32.totalorder %s19, 0
      %p142 = por %p140, %p141
      %p143 = scmp.ne.s32.totalorder %s135, %s137
      %p144 = scmp.eq.s32.totalorder %s24, 1
      %p145 = por %p143, %p144
      %p146 = scmp.ne.s32.totalorder %s137, %s138
      %p147 = scmp.eq.s32.totalorder %s24, 0
      %p148 = por %p146, %p147
      %p149 = scmp.ne.s32.totalorder %s137, %s138
      %p150 = scmp.eq.s32.totalorder %s25, 1
      %p151 = por %p149, %p150
      %p153 = scmp.ne.s32.totalorder %s138, %s152
      %p154 = scmp.eq.s32.totalorder %s25, 0
      %p155 = por %p153, %p154
      %s157 = sadd.s32 %s156, 1
      %p160 = scmp.eq.s32.totalorder %s19, 1
      %p161 = scmp.ne.s32.totalorder %s156, %s158
      %p162 = scmp.eq.s32.totalorder %s19, 0
      %p163 = por %p161, %p162
      %p164 = scmp.ne.s32.totalorder %s156, %s158
      %p165 = scmp.eq.s32.totalorder %s24, 1
      %p166 = por %p164, %p165
      %p167 = scmp.ne.s32.totalorder %s158, %s159
      %p168 = scmp.eq.s32.totalorder %s24, 0
      %p169 = por %p167, %p168
      %p170 = scmp.ne.s32.totalorder %s158, %s159
      %p171 = scmp.eq.s32.totalorder %s25, 1
      %p172 = por %p170, %p171
      %p174 = scmp.ne.s32.totalorder %s159, %s173
      %p175 = scmp.eq.s32.totalorder %s25, 0
      %p176 = por %p174, %p175
      %s178 = sadd.s32 %s177, 1
      %p181 = scmp.eq.s32.totalorder %s19, 1
      %p182 = scmp.ne.s32.totalorder %s177, %s179
      %p183 = scmp.eq.s32.totalorder %s19, 0
      %p184 = por %p182, %p183
      %p185 = scmp.ne.s32.totalorder %s177, %s179
      %p186 = scmp.eq.s32.totalorder %s24, 1
      %p187 = por %p185, %p186
      %p188 = scmp.ne.s32.totalorder %s179, %s180
      %p189 = scmp.eq.s32.totalorder %s24, 0
      %p190 = por %p188, %p189
      %p191 = scmp.ne.s32.totalorder %s179, %s180
      %p192 = scmp.eq.s32.totalorder %s25, 1
      %p193 = por %p191, %p192
      %p195 = scmp.ne.s32.totalorder %s180, %s194
      %p196 = scmp.eq.s32.totalorder %s25, 0
      %p197 = por %p195, %p196
      %s199 = sadd.s32 %s198, 1
      %p202 = scmp.eq.s32.totalorder %s19, 1
      %p203 = scmp.ne.s32.totalorder %s198, %s200
      %p204 = scmp.eq.s32.totalorder %s19, 0
      %p205 = por %p203, %p204
      %p206 = scmp.ne.s32.totalorder %s198, %s200
      %p207 = scmp.eq.s32.totalorder %s24, 1
      %p208 = por %p206, %p207
      %p209 = scmp.ne.s32.totalorder %s200, %s201
      %p210 = scmp.eq.s32.totalorder %s24, 0
      %p211 = por %p209, %p210
      %p212 = scmp.ne.s32.totalorder %s200, %s201
      %p213 = scmp.eq.s32.totalorder %s25, 1
      %p214 = por %p212, %p213
      %p216 = scmp.ne.s32.totalorder %s201, %s215
      %p217 = scmp.eq.s32.totalorder %s25, 0
      %p218 = por %p216, %p217
      %s220 = sadd.s32 %s219, 1
      %p223 = scmp.eq.s32.totalorder %s19, 1
      %p224 = scmp.ne.s32.totalorder %s219, %s221
      %p225 = scmp.eq.s32.totalorder %s19, 0
      %p226 = por %p224, %p225
      %p227 = scmp.ne.s32.totalorder %s219, %s221
      %p228 = scmp.eq.s32.totalorder %s24, 1
      %p229 = por %p227, %p228
      %p230 = scmp.ne.s32.totalorder %s221, %s222
      %p231 = scmp.eq.s32.totalorder %s24, 0
      %p232 = por %p230, %p231
      %p233 = scmp.ne.s32.totalorder %s221, %s222
      %p234 = scmp.eq.s32.totalorder %s25, 1
      %p235 = por %p233, %p234
      %p237 = scmp.ne.s32.totalorder %s222, %s236
      %p238 = scmp.eq.s32.totalorder %s25, 0
      %p239 = por %p237, %p238
      %s241 = sadd.s32 %s240, 1
      %p244 = scmp.eq.s32.totalorder %s19, 1
      %p245 = scmp.ne.s32.totalorder %s240, %s242
      %p246 = scmp.eq.s32.totalorder %s19, 0
      %p247 = por %p245, %p246
      %p248 = scmp.ne.s32.totalorder %s240, %s242
      %p249 = scmp.eq.s32.totalorder %s24, 1
      %p250 = por %p248, %p249
      %p251 = scmp.ne.s32.totalorder %s242, %s243
      %p252 = scmp.eq.s32.totalorder %s24, 0
      %p253 = por %p251, %p252
      %p254 = scmp.ne.s32.totalorder %s242, %s243
      %p255 = scmp.eq.s32.totalorder %s25, 1
      %p256 = por %p254, %p255
      %p258 = scmp.ne.s32.totalorder %s243, %s257
      %p259 = scmp.eq.s32.totalorder %s25, 0
      %p260 = por %p258, %p259
      %s261 = ssub.s32 %s26, %s38
      %s262 = ssub.s32 %s27, %s34
      %s263 = sor.u32 %s261, %s262
      %p264 = scmp.eq.s32.totalorder %s263, 0
      %s266 = sadd.s32 %s265, 1
      %s267 = scalar_select %p264, %s265, %s266
      %p270 = pneg %p264
      %p271 = scmp.eq.s32.totalorder %s19, 1
      %p272 = por %p270, %p271
      %p273 = scmp.ne.s32.totalorder %s265, %s268
      %p274 = scmp.eq.s32.totalorder %s19, 0
      %p275 = por %p273, %p274
      %p276 = scmp.ne.s32.totalorder %s265, %s268
      %p277 = scmp.eq.s32.totalorder %s24, 1
      %p278 = por %p276, %p277
      %p279 = scmp.ne.s32.totalorder %s268, %s269
      %p280 = scmp.eq.s32.totalorder %s24, 0
      %p281 = por %p279, %p280
      %p282 = scmp.ne.s32.totalorder %s268, %s269
      %p283 = scmp.eq.s32.totalorder %s25, 1
      %p284 = por %p282, %p283
      %p286 = scmp.ne.s32.totalorder %s269, %s285
      %p287 = scmp.eq.s32.totalorder %s25, 0
      %p288 = por %p286, %p287
      %p289 = scmp.le.s32.totalorder 1, %s19
      %p290 = scmp.lt.s32.totalorder %s19, 3
      %p291 = pnand %p289, %p290
      %p292 = pneg %p291
      // Predicated region
      $region9: #{transformer_forward.7} parent=5 // pred_check
        _
      $region10: #{transformer_forward.7} parent=5 // pred_check_branch
        %294 = sbr.rel (%p291) target = $region12
      $region11: #{transformer_forward.7} parent=5 // pred_region
        %s295 = ssub.s32 %s19, 1
        // Predicated region
        $region13: #{transformer_forward.7} parent=11 // pred_check
          %p296 = pneg %p106
        $region14: #{transformer_forward.7} parent=11 // pred_check_branch
          %298 = sbr.rel (%p296) target = $region16
        $region15: #{transformer_forward.7} parent=11 // pred_region
          _
        $region16: #{transformer_forward.7} parent=11 // pred_fallthru
          _
        // Predicated region
        $region17: #{transformer_forward.7} parent=11 // pred_check
          %p299 = pneg %p127
        $region18: #{transformer_forward.7} parent=11 // pred_check_branch
          %301 = sbr.rel (%p299) target = $region20
        $region19: #{transformer_forward.7} parent=11 // pred_region
          %303 = vsyncadd [#allocation3], 0
          %s305 = sshll.u32 %s3, 4
          %s306 = int_to_ptr.hbm [resolvable:$true] %s305
          %s307 = sshll.u32 [#allocation2], 4
          %s308 = int_to_ptr.vmem [resolvable:$true] %s307
          %310 = dma.hbm_to_vmem [thread:$0]  %s306, 16, %s308, [#allocation3]
        $region20: #{transformer_forward.7} parent=11 // pred_fallthru
          _
        // Predicated region
        $region21: #{transformer_forward.7} parent=11 // pred_check
          %p311 = pneg %p148
        $region22: #{transformer_forward.7} parent=11 // pred_check_branch
          %313 = sbr.rel (%p311) target = $region24
        $region23: #{transformer_forward.7} parent=11 // pred_region
          _
        $region24: #{transformer_forward.7} parent=11 // pred_fallthru
          _
        // Predicated region
        $region25: #{transformer_forward.7} parent=11 // pred_check
          %p314 = pneg %p169
        $region26: #{transformer_forward.7} parent=11 // pred_check_branch
          %316 = sbr.rel (%p314) target = $region28
        $region27: #{transformer_forward.7} parent=11 // pred_region
          %318 = vsyncadd [#allocation5], 0
          %s320 = sshll.u32 %s5, 4
          %s321 = int_to_ptr.hbm [resolvable:$true] %s320
          %s322 = sshll.u32 [#allocation4], 4
          %s323 = int_to_ptr.vmem [resolvable:$true] %s322
          %325 = dma.hbm_to_vmem [thread:$0]  %s321, 16, %s323, [#allocation5]
        $region28: #{transformer_forward.7} parent=11 // pred_fallthru
          _
        // Predicated region
        $region29: #{transformer_forward.7} parent=11 // pred_check
          %p326 = pneg %p190
        $region30: #{transformer_forward.7} parent=11 // pred_check_branch
          %328 = sbr.rel (%p326) target = $region32
        $region31: #{transformer_forward.7} parent=11 // pred_region
          _
        $region32: #{transformer_forward.7} parent=11 // pred_fallthru
          _
        // Predicated region
        $region33: #{transformer_forward.7} parent=11 // pred_check
          %p329 = pneg %p211
        $region34: #{transformer_forward.7} parent=11 // pred_check_branch
          %331 = sbr.rel (%p329) target = $region36
        $region35: #{transformer_forward.7} parent=11 // pred_region
          %333 = vsyncadd [#allocation5], 0
          %s335 = sshll.u32 %s7, 4
          %s336 = int_to_ptr.hbm [resolvable:$true] %s335
          %s337 = sshll.u32 [#allocation6], 4
          %s338 = int_to_ptr.vmem [resolvable:$true] %s337
          %340 = dma.hbm_to_vmem [thread:$0]  %s336, 16, %s338, [#allocation5]
        $region36: #{transformer_forward.7} parent=11 // pred_fallthru
          _
        // Predicated region
        $region37: #{transformer_forward.7} parent=11 // pred_check
          %p341 = pneg %p232
        $region38: #{transformer_forward.7} parent=11 // pred_check_branch
          %343 = sbr.rel (%p341) target = $region40
        $region39: #{transformer_forward.7} parent=11 // pred_region
          %345 = vsyncadd [#allocation8], 0
          %s347 = sshll.u32 %s8, 4
          %s348 = int_to_ptr.hbm [resolvable:$true] %s347
          %s349 = sshll.u32 [#allocation7], 4
          %s350 = int_to_ptr.vmem [resolvable:$true] %s349
          %352 = dma.hbm_to_vmem [thread:$0]  %s348, 16, %s350, [#allocation8]
        $region40: #{transformer_forward.7} parent=11 // pred_fallthru
          _
        // Predicated region
        $region41: #{transformer_forward.7} parent=11 // pred_check
          %p353 = pneg %p253
        $region42: #{transformer_forward.7} parent=11 // pred_check_branch
          %355 = sbr.rel (%p353) target = $region44
        $region43: #{transformer_forward.7} parent=11 // pred_region
          %357 = vsyncadd [#allocation8], 0
          %s359 = sshll.u32 %s9, 4
          %s360 = int_to_ptr.hbm [resolvable:$true] %s359
          %s361 = sshll.u32 [#allocation9], 4
          %s362 = int_to_ptr.vmem [resolvable:$true] %s361
          %364 = dma.hbm_to_vmem [thread:$0]  %s360, 16, %s362, [#allocation8]
        $region44: #{transformer_forward.7} parent=11 // pred_fallthru
          _
      $region12: #{transformer_forward.7} parent=5 // pred_fallthru
        _
      %p365 = scmp.lt.s32.totalorder %s19, 2
      // Predicated region
      $region45: #{transformer_forward.7} parent=5 // pred_check
        %p366 = pneg %p365
      $region46: #{transformer_forward.7} parent=5 // pred_check_branch
        %368 = sbr.rel (%p366) target = $region48
      $region47: #{transformer_forward.7} parent=5 // pred_region
        // Predicated region
        $region49: #{transformer_forward.7} parent=47 // pred_check
          %p369 = pneg %p53
        $region50: #{transformer_forward.7} parent=47 // pred_check_branch
          %371 = sbr.rel (%p369) target = $region52
        $region51: #{transformer_forward.7} parent=47 // pred_region
          %p372 = scmp.lt.s32.totalorder %s26, 1
          %s373 = scalar_select %p372, %s26, 1
          %p374 = scmp.lt.s32.totalorder %s27, 0
          %s375 = scalar_select %p374, %s27, 0
          %s376 = sadd.s32 %s375, %s373
          %s377 = smul.addr %s376, 4
          %s378 = scalar_lea.vmem %s0, %s377
        $region52: #{transformer_forward.7} parent=47 // pred_fallthru
          _
        // Predicated region
        $region53: #{transformer_forward.7} parent=47 // pred_check
          %p379 = pneg %p79
        $region54: #{transformer_forward.7} parent=47 // pred_check_branch
          %381 = sbr.rel (%p379) target = $region56
        $region55: #{transformer_forward.7} parent=47 // pred_region
          %p382 = scmp.lt.s32.totalorder %s26, 1
          %s383 = scalar_select %p382, %s26, 1
          %s384 = smul.addr %s383, 4
          %s385 = scalar_lea.vmem %s1, %s384
        $region56: #{transformer_forward.7} parent=47 // pred_fallthru
          _
      $region48: #{transformer_forward.7} parent=5 // pred_fallthru
        _
      %p386 = scmp.le.s32.totalorder 1, %s19
      %p387 = scmp.lt.s32.totalorder %s19, 3
      %p388 = pnand %p386, %p387
      %p389 = pneg %p388
      // Predicated region
      $region57: #{transformer_forward.7} parent=5 // pred_check
        _
      $region58: #{transformer_forward.7} parent=5 // pred_check_branch
        %391 = sbr.rel (%p388) target = $region60
      $region59: #{transformer_forward.7} parent=5 // pred_region
        %s392 = ssub.s32 %s19, 1
        // Predicated region
        $region61: #{transformer_forward.7} parent=59 // pred_check
          %p393 = pneg %p127
        $region62: #{transformer_forward.7} parent=59 // pred_check_branch
          %395 = sbr.rel (%p393) target = $region64
        $region63: #{transformer_forward.7} parent=59 // pred_region
          %397 = dma.done [#allocation3], 16
        $region64: #{transformer_forward.7} parent=59 // pred_fallthru
          _
        // Predicated region
        $region65: #{transformer_forward.7} parent=59 // pred_check
          %p398 = pneg %p169
        $region66: #{transformer_forward.7} parent=59 // pred_check_branch
          %400 = sbr.rel (%p398) target = $region68
        $region67: #{transformer_forward.7} parent=59 // pred_region
          %402 = dma.done [#allocation5], 16
        $region68: #{transformer_forward.7} parent=59 // pred_fallthru
          _
        // Predicated region
        $region69: #{transformer_forward.7} parent=59 // pred_check
          %p403 = pneg %p211
        $region70: #{transformer_forward.7} parent=59 // pred_check_branch
          %405 = sbr.rel (%p403) target = $region72
        $region71: #{transformer_forward.7} parent=59 // pred_region
          %407 = dma.done [#allocation5], 16
        $region72: #{transformer_forward.7} parent=59 // pred_fallthru
          _
        // Predicated region
        $region73: #{transformer_forward.7} parent=59 // pred_check
          %p408 = pneg %p232
        $region74: #{transformer_forward.7} parent=59 // pred_check_branch
          %410 = sbr.rel (%p408) target = $region76
        $region75: #{transformer_forward.7} parent=59 // pred_region
          %412 = dma.done [#allocation8], 16
        $region76: #{transformer_forward.7} parent=59 // pred_fallthru
          _
        // Predicated region
        $region77: #{transformer_forward.7} parent=59 // pred_check
          %p413 = pneg %p253
        $region78: #{transformer_forward.7} parent=59 // pred_check_branch
          %415 = sbr.rel (%p413) target = $region80
        $region79: #{transformer_forward.7} parent=59 // pred_region
          %417 = dma.done [#allocation8], 16
        $region80: #{transformer_forward.7} parent=59 // pred_fallthru
          _
        %p418 = scmp.lt.s32.totalorder %s28, 1
        %s419 = scalar_select %p418, %s28, 1
        %p420 = scmp.lt.s32.totalorder %s29, 0
        %s421 = scalar_select %p420, %s29, 0
        %s422 = sadd.s32 %s421, %s419
        %s423 = smul.addr %s422, 4
        %s424 = scalar_lea.vmem %s0, %s423
        %p425 = pneg %p59
        %p426 = pneg %p56
        %p427 = scmp.lt.s32.totalorder %s28, 1
        %s428 = scalar_select %p427, %s28, 1
        %s429 = smul.addr %s428, 4
        %s430 = scalar_lea.vmem %s1, %s429
        %p431 = pneg %p85
        %p432 = pneg %p82
        %p433 = pneg %p106
        %p434 = pneg %p103
        %p435 = pneg %p127
        %p436 = pneg %p124
        %p437 = pneg %p148
        %p438 = pneg %p145
        %p439 = pneg %p169
        %p440 = pneg %p166
        %p441 = pneg %p190
        %p442 = pneg %p187
        %p443 = pneg %p211
        %p444 = pneg %p208
        %p445 = pneg %p232
        %p446 = pneg %p229
        %p447 = pneg %p253
        %p448 = pneg %p250
        %p449 = pneg %p281
        %p450 = pneg %p278
        %p451 = scmp.lt.s32.totalorder %s28, 1
        %s452 = scalar_select %p451, %s28, 1
        %p453 = scmp.lt.s32.totalorder %s29, 0
        %s454 = scalar_select %p453, %s29, 0
        %s455 = sadd.s32 %s454, %s452
        %s456 = smul.addr %s455, 4
        %s457 = scalar_lea.vmem %s10, %s456
        %p458 = scmp.lt.s32.totalorder %s28, 1
        %s459 = scalar_select %p458, %s28, 1
        %p460 = scmp.lt.s32.totalorder %s29, 0
        %s461 = scalar_select %p460, %s29, 0
        %s462 = sadd.s32 %s461, %s459
        %s463 = smul.addr %s462, 4
        %s464 = scalar_lea.vmem %s0, %s463
        %p465 = scmp.lt.s32.totalorder %s28, 1
        %s466 = scalar_select %p465, %s28, 1
        %s467 = smul.addr %s466, 4
        %s468 = scalar_lea.vmem %s1, %s467
        %p469 = scmp.lt.s32.totalorder %s28, 1
        %s470 = scalar_select %p469, %s28, 1
        %p471 = scmp.lt.s32.totalorder %s29, 0
        %s472 = scalar_select %p471, %s29, 0
        %s473 = sadd.s32 %s472, %s470
        %s474 = smul.addr %s473, 4
        %s475 = scalar_lea.vmem %s10, %s474
        %v477 = vld [vmem:[%s464] sm:$0xf]
        %v478 = vld [vmem:[%s468] sm:$0x3]
        %v479 = vld [vmem:[%s2] sm:$0xf]
        %v480 = vld [vmem:[%s2 + $0x4] sm:$0xf]
        %v481 = vld [vmem:[%s2 + $0x8] sm:$0xf]
        %v482 = vld [vmem:[%s2 + $0xc] sm:$0xf]
        %v483 = vld [vmem:[#allocation2] sm:$0x1]
        %v485 = vperm.slane %v483, 0
        %v491 = vunpack.c.l.b16 %v479
        %v492 = vunpack.c.l.b16 %v480
        %v493 = vunpack.c.l.b16 %v481
        %v494 = vunpack.c.l.b16 %v482
        %v495 = vpack.c.b16 %v492, %v491
        %v496 = vpack.c.b16 %v494, %v493
        %vm499 = vcmask 261120
        %v501 = vsel %vm499, %v477, 0
        %503 = vmatpush.bf16.msra.mxu0 0
        %504 = vmatpush.bf16.msra.mxu0 0
        %505 = vmatpush.bf16.msra.mxu0 0
        %506 = vmatpush.bf16.msra.mxu0 0
        %507 = vmatpush.bf16.msra.mxu0 0
        %508 = vmatpush.bf16.msra.mxu0 0
        %509 = vmatpush.bf16.msra.mxu0 %v496
        %510 = vmatpush.bf16.msra.mxu0 %v495
        %511 = vmatmul.bf16.gmra.mxu0 %v501
        %v512 = vpop.f32.mrf.mxu0
        %v513 = vadd.f32 %v485, %v512
        %v514 = vpop.f32.mrf.mxu0
        %515 = vdwg.mxu0
        %v516 = vmul.f32 %v513, 0.35355338
        %v517 = vpack.c.bf16 %v516, %v516
        %v518 = vld [vmem:[%s4] sm:$0xf]
        %v519 = vld [vmem:[%s4 + $0x4] sm:$0xf]
        %v520 = vld [vmem:[%s4 + $0x8] sm:$0xf]
        %v521 = vld [vmem:[%s4 + $0xc] sm:$0xf]
        %v522 = vld [vmem:[#allocation4] sm:$0x1]
        %v524 = vperm.slane %v522, 0
        %v530 = vunpack.c.l.b16 %v518
        %v531 = vunpack.c.l.b16 %v519
        %v532 = vunpack.c.l.b16 %v520
        %v533 = vunpack.c.l.b16 %v521
        %v534 = vpack.c.b16 %v531, %v530
        %v535 = vpack.c.b16 %v533, %v532
        %v539 = vsel %vm499, %v478, 0
        %541 = vmatpush.bf16.msra.mxu0 0
        %542 = vmatpush.bf16.msra.mxu0 0
        %543 = vmatpush.bf16.msra.mxu0 0
        %544 = vmatpush.bf16.msra.mxu0 0
        %545 = vmatpush.bf16.msra.mxu0 0
        %546 = vmatpush.bf16.msra.mxu0 0
        %547 = vmatpush.bf16.msra.mxu0 %v535
        %548 = vmatpush.bf16.msra.mxu0 %v534
        %549 = vmatmul.bf16.gmra.mxu0 %v539
        %v550 = vpop.f32.mrf.mxu0
        %v551 = vadd.f32 %v524, %v550
        %v552 = vpop.f32.mrf.mxu0
        %553 = vdwg.mxu0
        %v554 = vpack.c.bf16 %v551, %v551
        %vm555 = vcmask 64512
        %v557 = vsel %vm555, %v517, 0
        %v560 = vsel %vm555, %v554, 0
        %562 = vmatpush.bf16.xpose.msra.mxu0 0
        %563 = vmatpush.bf16.xpose.msra.mxu0 0
        %564 = vmatpush.bf16.xpose.msra.mxu0 0
        %565 = vmatpush.bf16.xpose.msra.mxu0 0
        %566 = vmatpush.bf16.xpose.msra.mxu0 0
        %567 = vmatpush.bf16.xpose.msra.mxu0 0
        %568 = vmatpush.bf16.xpose.msra.mxu0 0
        %569 = vmatpush.bf16.xpose.msra.mxu0 %v560
        %570 = vmatmul.bf16.gmra.mxu0 %v557
        %v571 = vpop.f32.mrf.mxu0
        %v572 = vadd.f32 0.0, %v571
        %v573 = vpop.f32.mrf.mxu0
        %574 = vdwg.mxu0
        %vm575 = vcmask 31744
        %v576 = vsel %vm575, %v572, -inf
        %577 = vmax.xlane.f32.xlu0 %v576
        %v578 = vpop.xlane.xlu0 %577
        %v579 = vsub.f32 %v572, %v578
        %v580 = vmul.f32 %v579, 1.442695
        %v581 = vpow.pop %v580
        %v582 = vsel %vm575, %v581, 0.0
        %583 = vadd.xlane.f32.xlu0 %v582
        %v584 = vpop.xlane.xlu0 %583
        %v585 = vpack.c.bf16 %v581, %v581
        %v587 = vunpack.c.l.b16 %v554
        %v588 = vpack.c.b16 %v587, %v587
        %589 = vrot.lane.b32.xlu0 %v588, 96
        %v590 = vpop.permute.xlu0 %589
        %v592 = vsel %vm575, %v585, 0
        %vm594 = vcmask 1041408
        %v596 = vsel %vm594, %v590, 0
        %598 = vmatpush.bf16.msra.mxu0 0
        %599 = vmatpush.bf16.msra.mxu0 0
        %600 = vmatpush.bf16.msra.mxu0 0
        %601 = vmatpush.bf16.msra.mxu0 0
        %602 = vmatpush.bf16.msra.mxu0 0
        %603 = vmatpush.bf16.msra.mxu0 0
        %604 = vmatpush.bf16.msra.mxu0 0
        %605 = vmatpush.bf16.msra.mxu0 %v596
        %606 = vmatmul.bf16.gmra.mxu0 %v592
        %v607 = vpop.f32.mrf.mxu0
        %v608 = vadd.f32 0.0, %v607
        %v609 = vpop.f32.mrf.mxu0
        %610 = vdwg.mxu0
        %v611 = vrcp.pop %v584
        %v612 = vmul.f32 %v608, %v611
        %v614 = vunpack.c.l.b16 %v517
        %v615 = vpack.c.b16 %v614, %v614
        %616 = vrot.lane.b32.xlu0 %v615, 120
        %v617 = vpop.permute.xlu0 %616
        %618 = vrot.lane.b32.xlu0 %v588, 120
        %v619 = vpop.permute.xlu0 %618
        %v621 = vsel %vm555, %v617, 0
        %v624 = vsel %vm555, %v619, 0
        %626 = vmatpush.bf16.xpose.msra.mxu0 0
        %627 = vmatpush.bf16.xpose.msra.mxu0 0
        %628 = vmatpush.bf16.xpose.msra.mxu0 0
        %629 = vmatpush.bf16.xpose.msra.mxu0 0
        %630 = vmatpush.bf16.xpose.msra.mxu0 0
        %631 = vmatpush.bf16.xpose.msra.mxu0 0
        %632 = vmatpush.bf16.xpose.msra.mxu0 0
        %633 = vmatpush.bf16.xpose.msra.mxu0 %v624
        %634 = vmatmul.bf16.gmra.mxu0 %v621
        %v635 = vpop.f32.mrf.mxu0
        %v636 = vadd.f32 0.0, %v635
        %v637 = vpop.f32.mrf.mxu0
        %638 = vdwg.mxu0
        %v639 = vsel %vm575, %v636, -inf
        %640 = vmax.xlane.f32.xlu0 %v639
        %v641 = vpop.xlane.xlu0 %640
        %v642 = vsub.f32 %v636, %v641
        %v643 = vmul.f32 %v642, 1.442695
        %v644 = vpow.pop %v643
        %v645 = vsel %vm575, %v644, 0.0
        %646 = vadd.xlane.f32.xlu0 %v645
        %v647 = vpop.xlane.xlu0 %646
        %v648 = vpack.c.bf16 %v644, %v644
        %649 = vrot.lane.b32.xlu0 %v588, 88
        %v650 = vpop.permute.xlu0 %649
        %v652 = vsel %vm575, %v648, 0
        %v655 = vsel %vm594, %v650, 0
        %657 = vmatpush.bf16.msra.mxu0 0
        %658 = vmatpush.bf16.msra.mxu0 0
        %659 = vmatpush.bf16.msra.mxu0 0
        %660 = vmatpush.bf16.msra.mxu0 0
        %661 = vmatpush.bf16.msra.mxu0 0
        %662 = vmatpush.bf16.msra.mxu0 0
        %663 = vmatpush.bf16.msra.mxu0 0
        %664 = vmatpush.bf16.msra.mxu0 %v655
        %665 = vmatmul.bf16.gmra.mxu0 %v652
        %v666 = vpop.f32.mrf.mxu0
        %v667 = vadd.f32 0.0, %v666
        %v668 = vpop.f32.mrf.mxu0
        %669 = vdwg.mxu0
        %v670 = vrcp.pop %v647
        %v671 = vmul.f32 %v667, %v670
        %672 = vrot.lane.b32.xlu0 %v615, 112
        %v673 = vpop.permute.xlu0 %672
        %674 = vrot.lane.b32.xlu0 %v588, 112
        %v675 = vpop.permute.xlu0 %674
        %v677 = vsel %vm555, %v673, 0
        %v680 = vsel %vm555, %v675, 0
        %682 = vmatpush.bf16.xpose.msra.mxu0 0
        %683 = vmatpush.bf16.xpose.msra.mxu0 0
        %684 = vmatpush.bf16.xpose.msra.mxu0 0
        %685 = vmatpush.bf16.xpose.msra.mxu0 0
        %686 = vmatpush.bf16.xpose.msra.mxu0 0
        %687 = vmatpush.bf16.xpose.msra.mxu0 0
        %688 = vmatpush.bf16.xpose.msra.mxu0 0
        %689 = vmatpush.bf16.xpose.msra.mxu0 %v680
        %690 = vmatmul.bf16.gmra.mxu0 %v677
        %v691 = vpop.f32.mrf.mxu0
        %v692 = vadd.f32 0.0, %v691
        %v693 = vpop.f32.mrf.mxu0
        %694 = vdwg.mxu0
        %v695 = vsel %vm575, %v692, -inf
        %696 = vmax.xlane.f32.xlu0 %v695
        %v697 = vpop.xlane.xlu0 %696
        %v698 = vsub.f32 %v692, %v697
        %v699 = vmul.f32 %v698, 1.442695
        %v700 = vpow.pop %v699
        %v701 = vsel %vm575, %v700, 0.0
        %702 = vadd.xlane.f32.xlu0 %v701
        %v703 = vpop.xlane.xlu0 %702
        %v704 = vpack.c.bf16 %v700, %v700
        %705 = vrot.lane.b32.xlu0 %v588, 80
        %v706 = vpop.permute.xlu0 %705
        %v708 = vsel %vm575, %v704, 0
        %v711 = vsel %vm594, %v706, 0
        %713 = vmatpush.bf16.msra.mxu0 0
        %714 = vmatpush.bf16.msra.mxu0 0
        %715 = vmatpush.bf16.msra.mxu0 0
        %716 = vmatpush.bf16.msra.mxu0 0
        %717 = vmatpush.bf16.msra.mxu0 0
        %718 = vmatpush.bf16.msra.mxu0 0
        %719 = vmatpush.bf16.msra.mxu0 0
        %720 = vmatpush.bf16.msra.mxu0 %v711
        %721 = vmatmul.bf16.gmra.mxu0 %v708
        %v722 = vpop.f32.mrf.mxu0
        %v723 = vadd.f32 0.0, %v722
        %v724 = vpop.f32.mrf.mxu0
        %725 = vdwg.mxu0
        %v726 = vrcp.pop %v703
        %v727 = vmul.f32 %v723, %v726
        %728 = vrot.lane.b32.xlu0 %v615, 104
        %v729 = vpop.permute.xlu0 %728
        %730 = vrot.lane.b32.xlu0 %v588, 104
        %v731 = vpop.permute.xlu0 %730
        %v733 = vsel %vm555, %v729, 0
        %v736 = vsel %vm555, %v731, 0
        %738 = vmatpush.bf16.xpose.msra.mxu0 0
        %739 = vmatpush.bf16.xpose.msra.mxu0 0
        %740 = vmatpush.bf16.xpose.msra.mxu0 0
        %741 = vmatpush.bf16.xpose.msra.mxu0 0
        %742 = vmatpush.bf16.xpose.msra.mxu0 0
        %743 = vmatpush.bf16.xpose.msra.mxu0 0
        %744 = vmatpush.bf16.xpose.msra.mxu0 0
        %745 = vmatpush.bf16.xpose.msra.mxu0 %v736
        %746 = vmatmul.bf16.gmra.mxu0 %v733
        %v747 = vpop.f32.mrf.mxu0
        %v748 = vadd.f32 0.0, %v747
        %v749 = vpop.f32.mrf.mxu0
        %750 = vdwg.mxu0
        %v751 = vsel %vm575, %v748, -inf
        %752 = vmax.xlane.f32.xlu0 %v751
        %v753 = vpop.xlane.xlu0 %752
        %v754 = vsub.f32 %v748, %v753
        %v755 = vmul.f32 %v754, 1.442695
        %v756 = vpow.pop %v755
        %v757 = vsel %vm575, %v756, 0.0
        %758 = vadd.xlane.f32.xlu0 %v757
        %v759 = vpop.xlane.xlu0 %758
        %v760 = vpack.c.bf16 %v756, %v756
        %761 = vrot.lane.b32.xlu0 %v588, 72
        %v762 = vpop.permute.xlu0 %761
        %v764 = vsel %vm575, %v760, 0
        %v767 = vsel %vm594, %v762, 0
        %769 = vmatpush.bf16.msra.mxu0 0
        %770 = vmatpush.bf16.msra.mxu0 0
        %771 = vmatpush.bf16.msra.mxu0 0
        %772 = vmatpush.bf16.msra.mxu0 0
        %773 = vmatpush.bf16.msra.mxu0 0
        %774 = vmatpush.bf16.msra.mxu0 0
        %775 = vmatpush.bf16.msra.mxu0 0
        %776 = vmatpush.bf16.msra.mxu0 %v767
        %777 = vmatmul.bf16.gmra.mxu0 %v764
        %v778 = vpop.f32.mrf.mxu0
        %v779 = vadd.f32 0.0, %v778
        %v780 = vpop.f32.mrf.mxu0
        %781 = vdwg.mxu0
        %v782 = vrcp.pop %v759
        %v783 = vmul.f32 %v779, %v782
        %785 = vrot.lane.b32.xlu0 %v671, 8
        %v786 = vpop.permute.xlu0 %785
        %789 = vrot.lane.b32.xlu0 %v727, 16
        %v790 = vpop.permute.xlu0 %789
        %793 = vrot.lane.b32.xlu0 %v783, 24
        %v794 = vpop.permute.xlu0 %793
        %v796 = vsel %vm555, %v612, %v786
        %vm797 = vcmask 130048
        %v798 = vsel %vm797, %v796, %v790
        %vm799 = vcmask 195584
        %v800 = vsel %vm799, %v798, %v794
        %v801 = vpack.c.bf16 %v800, %v800
        %v802 = vld [vmem:[%s6] sm:$0xf]
        %v803 = vld [vmem:[%s6 + $0x4] sm:$0xf]
        %v804 = vld [vmem:[%s6 + $0x8] sm:$0xf]
        %v805 = vld [vmem:[%s6 + $0xc] sm:$0xf]
        %v806 = vld [vmem:[#allocation6] sm:$0x1]
        %v808 = vperm.slane %v806, 0
        %v814 = vunpack.c.l.b16 %v802
        %v815 = vunpack.c.l.b16 %v803
        %v816 = vunpack.c.l.b16 %v804
        %v817 = vunpack.c.l.b16 %v805
        %v818 = vpack.c.b16 %v815, %v814
        %v819 = vpack.c.b16 %v817, %v816
        %v823 = vsel %vm499, %v801, 0
        %825 = vmatpush.bf16.msra.mxu0 0
        %826 = vmatpush.bf16.msra.mxu0 0
        %827 = vmatpush.bf16.msra.mxu0 0
        %828 = vmatpush.bf16.msra.mxu0 0
        %829 = vmatpush.bf16.msra.mxu0 0
        %830 = vmatpush.bf16.msra.mxu0 0
        %831 = vmatpush.bf16.msra.mxu0 %v819
        %832 = vmatpush.bf16.msra.mxu0 %v818
        %833 = vmatmul.bf16.gmra.mxu0 %v823
        %v834 = vpop.f32.mrf.mxu0
        %v835 = vadd.f32 %v808, %v834
        %v836 = vpop.f32.mrf.mxu0
        %837 = vdwg.mxu0
        %v838 = vunpack.c.l.bf16 %v477
        %v839 = vadd.f32 %v838, %v835
        %v840 = vsel %vm499, %v839, 0.0
        %841 = vadd.xlane.f32.xlu0 %v840
        %v842 = vpop.xlane.xlu0 %841
        %v843 = vrcp.pop 32.0
        %v844 = vmul.f32 32.0, %v843
        %v845 = vsub.f32 1.0, %v844
        %v846 = vmul.f32 %v843, %v845
        %v847 = vadd.f32 %v843, %v846
        %vm848 = vweird.f32 %v843
        %v849 = vsel %vm848, %v843, %v847
        %v850 = vmul.f32 %v842, %v849
        %v851 = vsub.f32 %v839, %v850
        %v852 = vmul.f32 %v851, %v851
        %v853 = vsel %vm499, %v852, 0.0
        %854 = vadd.xlane.f32.xlu0 %v853
        %v855 = vpop.xlane.xlu0 %854
        %v856 = vmul.f32 %v855, %v849
        %v857 = vadd.f32 %v856, 1e-05
        %v858 = vrsqrt.pop %v857
        %v859 = vmul.f32 %v858, %v857
        %v860 = vmul.f32 %v859, %v858
        %v861 = vmul.f32 0.5, %v860
        %v862 = vsub.f32 1.5, %v861
        %v863 = vmul.f32 %v858, %v862
        %vm864 = vweird.f32 %v857
        %vm865 = vweird.f32 %v858
        %vm866 = vmor %vm864, %vm865
        %v867 = vsel %vm866, %v858, %v863
        %v868 = vmul.f32 %v851, %v867
        %v869 = vld [vmem:[#allocation7] sm:$0x1]
        %v871 = vperm.slane %v869, 0
        %v873 = vmul.f32 %v868, %v871
        %v874 = vld [vmem:[#allocation9] sm:$0x1]
        %v876 = vperm.slane %v874, 0
        %v878 = vadd.f32 %v873, %v876
        %v879 = vpack.c.bf16 %v878, %v878
        %vm880 = vcmask 257024
        %881 = vst.msk [vmem:[%s475] sm:$0xf] %vm880, %v879
        %p882 = scmp.lt.s32.totalorder %s28, 1
        %s883 = scalar_select %p882, %s28, 1
        %p884 = scmp.lt.s32.totalorder %s29, 0
        %s885 = scalar_select %p884, %s29, 0
        %s886 = sadd.s32 %s885, %s883
        %s887 = smul.addr %s886, 4
        %s888 = scalar_lea.vmem %s10, %s887
        // Predicated region
        $region81: #{transformer_forward.7} parent=59 // pred_check
          %p889 = pneg %p278
        $region82: #{transformer_forward.7} parent=59 // pred_check_branch
          %891 = sbr.rel (%p889) target = $region84
        $region83: #{transformer_forward.7} parent=59 // pred_region
          _
        $region84: #{transformer_forward.7} parent=59 // pred_fallthru
          _
      $region60: #{transformer_forward.7} parent=5 // pred_fallthru
        _
      %p892 = scmp.le.s32.totalorder 2, %s19
      // Predicated region
      $region85: #{transformer_forward.7} parent=5 // pred_check
        %p893 = pneg %p892
      $region86: #{transformer_forward.7} parent=5 // pred_check_branch
        %895 = sbr.rel (%p893) target = $region88
      $region87: #{transformer_forward.7} parent=5 // pred_region
        %s896 = ssub.s32 %s19, 2
        // Predicated region
        $region89: #{transformer_forward.7} parent=87 // pred_check
          %p897 = pneg %p284
        $region90: #{transformer_forward.7} parent=87 // pred_check_branch
          %899 = sbr.rel (%p897) target = $region92
        $region91: #{transformer_forward.7} parent=87 // pred_region
          %p900 = scmp.lt.s32.totalorder %s30, 1
          %s901 = scalar_select %p900, %s30, 1
          %p902 = scmp.lt.s32.totalorder %s31, 0
          %s903 = scalar_select %p902, %s31, 0
          %s904 = sadd.s32 %s903, %s901
          %s905 = smul.addr %s904, 4
          %s906 = scalar_lea.vmem %s10, %s905
        $region92: #{transformer_forward.7} parent=87 // pred_fallthru
          _
      $region88: #{transformer_forward.7} parent=5 // pred_fallthru
        _
    $region6: #{transformer_forward.7} parent=1 // loop_footer
      %s23 = sadd.s32 1, %s19
    $region7: #{transformer_forward.7} parent=1 // loop_footer_branch
      %18 = sbr.rel target = $region3
    $region8: #{transformer_forward.7} parent=1 // loop_exit
      _
    %907 = vsyncpa [#allocation3], 1
    %s908 = scalar_lea.sflag [#allocation3], 1
    %909 = vsyncpa %s908, 1
    %910 = vsyncpa [#allocation5], 1
    %911 = vsyncpa [#allocation8], 1

// kernel: transformer_forward.6
$region0: #{transformer_forward.6}
  #allocation0 [shape = 'u32[]', space=smem, size = 0x4, offset = 0x4, fixed_abs, tag = 'smem constant byte address 0x4 - core index']
  #allocation1 [shape = 'u32[72,128]{1,0:T(1,128)}', space=vmem, size = 0x9000, scoped, tag = 'internal scratch']
  %s0 = inlined_call_operand.vmem [shape: bf16[2,8,4], index: 0, kind: input, shape index: {}]
  %s1 = inlined_call_operand.vmem [shape: f32[2,8,1], index: 1, kind: input, shape index: {}]
  %s2 = inlined_call_operand.vmem [shape: bf16[4,32], index: 2, kind: input, shape index: {}]
  %s3 = inlined_call_operand.vmem [shape: f32[1,32], index: 3, kind: input, shape index: {}]
  %s4 = inlined_call_operand.vmem [shape: f32[1,32], index: 4, kind: input, shape index: {}]
  %s5 = inlined_call_operand.vmem [shape: f32[1,32], index: 5, kind: input, shape index: {}]
  %s6 = inlined_call_operand.vmem [shape: bf16[2,8,32], index: 6, kind: output, shape index: {}]
  %s7 = sld [smem:[#allocation0]]
  $region57: #{transformer_forward.6} parent=0
    _
  %s9 = ssub.s32 1, %s7
  %s10 = scalar_select 0, %s9, %s7
  loop: start=0, step=1, limit=4
  $region2: #{transformer_forward.6} parent=0 // loop_pre_header
    _
  $region3: #{transformer_forward.6} parent=0 // loop_header
    %s12 = sphi 0, %s16
    %p13 = scmp.ge.s32.totalorder %s12, 4
    %s22 = sphi 0, %s24
    %s25 = sphi 0, %s22
    %s26 = sphi 0, %s25
    %s42 = sphi 0, %s26
    %s48 = sphi 0, %s50
    %s51 = sphi 0, %s48
    %s52 = sphi 0, %s51
    %s68 = sphi 0, %s52
    %s72 = sphi 0, %s72
    %s74 = sphi 0, %s72
    %s75 = sphi 0, %s74
    %s89 = sphi 0, %s75
    %s93 = sphi 0, %s93
    %s95 = sphi 0, %s93
    %s96 = sphi 0, %s95
    %s110 = sphi 0, %s96
    %s114 = sphi 0, %s114
    %s116 = sphi 0, %s114
    %s117 = sphi 0, %s116
    %s131 = sphi 0, %s117
    %s135 = sphi 0, %s135
    %s137 = sphi 0, %s135
    %s138 = sphi 0, %s137
    %s152 = sphi 0, %s138
    %s158 = sphi 0, %s160
    %s161 = sphi 0, %s158
    %s162 = sphi 0, %s161
    %s178 = sphi 0, %s162
  $region4: #{transformer_forward.6} parent=0 // loop_header_branch
    %15 = sbr.rel (%p13) target = $region8
  $region5: #{transformer_forward.6} parent=0 // loop_body
    %s17 = ssub.s32 %s12, 1
    %s18 = ssub.s32 %s12, 2
    %s19 = sadd.s32 %s12, 1
    %s20 = ssub.s32 %s12, %s19
    %p21 = scmp.eq.s32.totalorder %s20, 0
    %s23 = sadd.s32 %s22, 1
    %s24 = scalar_select %p21, %s22, %s23
    %p27 = pneg %p21
    %p28 = scmp.eq.s32.totalorder %s12, 1
    %p29 = por %p27, %p28
    %p30 = scmp.ne.s32.totalorder %s22, %s25
    %p31 = scmp.eq.s32.totalorder %s12, 0
    %p32 = por %p30, %p31
    %p33 = scmp.ne.s32.totalorder %s22, %s25
    %p34 = scmp.eq.s32.totalorder %s17, 1
    %p35 = por %p33, %p34
    %p36 = scmp.ne.s32.totalorder %s25, %s26
    %p37 = scmp.eq.s32.totalorder %s17, 0
    %p38 = por %p36, %p37
    %p39 = scmp.ne.s32.totalorder %s25, %s26
    %p40 = scmp.eq.s32.totalorder %s18, 1
    %p41 = por %p39, %p40
    %p43 = scmp.ne.s32.totalorder %s26, %s42
    %p44 = scmp.eq.s32.totalorder %s18, 0
    %p45 = por %p43, %p44
    %s46 = ssub.s32 %s12, %s19
    %p47 = scmp.eq.s32.totalorder %s46, 0
    %s49 = sadd.s32 %s48, 1
    %s50 = scalar_select %p47, %s48, %s49
    %p53 = pneg %p47
    %p54 = scmp.eq.s32.totalorder %s12, 1
    %p55 = por %p53, %p54
    %p56 = scmp.ne.s32.totalorder %s48, %s51
    %p57 = scmp.eq.s32.totalorder %s12, 0
    %p58 = por %p56, %p57
    %p59 = scmp.ne.s32.totalorder %s48, %s51
    %p60 = scmp.eq.s32.totalorder %s17, 1
    %p61 = por %p59, %p60
    %p62 = scmp.ne.s32.totalorder %s51, %s52
    %p63 = scmp.eq.s32.totalorder %s17, 0
    %p64 = por %p62, %p63
    %p65 = scmp.ne.s32.totalorder %s51, %s52
    %p66 = scmp.eq.s32.totalorder %s18, 1
    %p67 = por %p65, %p66
    %p69 = scmp.ne.s32.totalorder %s52, %s68
    %p70 = scmp.eq.s32.totalorder %s18, 0
    %p71 = por %p69, %p70
    %s73 = sadd.s32 %s72, 1
    %p76 = scmp.eq.s32.totalorder %s12, 1
    %p77 = scmp.ne.s32.totalorder %s72, %s74
    %p78 = scmp.eq.s32.totalorder %s12, 0
    %p79 = por %p77, %p78
    %p80 = scmp.ne.s32.totalorder %s72, %s74
    %p81 = scmp.eq.s32.totalorder %s17, 1
    %p82 = por %p80, %p81
    %p83 = scmp.ne.s32.totalorder %s74, %s75
    %p84 = scmp.eq.s32.totalorder %s17, 0
    %p85 = por %p83, %p84
    %p86 = scmp.ne.s32.totalorder %s74, %s75
    %p87 = scmp.eq.s32.totalorder %s18, 1
    %p88 = por %p86, %p87
    %p90 = scmp.ne.s32.totalorder %s75, %s89
    %p91 = scmp.eq.s32.totalorder %s18, 0
    %p92 = por %p90, %p91
    %s94 = sadd.s32 %s93, 1
    %p97 = scmp.eq.s32.totalorder %s12, 1
    %p98 = scmp.ne.s32.totalorder %s93, %s95
    %p99 = scmp.eq.s32.totalorder %s12, 0
    %p100 = por %p98, %p99
    %p101 = scmp.ne.s32.totalorder %s93, %s95
    %p102 = scmp.eq.s32.totalorder %s17, 1
    %p103 = por %p101, %p102
    %p104 = scmp.ne.s32.totalorder %s95, %s96
    %p105 = scmp.eq.s32.totalorder %s17, 0
    %p106 = por %p104, %p105
    %p107 = scmp.ne.s32.totalorder %s95, %s96
    %p108 = scmp.eq.s32.totalorder %s18, 1
    %p109 = por %p107, %p108
    %p111 = scmp.ne.s32.totalorder %s96, %s110
    %p112 = scmp.eq.s32.totalorder %s18, 0
    %p113 = por %p111, %p112
    %s115 = sadd.s32 %s114, 1
    %p118 = scmp.eq.s32.totalorder %s12, 1
    %p119 = scmp.ne.s32.totalorder %s114, %s116
    %p120 = scmp.eq.s32.totalorder %s12, 0
    %p121 = por %p119, %p120
    %p122 = scmp.ne.s32.totalorder %s114, %s116
    %p123 = scmp.eq.s32.totalorder %s17, 1
    %p124 = por %p122, %p123
    %p125 = scmp.ne.s32.totalorder %s116, %s117
    %p126 = scmp.eq.s32.totalorder %s17, 0
    %p127 = por %p125, %p126
    %p128 = scmp.ne.s32.totalorder %s116, %s117
    %p129 = scmp.eq.s32.totalorder %s18, 1
    %p130 = por %p128, %p129
    %p132 = scmp.ne.s32.totalorder %s117, %s131
    %p133 = scmp.eq.s32.totalorder %s18, 0
    %p134 = por %p132, %p133
    %s136 = sadd.s32 %s135, 1
    %p139 = scmp.eq.s32.totalorder %s12, 1
    %p140 = scmp.ne.s32.totalorder %s135, %s137
    %p141 = scmp.eq.s32.totalorder %s12, 0
    %p142 = por %p140, %p141
    %p143 = scmp.ne.s32.totalorder %s135, %s137
    %p144 = scmp.eq.s32.totalorder %s17, 1
    %p145 = por %p143, %p144
    %p146 = scmp.ne.s32.totalorder %s137, %s138
    %p147 = scmp.eq.s32.totalorder %s17, 0
    %p148 = por %p146, %p147
    %p149 = scmp.ne.s32.totalorder %s137, %s138
    %p150 = scmp.eq.s32.totalorder %s18, 1
    %p151 = por %p149, %p150
    %p153 = scmp.ne.s32.totalorder %s138, %s152
    %p154 = scmp.eq.s32.totalorder %s18, 0
    %p155 = por %p153, %p154
    %s156 = ssub.s32 %s12, %s19
    %p157 = scmp.eq.s32.totalorder %s156, 0
    %s159 = sadd.s32 %s158, 1
    %s160 = scalar_select %p157, %s158, %s159
    %p163 = pneg %p157
    %p164 = scmp.eq.s32.totalorder %s12, 1
    %p165 = por %p163, %p164
    %p166 = scmp.ne.s32.totalorder %s158, %s161
    %p167 = scmp.eq.s32.totalorder %s12, 0
    %p168 = por %p166, %p167
    %p169 = scmp.ne.s32.totalorder %s158, %s161
    %p170 = scmp.eq.s32.totalorder %s17, 1
    %p171 = por %p169, %p170
    %p172 = scmp.ne.s32.totalorder %s161, %s162
    %p173 = scmp.eq.s32.totalorder %s17, 0
    %p174 = por %p172, %p173
    %p175 = scmp.ne.s32.totalorder %s161, %s162
    %p176 = scmp.eq.s32.totalorder %s18, 1
    %p177 = por %p175, %p176
    %p179 = scmp.ne.s32.totalorder %s162, %s178
    %p180 = scmp.eq.s32.totalorder %s18, 0
    %p181 = por %p179, %p180
    %p182 = scmp.le.s32.totalorder 1, %s12
    %p183 = scmp.lt.s32.totalorder %s12, 3
    %p184 = pnand %p182, %p183
    %p185 = pneg %p184
    // Predicated region
    $region9: #{transformer_forward.6} parent=5 // pred_check
      _
    $region10: #{transformer_forward.6} parent=5 // pred_check_branch
      %187 = sbr.rel (%p184) target = $region12
    $region11: #{transformer_forward.6} parent=5 // pred_region
      %s188 = ssub.s32 %s12, 1
      // Predicated region
      $region13: #{transformer_forward.6} parent=11 // pred_check
        %p189 = pneg %p85
      $region14: #{transformer_forward.6} parent=11 // pred_check_branch
        %191 = sbr.rel (%p189) target = $region16
      $region15: #{transformer_forward.6} parent=11 // pred_region
        _
      $region16: #{transformer_forward.6} parent=11 // pred_fallthru
        _
      // Predicated region
      $region17: #{transformer_forward.6} parent=11 // pred_check
        %p192 = pneg %p106
      $region18: #{transformer_forward.6} parent=11 // pred_check_branch
        %194 = sbr.rel (%p192) target = $region20
      $region19: #{transformer_forward.6} parent=11 // pred_region
        _
      $region20: #{transformer_forward.6} parent=11 // pred_fallthru
        _
      // Predicated region
      $region21: #{transformer_forward.6} parent=11 // pred_check
        %p195 = pneg %p127
      $region22: #{transformer_forward.6} parent=11 // pred_check_branch
        %197 = sbr.rel (%p195) target = $region24
      $region23: #{transformer_forward.6} parent=11 // pred_region
        _
      $region24: #{transformer_forward.6} parent=11 // pred_fallthru
        _
      // Predicated region
      $region25: #{transformer_forward.6} parent=11 // pred_check
        %p198 = pneg %p148
      $region26: #{transformer_forward.6} parent=11 // pred_check_branch
        %200 = sbr.rel (%p198) target = $region28
      $region27: #{transformer_forward.6} parent=11 // pred_region
        _
      $region28: #{transformer_forward.6} parent=11 // pred_fallthru
        _
    $region12: #{transformer_forward.6} parent=5 // pred_fallthru
      _
    %p201 = scmp.lt.s32.totalorder %s12, 2
    // Predicated region
    $region29: #{transformer_forward.6} parent=5 // pred_check
      %p202 = pneg %p201
    $region30: #{transformer_forward.6} parent=5 // pred_check_branch
      %204 = sbr.rel (%p202) target = $region32
    $region31: #{transformer_forward.6} parent=5 // pred_region
      // Predicated region
      $region33: #{transformer_forward.6} parent=31 // pred_check
        %p205 = pneg %p32
      $region34: #{transformer_forward.6} parent=31 // pred_check_branch
        %207 = sbr.rel (%p205) target = $region36
      $region35: #{transformer_forward.6} parent=31 // pred_region
        %p208 = scmp.lt.s32.totalorder %s12, 1
        %s209 = scalar_select %p208, %s12, 1
        %s210 = smul.addr %s209, 4
        %s211 = scalar_lea.vmem %s0, %s210
      $region36: #{transformer_forward.6} parent=31 // pred_fallthru
        _
      // Predicated region
      $region37: #{transformer_forward.6} parent=31 // pred_check
        %p212 = pneg %p58
      $region38: #{transformer_forward.6} parent=31 // pred_check_branch
        %214 = sbr.rel (%p212) target = $region40
      $region39: #{transformer_forward.6} parent=31 // pred_region
        %p215 = scmp.lt.s32.totalorder %s12, 1
        %s216 = scalar_select %p215, %s12, 1
        %s217 = smul.addr %s216, 8
        %s218 = scalar_lea.vmem %s1, %s217
      $region40: #{transformer_forward.6} parent=31 // pred_fallthru
        _
    $region32: #{transformer_forward.6} parent=5 // pred_fallthru
      _
    %p219 = scmp.le.s32.totalorder 1, %s12
    %p220 = scmp.lt.s32.totalorder %s12, 3
    %p221 = pnand %p219, %p220
    %p222 = pneg %p221
    // Predicated region
    $region41: #{transformer_forward.6} parent=5 // pred_check
      _
    $region42: #{transformer_forward.6} parent=5 // pred_check_branch
      %224 = sbr.rel (%p221) target = $region44
    $region43: #{transformer_forward.6} parent=5 // pred_region
      %s225 = ssub.s32 %s12, 1
      %p226 = scmp.lt.s32.totalorder %s17, 1
      %s227 = scalar_select %p226, %s17, 1
      %s228 = smul.addr %s227, 4
      %s229 = scalar_lea.vmem %s0, %s228
      %p230 = pneg %p38
      %p231 = pneg %p35
      %p232 = scmp.lt.s32.totalorder %s17, 1
      %s233 = scalar_select %p232, %s17, 1
      %s234 = smul.addr %s233, 8
      %s235 = scalar_lea.vmem %s1, %s234
      %p236 = pneg %p64
      %p237 = pneg %p61
      %p238 = pneg %p85
      %p239 = pneg %p82
      %p240 = pneg %p106
      %p241 = pneg %p103
      %p242 = pneg %p127
      %p243 = pneg %p124
      %p244 = pneg %p148
      %p245 = pneg %p145
      %p246 = pneg %p174
      %p247 = pneg %p171
      %p248 = scmp.lt.s32.totalorder %s17, 1
      %s249 = scalar_select %p248, %s17, 1
      %s250 = smul.addr %s249, 4
      %s251 = scalar_lea.vmem %s6, %s250
      %p252 = scmp.lt.s32.totalorder %s17, 1
      %s253 = scalar_select %p252, %s17, 1
      %s254 = smul.addr %s253, 4
      %s255 = scalar_lea.vmem %s0, %s254
      %p256 = scmp.lt.s32.totalorder %s17, 1
      %s257 = scalar_select %p256, %s17, 1
      %s258 = smul.addr %s257, 8
      %s259 = scalar_lea.vmem %s1, %s258
      %p260 = scmp.lt.s32.totalorder %s17, 1
      %s261 = scalar_select %p260, %s17, 1
      %s262 = smul.addr %s261, 4
      %s263 = scalar_lea.vmem %s6, %s262
      %v265 = vld [vmem:[%s255] sm:$0xf]
      %v266 = vld [vmem:[%s2] sm:$0x3]
      %v267 = vld [vmem:[%s3] sm:$0x1]
      %v269 = vperm.slane %v267, 0
      %vm271 = vcmask 31744
      %v273 = vsel %vm271, %v265, 0
      %vm275 = vcmask 1041408
      %v277 = vsel %vm275, %v266, 0
      %279 = vmatpush.bf16.msra.mxu0 0
      %280 = vmatpush.bf16.msra.mxu0 0
      %281 = vmatpush.bf16.msra.mxu0 0
      %282 = vmatpush.bf16.msra.mxu0 0
      %283 = vmatpush.bf16.msra.mxu0 0
      %284 = vmatpush.bf16.msra.mxu0 0
      %285 = vmatpush.bf16.msra.mxu0 0
      %286 = vmatpush.bf16.msra.mxu0 %v277
      %287 = vmatmul.bf16.gmra.mxu0 %v273
      %v288 = vpop.f32.mrf.mxu0
      %v289 = vadd.f32 %v269, %v288
      %v290 = vpop.f32.mrf.mxu0
      %291 = vdwg.mxu0
      %v292 = vld [vmem:[%s259] sm:$0xff]
      %v293 = vld [vmem:[%s4] sm:$0x1]
      %295 = vset.pattern.permute.xlu0 0
      %296 = vperm.xlu0 %295, %v292
      %v297 = vpop.permute.xlu0 %296
      %v300 = vperm.slane %v293, 0
      %v302 = vmul.f32 %v297, %v300
      %v303 = vld [vmem:[%s5] sm:$0x1]
      %v305 = vperm.slane %v303, 0
      %v307 = vadd.f32 %v302, %v305
      %v308 = vlaneseq
      %v309 = vshrl.u32 %v308, 7
      %vm310 = vcmp.lt.s32.totalorder %v309, 4
      %v311 = vsel %vm310, 1, 0
      %vm312 = vcmp.eq.s32.totalorder %v311, 1
      %v313 = vsel %vm312, %v307, 0.0
      %v314 = vadd.f32 %v289, %v313
      %v315 = vpack.c.bf16 %v314, %v314
      %vm316 = vcmask 257024
      %317 = vst.msk [vmem:[%s263] sm:$0xf] %vm316, %v315
      %p318 = scmp.lt.s32.totalorder %s17, 1
      %s319 = scalar_select %p318, %s17, 1
      %s320 = smul.addr %s319, 4
      %s321 = scalar_lea.vmem %s6, %s320
      // Predicated region
      $region45: #{transformer_forward.6} parent=43 // pred_check
        %p322 = pneg %p171
      $region46: #{transformer_forward.6} parent=43 // pred_check_branch
        %324 = sbr.rel (%p322) target = $region48
      $region47: #{transformer_forward.6} parent=43 // pred_region
        _
      $region48: #{transformer_forward.6} parent=43 // pred_fallthru
        _
    $region44: #{transformer_forward.6} parent=5 // pred_fallthru
      _
    %p325 = scmp.le.s32.totalorder 2, %s12
    // Predicated region
    $region49: #{transformer_forward.6} parent=5 // pred_check
      %p326 = pneg %p325
    $region50: #{transformer_forward.6} parent=5 // pred_check_branch
      %328 = sbr.rel (%p326) target = $region52
    $region51: #{transformer_forward.6} parent=5 // pred_region
      %s329 = ssub.s32 %s12, 2
      // Predicated region
      $region53: #{transformer_forward.6} parent=51 // pred_check
        %p330 = pneg %p177
      $region54: #{transformer_forward.6} parent=51 // pred_check_branch
        %332 = sbr.rel (%p330) target = $region56
      $region55: #{transformer_forward.6} parent=51 // pred_region
        %p333 = scmp.lt.s32.totalorder %s18, 1
        %s334 = scalar_select %p333, %s18, 1
        %s335 = smul.addr %s334, 4
        %s336 = scalar_lea.vmem %s6, %s335
      $region56: #{transformer_forward.6} parent=51 // pred_fallthru
        _
    $region52: #{transformer_forward.6} parent=5 // pred_fallthru
      _
  $region6: #{transformer_forward.6} parent=0 // loop_footer
    %s16 = sadd.s32 1, %s12
  $region7: #{transformer_forward.6} parent=0 // loop_footer_branch
    %11 = sbr.rel target = $region3
  $region8: #{transformer_forward.6} parent=0 // loop_exit
    _

// kernel: transformer_forward.9
$region0: #{transformer_forward.9}
  #allocation0 [shape = 'u32[]', space=smem, size = 0x4, offset = 0x4, fixed_abs, tag = 'smem constant byte address 0x4 - core index']
  #allocation1 [shape = 'u32[72,128]{1,0:T(1,128)}', space=vmem, size = 0x9000, scoped, tag = 'internal scratch']
  %s0 = inlined_call_operand.vmem [shape: bf16[2,8,32], index: 0, kind: input, shape index: {}, may-alias: {0,1}]
  %s1 = inlined_call_operand.vmem [shape: bf16[2,8,32], index: 1, kind: input, shape index: {}, may-alias: {0,1}]
  %s2 = inlined_call_operand.vmem [shape: bf16[32,32], index: 2, kind: input, shape index: {}]
  %s3 = inlined_call_operand.vmem [shape: f32[1,32], index: 3, kind: input, shape index: {}]
  %s4 = inlined_call_operand.vmem [shape: bf16[32,64], index: 4, kind: input, shape index: {}]
  %s5 = inlined_call_operand.vmem [shape: f32[1,64], index: 5, kind: input, shape index: {}]
  %s6 = inlined_call_operand.vmem [shape: bf16[32,32], index: 6, kind: input, shape index: {}]
  %s7 = inlined_call_operand.vmem [shape: f32[1,32], index: 7, kind: input, shape index: {}]
  %s8 = inlined_call_operand.vmem [shape: f32[1,32], index: 8, kind: input, shape index: {}]
  %s9 = inlined_call_operand.vmem [shape: f32[1,32], index: 9, kind: input, shape index: {}]
  %s10 = inlined_call_operand.vmem [shape: bf16[2,8,32], index: 10, kind: output, shape index: {}]
  %s11 = sld [smem:[#allocation0]]
  $region73: #{transformer_forward.9} parent=0
    _
  %s13 = ssub.s32 1, %s11
  %s14 = scalar_select 0, %s13, %s11
  loop: start=0, step=1, limit=4
  $region2: #{transformer_forward.9} parent=0 // loop_pre_header
    _
  $region3: #{transformer_forward.9} parent=0 // loop_header
    %s16 = sphi 0, %s20
    %p17 = scmp.ge.s32.totalorder %s16, 4
    %s23 = sphi 0, %s35
    %s24 = sphi 0, %s31
    %s25 = sphi 0, %s23
    %s26 = sphi 0, %s24
    %s27 = sphi 0, %s25
    %s28 = sphi 0, %s26
    %s40 = sphi 0, %s42
    %s43 = sphi 0, %s40
    %s44 = sphi 0, %s43
    %s60 = sphi 0, %s44
    %s66 = sphi 0, %s68
    %s69 = sphi 0, %s66
    %s70 = sphi 0, %s69
    %s86 = sphi 0, %s70
    %s90 = sphi 0, %s90
    %s92 = sphi 0, %s90
    %s93 = sphi 0, %s92
    %s107 = sphi 0, %s93
    %s111 = sphi 0, %s111
    %s113 = sphi 0, %s111
    %s114 = sphi 0, %s113
    %s128 = sphi 0, %s114
    %s132 = sphi 0, %s132
    %s134 = sphi 0, %s132
    %s135 = sphi 0, %s134
    %s149 = sphi 0, %s135
    %s153 = sphi 0, %s153
    %s155 = sphi 0, %s153
    %s156 = sphi 0, %s155
    %s170 = sphi 0, %s156
    %s174 = sphi 0, %s174
    %s176 = sphi 0, %s174
    %s177 = sphi 0, %s176
    %s191 = sphi 0, %s177
    %s195 = sphi 0, %s195
    %s197 = sphi 0, %s195
    %s198 = sphi 0, %s197
    %s212 = sphi 0, %s198
    %s216 = sphi 0, %s216
    %s218 = sphi 0, %s216
    %s219 = sphi 0, %s218
    %s233 = sphi 0, %s219
    %s237 = sphi 0, %s237
    %s239 = sphi 0, %s237
    %s240 = sphi 0, %s239
    %s254 = sphi 0, %s240
    %s262 = sphi 0, %s264
    %s265 = sphi 0, %s262
    %s266 = sphi 0, %s265
    %s282 = sphi 0, %s266
  $region4: #{transformer_forward.9} parent=0 // loop_header_branch
    %19 = sbr.rel (%p17) target = $region8
  $region5: #{transformer_forward.9} parent=0 // loop_body
    %s21 = ssub.s32 %s16, 1
    %s22 = ssub.s32 %s16, 2
    %s29 = sadd.s32 1, %s24
    %p30 = scmp.ge.s32.totalorder %s29, 1
    %s31 = scalar_select %p30, 0, %s29
    %s32 = sadd.s32 1, %s23
    %s33 = scalar_select %p30, %s32, %s23
    %p34 = scmp.ge.s32.totalorder %s33, 2
    %s35 = scalar_select %p34, 0, %s33
    %s36 = ssub.s32 %s23, %s35
    %s37 = ssub.s32 %s24, %s31
    %s38 = sor.u32 %s36, %s37
    %p39 = scmp.eq.s32.totalorder %s38, 0
    %s41 = sadd.s32 %s40, 1
    %s42 = scalar_select %p39, %s40, %s41
    %p45 = pneg %p39
    %p46 = scmp.eq.s32.totalorder %s16, 1
    %p47 = por %p45, %p46
    %p48 = scmp.ne.s32.totalorder %s40, %s43
    %p49 = scmp.eq.s32.totalorder %s16, 0
    %p50 = por %p48, %p49
    %p51 = scmp.ne.s32.totalorder %s40, %s43
    %p52 = scmp.eq.s32.totalorder %s21, 1
    %p53 = por %p51, %p52
    %p54 = scmp.ne.s32.totalorder %s43, %s44
    %p55 = scmp.eq.s32.totalorder %s21, 0
    %p56 = por %p54, %p55
    %p57 = scmp.ne.s32.totalorder %s43, %s44
    %p58 = scmp.eq.s32.totalorder %s22, 1
    %p59 = por %p57, %p58
    %p61 = scmp.ne.s32.totalorder %s44, %s60
    %p62 = scmp.eq.s32.totalorder %s22, 0
    %p63 = por %p61, %p62
    %s64 = ssub.s32 %s23, %s35
    %p65 = scmp.eq.s32.totalorder %s64, 0
    %s67 = sadd.s32 %s66, 1
    %s68 = scalar_select %p65, %s66, %s67
    %p71 = pneg %p65
    %p72 = scmp.eq.s32.totalorder %s16, 1
    %p73 = por %p71, %p72
    %p74 = scmp.ne.s32.totalorder %s66, %s69
    %p75 = scmp.eq.s32.totalorder %s16, 0
    %p76 = por %p74, %p75
    %p77 = scmp.ne.s32.totalorder %s66, %s69
    %p78 = scmp.eq.s32.totalorder %s21, 1
    %p79 = por %p77, %p78
    %p80 = scmp.ne.s32.totalorder %s69, %s70
    %p81 = scmp.eq.s32.totalorder %s21, 0
    %p82 = por %p80, %p81
    %p83 = scmp.ne.s32.totalorder %s69, %s70
    %p84 = scmp.eq.s32.totalorder %s22, 1
    %p85 = por %p83, %p84
    %p87 = scmp.ne.s32.totalorder %s70, %s86
    %p88 = scmp.eq.s32.totalorder %s22, 0
    %p89 = por %p87, %p88
    %s91 = sadd.s32 %s90, 1
    %p94 = scmp.eq.s32.totalorder %s16, 1
    %p95 = scmp.ne.s32.totalorder %s90, %s92
    %p96 = scmp.eq.s32.totalorder %s16, 0
    %p97 = por %p95, %p96
    %p98 = scmp.ne.s32.totalorder %s90, %s92
    %p99 = scmp.eq.s32.totalorder %s21, 1
    %p100 = por %p98, %p99
    %p101 = scmp.ne.s32.totalorder %s92, %s93
    %p102 = scmp.eq.s32.totalorder %s21, 0
    %p103 = por %p101, %p102
    %p104 = scmp.ne.s32.totalorder %s92, %s93
    %p105 = scmp.eq.s32.totalorder %s22, 1
    %p106 = por %p104, %p105
    %p108 = scmp.ne.s32.totalorder %s93, %s107
    %p109 = scmp.eq.s32.totalorder %s22, 0
    %p110 = por %p108, %p109
    %s112 = sadd.s32 %s111, 1
    %p115 = scmp.eq.s32.totalorder %s16, 1
    %p116 = scmp.ne.s32.totalorder %s111, %s113
    %p117 = scmp.eq.s32.totalorder %s16, 0
    %p118 = por %p116, %p117
    %p119 = scmp.ne.s32.totalorder %s111, %s113
    %p120 = scmp.eq.s32.totalorder %s21, 1
    %p121 = por %p119, %p120
    %p122 = scmp.ne.s32.totalorder %s113, %s114
    %p123 = scmp.eq.s32.totalorder %s21, 0
    %p124 = por %p122, %p123
    %p125 = scmp.ne.s32.totalorder %s113, %s114
    %p126 = scmp.eq.s32.totalorder %s22, 1
    %p127 = por %p125, %p126
    %p129 = scmp.ne.s32.totalorder %s114, %s128
    %p130 = scmp.eq.s32.totalorder %s22, 0
    %p131 = por %p129, %p130
    %s133 = sadd.s32 %s132, 1
    %p136 = scmp.eq.s32.totalorder %s16, 1
    %p137 = scmp.ne.s32.totalorder %s132, %s134
    %p138 = scmp.eq.s32.totalorder %s16, 0
    %p139 = por %p137, %p138
    %p140 = scmp.ne.s32.totalorder %s132, %s134
    %p141 = scmp.eq.s32.totalorder %s21, 1
    %p142 = por %p140, %p141
    %p143 = scmp.ne.s32.totalorder %s134, %s135
    %p144 = scmp.eq.s32.totalorder %s21, 0
    %p145 = por %p143, %p144
    %p146 = scmp.ne.s32.totalorder %s134, %s135
    %p147 = scmp.eq.s32.totalorder %s22, 1
    %p148 = por %p146, %p147
    %p150 = scmp.ne.s32.totalorder %s135, %s149
    %p151 = scmp.eq.s32.totalorder %s22, 0
    %p152 = por %p150, %p151
    %s154 = sadd.s32 %s153, 1
    %p157 = scmp.eq.s32.totalorder %s16, 1
    %p158 = scmp.ne.s32.totalorder %s153, %s155
    %p159 = scmp.eq.s32.totalorder %s16, 0
    %p160 = por %p158, %p159
    %p161 = scmp.ne.s32.totalorder %s153, %s155
    %p162 = scmp.eq.s32.totalorder %s21, 1
    %p163 = por %p161, %p162
    %p164 = scmp.ne.s32.totalorder %s155, %s156
    %p165 = scmp.eq.s32.totalorder %s21, 0
    %p166 = por %p164, %p165
    %p167 = scmp.ne.s32.totalorder %s155, %s156
    %p168 = scmp.eq.s32.totalorder %s22, 1
    %p169 = por %p167, %p168
    %p171 = scmp.ne.s32.totalorder %s156, %s170
    %p172 = scmp.eq.s32.totalorder %s22, 0
    %p173 = por %p171, %p172
    %s175 = sadd.s32 %s174, 1
    %p178 = scmp.eq.s32.totalorder %s16, 1
    %p179 = scmp.ne.s32.totalorder %s174, %s176
    %p180 = scmp.eq.s32.totalorder %s16, 0
    %p181 = por %p179, %p180
    %p182 = scmp.ne.s32.totalorder %s174, %s176
    %p183 = scmp.eq.s32.totalorder %s21, 1
    %p184 = por %p182, %p183
    %p185 = scmp.ne.s32.totalorder %s176, %s177
    %p186 = scmp.eq.s32.totalorder %s21, 0
    %p187 = por %p185, %p186
    %p188 = scmp.ne.s32.totalorder %s176, %s177
    %p189 = scmp.eq.s32.totalorder %s22, 1
    %p190 = por %p188, %p189
    %p192 = scmp.ne.s32.totalorder %s177, %s191
    %p193 = scmp.eq.s32.totalorder %s22, 0
    %p194 = por %p192, %p193
    %s196 = sadd.s32 %s195, 1
    %p199 = scmp.eq.s32.totalorder %s16, 1
    %p200 = scmp.ne.s32.totalorder %s195, %s197
    %p201 = scmp.eq.s32.totalorder %s16, 0
    %p202 = por %p200, %p201
    %p203 = scmp.ne.s32.totalorder %s195, %s197
    %p204 = scmp.eq.s32.totalorder %s21, 1
    %p205 = por %p203, %p204
    %p206 = scmp.ne.s32.totalorder %s197, %s198
    %p207 = scmp.eq.s32.totalorder %s21, 0
    %p208 = por %p206, %p207
    %p209 = scmp.ne.s32.totalorder %s197, %s198
    %p210 = scmp.eq.s32.totalorder %s22, 1
    %p211 = por %p209, %p210
    %p213 = scmp.ne.s32.totalorder %s198, %s212
    %p214 = scmp.eq.s32.totalorder %s22, 0
    %p215 = por %p213, %p214
    %s217 = sadd.s32 %s216, 1
    %p220 = scmp.eq.s32.totalorder %s16, 1
    %p221 = scmp.ne.s32.totalorder %s216, %s218
    %p222 = scmp.eq.s32.totalorder %s16, 0
    %p223 = por %p221, %p222
    %p224 = scmp.ne.s32.totalorder %s216, %s218
    %p225 = scmp.eq.s32.totalorder %s21, 1
    %p226 = por %p224, %p225
    %p227 = scmp.ne.s32.totalorder %s218, %s219
    %p228 = scmp.eq.s32.totalorder %s21, 0
    %p229 = por %p227, %p228
    %p230 = scmp.ne.s32.totalorder %s218, %s219
    %p231 = scmp.eq.s32.totalorder %s22, 1
    %p232 = por %p230, %p231
    %p234 = scmp.ne.s32.totalorder %s219, %s233
    %p235 = scmp.eq.s32.totalorder %s22, 0
    %p236 = por %p234, %p235
    %s238 = sadd.s32 %s237, 1
    %p241 = scmp.eq.s32.totalorder %s16, 1
    %p242 = scmp.ne.s32.totalorder %s237, %s239
    %p243 = scmp.eq.s32.totalorder %s16, 0
    %p244 = por %p242, %p243
    %p245 = scmp.ne.s32.totalorder %s237, %s239
    %p246 = scmp.eq.s32.totalorder %s21, 1
    %p247 = por %p245, %p246
    %p248 = scmp.ne.s32.totalorder %s239, %s240
    %p249 = scmp.eq.s32.totalorder %s21, 0
    %p250 = por %p248, %p249
    %p251 = scmp.ne.s32.totalorder %s239, %s240
    %p252 = scmp.eq.s32.totalorder %s22, 1
    %p253 = por %p251, %p252
    %p255 = scmp.ne.s32.totalorder %s240, %s254
    %p256 = scmp.eq.s32.totalorder %s22, 0
    %p257 = por %p255, %p256
    %s258 = ssub.s32 %s23, %s35
    %s259 = ssub.s32 %s24, %s31
    %s260 = sor.u32 %s258, %s259
    %p261 = scmp.eq.s32.totalorder %s260, 0
    %s263 = sadd.s32 %s262, 1
    %s264 = scalar_select %p261, %s262, %s263
    %p267 = pneg %p261
    %p268 = scmp.eq.s32.totalorder %s16, 1
    %p269 = por %p267, %p268
    %p270 = scmp.ne.s32.totalorder %s262, %s265
    %p271 = scmp.eq.s32.totalorder %s16, 0
    %p272 = por %p270, %p271
    %p273 = scmp.ne.s32.totalorder %s262, %s265
    %p274 = scmp.eq.s32.totalorder %s21, 1
    %p275 = por %p273, %p274
    %p276 = scmp.ne.s32.totalorder %s265, %s266
    %p277 = scmp.eq.s32.totalorder %s21, 0
    %p278 = por %p276, %p277
    %p279 = scmp.ne.s32.totalorder %s265, %s266
    %p280 = scmp.eq.s32.totalorder %s22, 1
    %p281 = por %p279, %p280
    %p283 = scmp.ne.s32.totalorder %s266, %s282
    %p284 = scmp.eq.s32.totalorder %s22, 0
    %p285 = por %p283, %p284
    %p286 = scmp.le.s32.totalorder 1, %s16
    %p287 = scmp.lt.s32.totalorder %s16, 3
    %p288 = pnand %p286, %p287
    %p289 = pneg %p288
    // Predicated region
    $region9: #{transformer_forward.9} parent=5 // pred_check
      _
    $region10: #{transformer_forward.9} parent=5 // pred_check_branch
      %291 = sbr.rel (%p288) target = $region12
    $region11: #{transformer_forward.9} parent=5 // pred_region
      %s292 = ssub.s32 %s16, 1
      // Predicated region
      $region13: #{transformer_forward.9} parent=11 // pred_check
        %p293 = pneg %p103
      $region14: #{transformer_forward.9} parent=11 // pred_check_branch
        %295 = sbr.rel (%p293) target = $region16
      $region15: #{transformer_forward.9} parent=11 // pred_region
        _
      $region16: #{transformer_forward.9} parent=11 // pred_fallthru
        _
      // Predicated region
      $region17: #{transformer_forward.9} parent=11 // pred_check
        %p296 = pneg %p124
      $region18: #{transformer_forward.9} parent=11 // pred_check_branch
        %298 = sbr.rel (%p296) target = $region20
      $region19: #{transformer_forward.9} parent=11 // pred_region
        _
      $region20: #{transformer_forward.9} parent=11 // pred_fallthru
        _
      // Predicated region
      $region21: #{transformer_forward.9} parent=11 // pred_check
        %p299 = pneg %p145
      $region22: #{transformer_forward.9} parent=11 // pred_check_branch
        %301 = sbr.rel (%p299) target = $region24
      $region23: #{transformer_forward.9} parent=11 // pred_region
        _
      $region24: #{transformer_forward.9} parent=11 // pred_fallthru
        _
      // Predicated region
      $region25: #{transformer_forward.9} parent=11 // pred_check
        %p302 = pneg %p166
      $region26: #{transformer_forward.9} parent=11 // pred_check_branch
        %304 = sbr.rel (%p302) target = $region28
      $region27: #{transformer_forward.9} parent=11 // pred_region
        _
      $region28: #{transformer_forward.9} parent=11 // pred_fallthru
        _
      // Predicated region
      $region29: #{transformer_forward.9} parent=11 // pred_check
        %p305 = pneg %p187
      $region30: #{transformer_forward.9} parent=11 // pred_check_branch
        %307 = sbr.rel (%p305) target = $region32
      $region31: #{transformer_forward.9} parent=11 // pred_region
        _
      $region32: #{transformer_forward.9} parent=11 // pred_fallthru
        _
      // Predicated region
      $region33: #{transformer_forward.9} parent=11 // pred_check
        %p308 = pneg %p208
      $region34: #{transformer_forward.9} parent=11 // pred_check_branch
        %310 = sbr.rel (%p308) target = $region36
      $region35: #{transformer_forward.9} parent=11 // pred_region
        _
      $region36: #{transformer_forward.9} parent=11 // pred_fallthru
        _
      // Predicated region
      $region37: #{transformer_forward.9} parent=11 // pred_check
        %p311 = pneg %p229
      $region38: #{transformer_forward.9} parent=11 // pred_check_branch
        %313 = sbr.rel (%p311) target = $region40
      $region39: #{transformer_forward.9} parent=11 // pred_region
        _
      $region40: #{transformer_forward.9} parent=11 // pred_fallthru
        _
      // Predicated region
      $region41: #{transformer_forward.9} parent=11 // pred_check
        %p314 = pneg %p250
      $region42: #{transformer_forward.9} parent=11 // pred_check_branch
        %316 = sbr.rel (%p314) target = $region44
      $region43: #{transformer_forward.9} parent=11 // pred_region
        _
      $region44: #{transformer_forward.9} parent=11 // pred_fallthru
        _
    $region12: #{transformer_forward.9} parent=5 // pred_fallthru
      _
    %p317 = scmp.lt.s32.totalorder %s16, 2
    // Predicated region
    $region45: #{transformer_forward.9} parent=5 // pred_check
      %p318 = pneg %p317
    $region46: #{transformer_forward.9} parent=5 // pred_check_branch
      %320 = sbr.rel (%p318) target = $region48
    $region47: #{transformer_forward.9} parent=5 // pred_region
      // Predicated region
      $region49: #{transformer_forward.9} parent=47 // pred_check
        %p321 = pneg %p50
      $region50: #{transformer_forward.9} parent=47 // pred_check_branch
        %323 = sbr.rel (%p321) target = $region52
      $region51: #{transformer_forward.9} parent=47 // pred_region
        %p324 = scmp.lt.s32.totalorder %s23, 1
        %s325 = scalar_select %p324, %s23, 1
        %p326 = scmp.lt.s32.totalorder %s24, 0
        %s327 = scalar_select %p326, %s24, 0
        %s328 = sadd.s32 %s327, %s325
        %s329 = smul.addr %s328, 4
        %s330 = scalar_lea.vmem %s0, %s329
      $region52: #{transformer_forward.9} parent=47 // pred_fallthru
        _
      // Predicated region
      $region53: #{transformer_forward.9} parent=47 // pred_check
        %p331 = pneg %p76
      $region54: #{transformer_forward.9} parent=47 // pred_check_branch
        %333 = sbr.rel (%p331) target = $region56
      $region55: #{transformer_forward.9} parent=47 // pred_region
        %p334 = scmp.lt.s32.totalorder %s23, 1
        %s335 = scalar_select %p334, %s23, 1
        %s336 = smul.addr %s335, 4
        %s337 = scalar_lea.vmem %s1, %s336
      $region56: #{transformer_forward.9} parent=47 // pred_fallthru
        _
    $region48: #{transformer_forward.9} parent=5 // pred_fallthru
      _
    %p338 = scmp.le.s32.totalorder 1, %s16
    %p339 = scmp.lt.s32.totalorder %s16, 3
    %p340 = pnand %p338, %p339
    %p341 = pneg %p340
    // Predicated region
    $region57: #{transformer_forward.9} parent=5 // pred_check
      _
    $region58: #{transformer_forward.9} parent=5 // pred_check_branch
      %343 = sbr.rel (%p340) target = $region60
    $region59: #{transformer_forward.9} parent=5 // pred_region
      %s344 = ssub.s32 %s16, 1
      %p345 = scmp.lt.s32.totalorder %s25, 1
      %s346 = scalar_select %p345, %s25, 1
      %p347 = scmp.lt.s32.totalorder %s26, 0
      %s348 = scalar_select %p347, %s26, 0
      %s349 = sadd.s32 %s348, %s346
      %s350 = smul.addr %s349, 4
      %s351 = scalar_lea.vmem %s0, %s350
      %p352 = pneg %p56
      %p353 = pneg %p53
      %p354 = scmp.lt.s32.totalorder %s25, 1
      %s355 = scalar_select %p354, %s25, 1
      %s356 = smul.addr %s355, 4
      %s357 = scalar_lea.vmem %s1, %s356
      %p358 = pneg %p82
      %p359 = pneg %p79
      %p360 = pneg %p103
      %p361 = pneg %p100
      %p362 = pneg %p124
      %p363 = pneg %p121
      %p364 = pneg %p145
      %p365 = pneg %p142
      %p366 = pneg %p166
      %p367 = pneg %p163
      %p368 = pneg %p187
      %p369 = pneg %p184
      %p370 = pneg %p208
      %p371 = pneg %p205
      %p372 = pneg %p229
      %p373 = pneg %p226
      %p374 = pneg %p250
      %p375 = pneg %p247
      %p376 = pneg %p278
      %p377 = pneg %p275
      %p378 = scmp.lt.s32.totalorder %s25, 1
      %s379 = scalar_select %p378, %s25, 1
      %p380 = scmp.lt.s32.totalorder %s26, 0
      %s381 = scalar_select %p380, %s26, 0
      %s382 = sadd.s32 %s381, %s379
      %s383 = smul.addr %s382, 4
      %s384 = scalar_lea.vmem %s10, %s383
      %p385 = scmp.lt.s32.totalorder %s25, 1
      %s386 = scalar_select %p385, %s25, 1
      %p387 = scmp.lt.s32.totalorder %s26, 0
      %s388 = scalar_select %p387, %s26, 0
      %s389 = sadd.s32 %s388, %s386
      %s390 = smul.addr %s389, 4
      %s391 = scalar_lea.vmem %s0, %s390
      %p392 = scmp.lt.s32.totalorder %s25, 1
      %s393 = scalar_select %p392, %s25, 1
      %s394 = smul.addr %s393, 4
      %s395 = scalar_lea.vmem %s1, %s394
      %p396 = scmp.lt.s32.totalorder %s25, 1
      %s397 = scalar_select %p396, %s25, 1
      %p398 = scmp.lt.s32.totalorder %s26, 0
      %s399 = scalar_select %p398, %s26, 0
      %s400 = sadd.s32 %s399, %s397
      %s401 = smul.addr %s400, 4
      %s402 = scalar_lea.vmem %s10, %s401
      %v404 = vld [vmem:[%s391] sm:$0xf]
      %v405 = vld [vmem:[%s395] sm:$0x3]
      %v406 = vld [vmem:[%s2] sm:$0xf]
      %v407 = vld [vmem:[%s2 + $0x4] sm:$0xf]
      %v408 = vld [vmem:[%s2 + $0x8] sm:$0xf]
      %v409 = vld [vmem:[%s2 + $0xc] sm:$0xf]
      %v410 = vld [vmem:[%s3] sm:$0x1]
      %v412 = vperm.slane %v410, 0
      %v418 = vunpack.c.l.b16 %v406
      %v419 = vunpack.c.l.b16 %v407
      %v420 = vunpack.c.l.b16 %v408
      %v421 = vunpack.c.l.b16 %v409
      %v422 = vpack.c.b16 %v419, %v418
      %v423 = vpack.c.b16 %v421, %v420
      %vm426 = vcmask 261120
      %v428 = vsel %vm426, %v404, 0
      %430 = vmatpush.bf16.msra.mxu0 0
      %431 = vmatpush.bf16.msra.mxu0 0
      %432 = vmatpush.bf16.msra.mxu0 0
      %433 = vmatpush.bf16.msra.mxu0 0
      %434 = vmatpush.bf16.msra.mxu0 0
      %435 = vmatpush.bf16.msra.mxu0 0
      %436 = vmatpush.bf16.msra.mxu0 %v423
      %437 = vmatpush.bf16.msra.mxu0 %v422
      %438 = vmatmul.bf16.gmra.mxu0 %v428
      %v439 = vpop.f32.mrf.mxu0
      %v440 = vadd.f32 %v412, %v439
      %v441 = vpop.f32.mrf.mxu0
      %442 = vdwg.mxu0
      %v443 = vmul.f32 %v440, 0.35355338
      %v444 = vpack.c.bf16 %v443, %v443
      %v445 = vld [vmem:[%s4] sm:$0xf]
      %v446 = vld [vmem:[%s4 + $0x4] sm:$0xf]
      %v447 = vld [vmem:[%s4 + $0x8] sm:$0xf]
      %v448 = vld [vmem:[%s4 + $0xc] sm:$0xf]
      %v449 = vld [vmem:[%s5] sm:$0x1]
      %v451 = vperm.slane %v449, 0
      %v457 = vunpack.c.l.b16 %v445
      %v458 = vunpack.c.l.b16 %v446
      %v459 = vunpack.c.l.b16 %v447
      %v460 = vunpack.c.l.b16 %v448
      %v461 = vpack.c.b16 %v458, %v457
      %v462 = vpack.c.b16 %v460, %v459
      %v466 = vsel %vm426, %v405, 0
      %468 = vmatpush.bf16.msra.mxu0 0
      %469 = vmatpush.bf16.msra.mxu0 0
      %470 = vmatpush.bf16.msra.mxu0 0
      %471 = vmatpush.bf16.msra.mxu0 0
      %472 = vmatpush.bf16.msra.mxu0 0
      %473 = vmatpush.bf16.msra.mxu0 0
      %474 = vmatpush.bf16.msra.mxu0 %v462
      %475 = vmatpush.bf16.msra.mxu0 %v461
      %476 = vmatmul.bf16.gmra.mxu0 %v466
      %v477 = vpop.f32.mrf.mxu0
      %v478 = vadd.f32 %v451, %v477
      %v479 = vpop.f32.mrf.mxu0
      %480 = vdwg.mxu0
      %v481 = vpack.c.bf16 %v478, %v478
      %vm482 = vcmask 64512
      %v484 = vsel %vm482, %v444, 0
      %v487 = vsel %vm482, %v481, 0
      %489 = vmatpush.bf16.xpose.msra.mxu0 0
      %490 = vmatpush.bf16.xpose.msra.mxu0 0
      %491 = vmatpush.bf16.xpose.msra.mxu0 0
      %492 = vmatpush.bf16.xpose.msra.mxu0 0
      %493 = vmatpush.bf16.xpose.msra.mxu0 0
      %494 = vmatpush.bf16.xpose.msra.mxu0 0
      %495 = vmatpush.bf16.xpose.msra.mxu0 0
      %496 = vmatpush.bf16.xpose.msra.mxu0 %v487
      %497 = vmatmul.bf16.gmra.mxu0 %v484
      %v498 = vpop.f32.mrf.mxu0
      %v499 = vadd.f32 0.0, %v498
      %v500 = vpop.f32.mrf.mxu0
      %501 = vdwg.mxu0
      %vm502 = vcmask 31744
      %v503 = vsel %vm502, %v499, -inf
      %504 = vmax.xlane.f32.xlu0 %v503
      %v505 = vpop.xlane.xlu0 %504
      %v506 = vsub.f32 %v499, %v505
      %v507 = vmul.f32 %v506, 1.442695
      %v508 = vpow.pop %v507
      %v509 = vsel %vm502, %v508, 0.0
      %510 = vadd.xlane.f32.xlu0 %v509
      %v511 = vpop.xlane.xlu0 %510
      %v512 = vpack.c.bf16 %v508, %v508
      %v514 = vunpack.c.l.b16 %v481
      %v515 = vpack.c.b16 %v514, %v514
      %516 = vrot.lane.b32.xlu0 %v515, 96
      %v517 = vpop.permute.xlu0 %516
      %v519 = vsel %vm502, %v512, 0
      %vm521 = vcmask 1041408
      %v523 = vsel %vm521, %v517, 0
      %525 = vmatpush.bf16.msra.mxu0 0
      %526 = vmatpush.bf16.msra.mxu0 0
      %527 = vmatpush.bf16.msra.mxu0 0
      %528 = vmatpush.bf16.msra.mxu0 0
      %529 = vmatpush.bf16.msra.mxu0 0
      %530 = vmatpush.bf16.msra.mxu0 0
      %531 = vmatpush.bf16.msra.mxu0 0
      %532 = vmatpush.bf16.msra.mxu0 %v523
      %533 = vmatmul.bf16.gmra.mxu0 %v519
      %v534 = vpop.f32.mrf.mxu0
      %v535 = vadd.f32 0.0, %v534
      %v536 = vpop.f32.mrf.mxu0
      %537 = vdwg.mxu0
      %v538 = vrcp.pop %v511
      %v539 = vmul.f32 %v535, %v538
      %v541 = vunpack.c.l.b16 %v444
      %v542 = vpack.c.b16 %v541, %v541
      %543 = vrot.lane.b32.xlu0 %v542, 120
      %v544 = vpop.permute.xlu0 %543
      %545 = vrot.lane.b32.xlu0 %v515, 120
      %v546 = vpop.permute.xlu0 %545
      %v548 = vsel %vm482, %v544, 0
      %v551 = vsel %vm482, %v546, 0
      %553 = vmatpush.bf16.xpose.msra.mxu0 0
      %554 = vmatpush.bf16.xpose.msra.mxu0 0
      %555 = vmatpush.bf16.xpose.msra.mxu0 0
      %556 = vmatpush.bf16.xpose.msra.mxu0 0
      %557 = vmatpush.bf16.xpose.msra.mxu0 0
      %558 = vmatpush.bf16.xpose.msra.mxu0 0
      %559 = vmatpush.bf16.xpose.msra.mxu0 0
      %560 = vmatpush.bf16.xpose.msra.mxu0 %v551
      %561 = vmatmul.bf16.gmra.mxu0 %v548
      %v562 = vpop.f32.mrf.mxu0
      %v563 = vadd.f32 0.0, %v562
      %v564 = vpop.f32.mrf.mxu0
      %565 = vdwg.mxu0
      %v566 = vsel %vm502, %v563, -inf
      %567 = vmax.xlane.f32.xlu0 %v566
      %v568 = vpop.xlane.xlu0 %567
      %v569 = vsub.f32 %v563, %v568
      %v570 = vmul.f32 %v569, 1.442695
      %v571 = vpow.pop %v570
      %v572 = vsel %vm502, %v571, 0.0
      %573 = vadd.xlane.f32.xlu0 %v572
      %v574 = vpop.xlane.xlu0 %573
      %v575 = vpack.c.bf16 %v571, %v571
      %576 = vrot.lane.b32.xlu0 %v515, 88
      %v577 = vpop.permute.xlu0 %576
      %v579 = vsel %vm502, %v575, 0
      %v582 = vsel %vm521, %v577, 0
      %584 = vmatpush.bf16.msra.mxu0 0
      %585 = vmatpush.bf16.msra.mxu0 0
      %586 = vmatpush.bf16.msra.mxu0 0
      %587 = vmatpush.bf16.msra.mxu0 0
      %588 = vmatpush.bf16.msra.mxu0 0
      %589 = vmatpush.bf16.msra.mxu0 0
      %590 = vmatpush.bf16.msra.mxu0 0
      %591 = vmatpush.bf16.msra.mxu0 %v582
      %592 = vmatmul.bf16.gmra.mxu0 %v579
      %v593 = vpop.f32.mrf.mxu0
      %v594 = vadd.f32 0.0, %v593
      %v595 = vpop.f32.mrf.mxu0
      %596 = vdwg.mxu0
      %v597 = vrcp.pop %v574
      %v598 = vmul.f32 %v594, %v597
      %599 = vrot.lane.b32.xlu0 %v542, 112
      %v600 = vpop.permute.xlu0 %599
      %601 = vrot.lane.b32.xlu0 %v515, 112
      %v602 = vpop.permute.xlu0 %601
      %v604 = vsel %vm482, %v600, 0
      %v607 = vsel %vm482, %v602, 0
      %609 = vmatpush.bf16.xpose.msra.mxu0 0
      %610 = vmatpush.bf16.xpose.msra.mxu0 0
      %611 = vmatpush.bf16.xpose.msra.mxu0 0
      %612 = vmatpush.bf16.xpose.msra.mxu0 0
      %613 = vmatpush.bf16.xpose.msra.mxu0 0
      %614 = vmatpush.bf16.xpose.msra.mxu0 0
      %615 = vmatpush.bf16.xpose.msra.mxu0 0
      %616 = vmatpush.bf16.xpose.msra.mxu0 %v607
      %617 = vmatmul.bf16.gmra.mxu0 %v604
      %v618 = vpop.f32.mrf.mxu0
      %v619 = vadd.f32 0.0, %v618
      %v620 = vpop.f32.mrf.mxu0
      %621 = vdwg.mxu0
      %v622 = vsel %vm502, %v619, -inf
      %623 = vmax.xlane.f32.xlu0 %v622
      %v624 = vpop.xlane.xlu0 %623
      %v625 = vsub.f32 %v619, %v624
      %v626 = vmul.f32 %v625, 1.442695
      %v627 = vpow.pop %v626
      %v628 = vsel %vm502, %v627, 0.0
      %629 = vadd.xlane.f32.xlu0 %v628
      %v630 = vpop.xlane.xlu0 %629
      %v631 = vpack.c.bf16 %v627, %v627
      %632 = vrot.lane.b32.xlu0 %v515, 80
      %v633 = vpop.permute.xlu0 %632
      %v635 = vsel %vm502, %v631, 0
      %v638 = vsel %vm521, %v633, 0
      %640 = vmatpush.bf16.msra.mxu0 0
      %641 = vmatpush.bf16.msra.mxu0 0
      %642 = vmatpush.bf16.msra.mxu0 0
      %643 = vmatpush.bf16.msra.mxu0 0
      %644 = vmatpush.bf16.msra.mxu0 0
      %645 = vmatpush.bf16.msra.mxu0 0
      %646 = vmatpush.bf16.msra.mxu0 0
      %647 = vmatpush.bf16.msra.mxu0 %v638
      %648 = vmatmul.bf16.gmra.mxu0 %v635
      %v649 = vpop.f32.mrf.mxu0
      %v650 = vadd.f32 0.0, %v649
      %v651 = vpop.f32.mrf.mxu0
      %652 = vdwg.mxu0
      %v653 = vrcp.pop %v630
      %v654 = vmul.f32 %v650, %v653
      %655 = vrot.lane.b32.xlu0 %v542, 104
      %v656 = vpop.permute.xlu0 %655
      %657 = vrot.lane.b32.xlu0 %v515, 104
      %v658 = vpop.permute.xlu0 %657
      %v660 = vsel %vm482, %v656, 0
      %v663 = vsel %vm482, %v658, 0
      %665 = vmatpush.bf16.xpose.msra.mxu0 0
      %666 = vmatpush.bf16.xpose.msra.mxu0 0
      %667 = vmatpush.bf16.xpose.msra.mxu0 0
      %668 = vmatpush.bf16.xpose.msra.mxu0 0
      %669 = vmatpush.bf16.xpose.msra.mxu0 0
      %670 = vmatpush.bf16.xpose.msra.mxu0 0
      %671 = vmatpush.bf16.xpose.msra.mxu0 0
      %672 = vmatpush.bf16.xpose.msra.mxu0 %v663
      %673 = vmatmul.bf16.gmra.mxu0 %v660
      %v674 = vpop.f32.mrf.mxu0
      %v675 = vadd.f32 0.0, %v674
      %v676 = vpop.f32.mrf.mxu0
      %677 = vdwg.mxu0
      %v678 = vsel %vm502, %v675, -inf
      %679 = vmax.xlane.f32.xlu0 %v678
      %v680 = vpop.xlane.xlu0 %679
      %v681 = vsub.f32 %v675, %v680
      %v682 = vmul.f32 %v681, 1.442695
      %v683 = vpow.pop %v682
      %v684 = vsel %vm502, %v683, 0.0
      %685 = vadd.xlane.f32.xlu0 %v684
      %v686 = vpop.xlane.xlu0 %685
      %v687 = vpack.c.bf16 %v683, %v683
      %688 = vrot.lane.b32.xlu0 %v515, 72
      %v689 = vpop.permute.xlu0 %688
      %v691 = vsel %vm502, %v687, 0
      %v694 = vsel %vm521, %v689, 0
      %696 = vmatpush.bf16.msra.mxu0 0
      %697 = vmatpush.bf16.msra.mxu0 0
      %698 = vmatpush.bf16.msra.mxu0 0
      %699 = vmatpush.bf16.msra.mxu0 0
      %700 = vmatpush.bf16.msra.mxu0 0
      %701 = vmatpush.bf16.msra.mxu0 0
      %702 = vmatpush.bf16.msra.mxu0 0
      %703 = vmatpush.bf16.msra.mxu0 %v694
      %704 = vmatmul.bf16.gmra.mxu0 %v691
      %v705 = vpop.f32.mrf.mxu0
      %v706 = vadd.f32 0.0, %v705
      %v707 = vpop.f32.mrf.mxu0
      %708 = vdwg.mxu0
      %v709 = vrcp.pop %v686
      %v710 = vmul.f32 %v706, %v709
      %712 = vrot.lane.b32.xlu0 %v598, 8
      %v713 = vpop.permute.xlu0 %712
      %716 = vrot.lane.b32.xlu0 %v654, 16
      %v717 = vpop.permute.xlu0 %716
      %720 = vrot.lane.b32.xlu0 %v710, 24
      %v721 = vpop.permute.xlu0 %720
      %v723 = vsel %vm482, %v539, %v713
      %vm724 = vcmask 130048
      %v725 = vsel %vm724, %v723, %v717
      %vm726 = vcmask 195584
      %v727 = vsel %vm726, %v725, %v721
      %v728 = vpack.c.bf16 %v727, %v727
      %v729 = vld [vmem:[%s6] sm:$0xf]
      %v730 = vld [vmem:[%s6 + $0x4] sm:$0xf]
      %v731 = vld [vmem:[%s6 + $0x8] sm:$0xf]
      %v732 = vld [vmem:[%s6 + $0xc] sm:$0xf]
      %v733 = vld [vmem:[%s7] sm:$0x1]
      %v735 = vperm.slane %v733, 0
      %v741 = vunpack.c.l.b16 %v729
      %v742 = vunpack.c.l.b16 %v730
      %v743 = vunpack.c.l.b16 %v731
      %v744 = vunpack.c.l.b16 %v732
      %v745 = vpack.c.b16 %v742, %v741
      %v746 = vpack.c.b16 %v744, %v743
      %v750 = vsel %vm426, %v728, 0
      %752 = vmatpush.bf16.msra.mxu0 0
      %753 = vmatpush.bf16.msra.mxu0 0
      %754 = vmatpush.bf16.msra.mxu0 0
      %755 = vmatpush.bf16.msra.mxu0 0
      %756 = vmatpush.bf16.msra.mxu0 0
      %757 = vmatpush.bf16.msra.mxu0 0
      %758 = vmatpush.bf16.msra.mxu0 %v746
      %759 = vmatpush.bf16.msra.mxu0 %v745
      %760 = vmatmul.bf16.gmra.mxu0 %v750
      %v761 = vpop.f32.mrf.mxu0
      %v762 = vadd.f32 %v735, %v761
      %v763 = vpop.f32.mrf.mxu0
      %764 = vdwg.mxu0
      %v765 = vunpack.c.l.bf16 %v404
      %v766 = vadd.f32 %v765, %v762
      %v767 = vsel %vm426, %v766, 0.0
      %768 = vadd.xlane.f32.xlu0 %v767
      %v769 = vpop.xlane.xlu0 %768
      %v770 = vrcp.pop 32.0
      %v771 = vmul.f32 32.0, %v770
      %v772 = vsub.f32 1.0, %v771
      %v773 = vmul.f32 %v770, %v772
      %v774 = vadd.f32 %v770, %v773
      %vm775 = vweird.f32 %v770
      %v776 = vsel %vm775, %v770, %v774
      %v777 = vmul.f32 %v769, %v776
      %v778 = vsub.f32 %v766, %v777
      %v779 = vmul.f32 %v778, %v778
      %v780 = vsel %vm426, %v779, 0.0
      %781 = vadd.xlane.f32.xlu0 %v780
      %v782 = vpop.xlane.xlu0 %781
      %v783 = vmul.f32 %v782, %v776
      %v784 = vadd.f32 %v783, 1e-05
      %v785 = vrsqrt.pop %v784
      %v786 = vmul.f32 %v785, %v784
      %v787 = vmul.f32 %v786, %v785
      %v788 = vmul.f32 0.5, %v787
      %v789 = vsub.f32 1.5, %v788
      %v790 = vmul.f32 %v785, %v789
      %vm791 = vweird.f32 %v784
      %vm792 = vweird.f32 %v785
      %vm793 = vmor %vm791, %vm792
      %v794 = vsel %vm793, %v785, %v790
      %v795 = vmul.f32 %v778, %v794
      %v796 = vld [vmem:[%s8] sm:$0x1]
      %v798 = vperm.slane %v796, 0
      %v800 = vmul.f32 %v795, %v798
      %v801 = vld [vmem:[%s9] sm:$0x1]
      %v803 = vperm.slane %v801, 0
      %v805 = vadd.f32 %v800, %v803
      %v806 = vpack.c.bf16 %v805, %v805
      %vm807 = vcmask 257024
      %808 = vst.msk [vmem:[%s402] sm:$0xf] %vm807, %v806
      %p809 = scmp.lt.s32.totalorder %s25, 1
      %s810 = scalar_select %p809, %s25, 1
      %p811 = scmp.lt.s32.totalorder %s26, 0
      %s812 = scalar_select %p811, %s26, 0
      %s813 = sadd.s32 %s812, %s810
      %s814 = smul.addr %s813, 4
      %s815 = scalar_lea.vmem %s10, %s814
      // Predicated region
      $region61: #{transformer_forward.9} parent=59 // pred_check
        %p816 = pneg %p275
      $region62: #{transformer_forward.9} parent=59 // pred_check_branch
        %818 = sbr.rel (%p816) target = $region64
      $region63: #{transformer_forward.9} parent=59 // pred_region
        _
      $region64: #{transformer_forward.9} parent=59 // pred_fallthru
        _
    $region60: #{transformer_forward.9} parent=5 // pred_fallthru
      _
    %p819 = scmp.le.s32.totalorder 2, %s16
    // Predicated region
    $region65: #{transformer_forward.9} parent=5 // pred_check
      %p820 = pneg %p819
    $region66: #{transformer_forward.9} parent=5 // pred_check_branch
      %822 = sbr.rel (%p820) target = $region68
    $region67: #{transformer_forward.9} parent=5 // pred_region
      %s823 = ssub.s32 %s16, 2
      // Predicated region
      $region69: #{transformer_forward.9} parent=67 // pred_check
        %p824 = pneg %p281
      $region70: #{transformer_forward.9} parent=67 // pred_check_branch
        %826 = sbr.rel (%p824) target = $region72
      $region71: #{transformer_forward.9} parent=67 // pred_region
        %p827 = scmp.lt.s32.totalorder %s27, 1
        %s828 = scalar_select %p827, %s27, 1
        %p829 = scmp.lt.s32.totalorder %s28, 0
        %s830 = scalar_select %p829, %s28, 0
        %s831 = sadd.s32 %s830, %s828
        %s832 = smul.addr %s831, 4
        %s833 = scalar_lea.vmem %s10, %s832
      $region72: #{transformer_forward.9} parent=67 // pred_fallthru
        _
    $region68: #{transformer_forward.9} parent=5 // pred_fallthru
      _
  $region6: #{transformer_forward.9} parent=0 // loop_footer
    %s20 = sadd.s32 1, %s16
  $region7: #{transformer_forward.9} parent=0 // loop_footer_branch
    %15 = sbr.rel target = $region3
  $region8: #{transformer_forward.9} parent=0 // loop_exit
    _

// kernel: transformer_forward.11
$region0: #{transformer_forward.11}
  #allocation0 [shape = 'u32[]', space=smem, size = 0x4, offset = 0x4, fixed_abs, tag = 'smem constant byte address 0x4 - core index']
  #allocation1 [shape = 'u32[72,128]{1,0:T(1,128)}', space=vmem, size = 0x9000, scoped, tag = 'internal scratch']
  %s0 = inlined_call_operand.vmem [shape: bf16[16,32], index: 0, kind: input, shape index: {}]
  %s1 = inlined_call_operand.vmem [shape: bf16[32,64], index: 1, kind: input, shape index: {}]
  %s2 = inlined_call_operand.vmem [shape: f32[1,64], index: 2, kind: input, shape index: {}]
  %s3 = inlined_call_operand.vmem [shape: bf16[64,3], index: 3, kind: input, shape index: {}]
  %s4 = inlined_call_operand.vmem [shape: f32[1,3], index: 4, kind: input, shape index: {}]
  %s5 = inlined_call_operand.vmem [shape: f32[16,3], index: 5, kind: output, shape index: {}]
  %s6 = sld [smem:[#allocation0]]
  $region53: #{transformer_forward.11} parent=0
    _
  %s8 = ssub.s32 1, %s6
  %s9 = scalar_select 0, %s8, %s6
  loop: start=0, step=1, limit=4
  $region2: #{transformer_forward.11} parent=0 // loop_pre_header
    _
  $region3: #{transformer_forward.11} parent=0 // loop_header
    %s11 = sphi 0, %s15
    %p12 = scmp.ge.s32.totalorder %s11, 4
    %s21 = sphi 0, %s23
    %s24 = sphi 0, %s21
    %s25 = sphi 0, %s24
    %s41 = sphi 0, %s25
    %s45 = sphi 0, %s45
    %s47 = sphi 0, %s45
    %s48 = sphi 0, %s47
    %s62 = sphi 0, %s48
    %s66 = sphi 0, %s66
    %s68 = sphi 0, %s66
    %s69 = sphi 0, %s68
    %s83 = sphi 0, %s69
    %s87 = sphi 0, %s87
    %s89 = sphi 0, %s87
    %s90 = sphi 0, %s89
    %s104 = sphi 0, %s90
    %s108 = sphi 0, %s108
    %s110 = sphi 0, %s108
    %s111 = sphi 0, %s110
    %s125 = sphi 0, %s111
    %s131 = sphi 0, %s133
    %s134 = sphi 0, %s131
    %s135 = sphi 0, %s134
    %s151 = sphi 0, %s135
  $region4: #{transformer_forward.11} parent=0 // loop_header_branch
    %14 = sbr.rel (%p12) target = $region8
  $region5: #{transformer_forward.11} parent=0 // loop_body
    %s16 = ssub.s32 %s11, 1
    %s17 = ssub.s32 %s11, 2
    %s18 = sadd.s32 %s11, 1
    %s19 = ssub.s32 %s11, %s18
    %p20 = scmp.eq.s32.totalorder %s19, 0
    %s22 = sadd.s32 %s21, 1
    %s23 = scalar_select %p20, %s21, %s22
    %p26 = pneg %p20
    %p27 = scmp.eq.s32.totalorder %s11, 1
    %p28 = por %p26, %p27
    %p29 = scmp.ne.s32.totalorder %s21, %s24
    %p30 = scmp.eq.s32.totalorder %s11, 0
    %p31 = por %p29, %p30
    %p32 = scmp.ne.s32.totalorder %s21, %s24
    %p33 = scmp.eq.s32.totalorder %s16, 1
    %p34 = por %p32, %p33
    %p35 = scmp.ne.s32.totalorder %s24, %s25
    %p36 = scmp.eq.s32.totalorder %s16, 0
    %p37 = por %p35, %p36
    %p38 = scmp.ne.s32.totalorder %s24, %s25
    %p39 = scmp.eq.s32.totalorder %s17, 1
    %p40 = por %p38, %p39
    %p42 = scmp.ne.s32.totalorder %s25, %s41
    %p43 = scmp.eq.s32.totalorder %s17, 0
    %p44 = por %p42, %p43
    %s46 = sadd.s32 %s45, 1
    %p49 = scmp.eq.s32.totalorder %s11, 1
    %p50 = scmp.ne.s32.totalorder %s45, %s47
    %p51 = scmp.eq.s32.totalorder %s11, 0
    %p52 = por %p50, %p51
    %p53 = scmp.ne.s32.totalorder %s45, %s47
    %p54 = scmp.eq.s32.totalorder %s16, 1
    %p55 = por %p53, %p54
    %p56 = scmp.ne.s32.totalorder %s47, %s48
    %p57 = scmp.eq.s32.totalorder %s16, 0
    %p58 = por %p56, %p57
    %p59 = scmp.ne.s32.totalorder %s47, %s48
    %p60 = scmp.eq.s32.totalorder %s17, 1
    %p61 = por %p59, %p60
    %p63 = scmp.ne.s32.totalorder %s48, %s62
    %p64 = scmp.eq.s32.totalorder %s17, 0
    %p65 = por %p63, %p64
    %s67 = sadd.s32 %s66, 1
    %p70 = scmp.eq.s32.totalorder %s11, 1
    %p71 = scmp.ne.s32.totalorder %s66, %s68
    %p72 = scmp.eq.s32.totalorder %s11, 0
    %p73 = por %p71, %p72
    %p74 = scmp.ne.s32.totalorder %s66, %s68
    %p75 = scmp.eq.s32.totalorder %s16, 1
    %p76 = por %p74, %p75
    %p77 = scmp.ne.s32.totalorder %s68, %s69
    %p78 = scmp.eq.s32.totalorder %s16, 0
    %p79 = por %p77, %p78
    %p80 = scmp.ne.s32.totalorder %s68, %s69
    %p81 = scmp.eq.s32.totalorder %s17, 1
    %p82 = por %p80, %p81
    %p84 = scmp.ne.s32.totalorder %s69, %s83
    %p85 = scmp.eq.s32.totalorder %s17, 0
    %p86 = por %p84, %p85
    %s88 = sadd.s32 %s87, 1
    %p91 = scmp.eq.s32.totalorder %s11, 1
    %p92 = scmp.ne.s32.totalorder %s87, %s89
    %p93 = scmp.eq.s32.totalorder %s11, 0
    %p94 = por %p92, %p93
    %p95 = scmp.ne.s32.totalorder %s87, %s89
    %p96 = scmp.eq.s32.totalorder %s16, 1
    %p97 = por %p95, %p96
    %p98 = scmp.ne.s32.totalorder %s89, %s90
    %p99 = scmp.eq.s32.totalorder %s16, 0
    %p100 = por %p98, %p99
    %p101 = scmp.ne.s32.totalorder %s89, %s90
    %p102 = scmp.eq.s32.totalorder %s17, 1
    %p103 = por %p101, %p102
    %p105 = scmp.ne.s32.totalorder %s90, %s104
    %p106 = scmp.eq.s32.totalorder %s17, 0
    %p107 = por %p105, %p106
    %s109 = sadd.s32 %s108, 1
    %p112 = scmp.eq.s32.totalorder %s11, 1
    %p113 = scmp.ne.s32.totalorder %s108, %s110
    %p114 = scmp.eq.s32.totalorder %s11, 0
    %p115 = por %p113, %p114
    %p116 = scmp.ne.s32.totalorder %s108, %s110
    %p117 = scmp.eq.s32.totalorder %s16, 1
    %p118 = por %p116, %p117
    %p119 = scmp.ne.s32.totalorder %s110, %s111
    %p120 = scmp.eq.s32.totalorder %s16, 0
    %p121 = por %p119, %p120
    %p122 = scmp.ne.s32.totalorder %s110, %s111
    %p123 = scmp.eq.s32.totalorder %s17, 1
    %p124 = por %p122, %p123
    %p126 = scmp.ne.s32.totalorder %s111, %s125
    %p127 = scmp.eq.s32.totalorder %s17, 0
    %p128 = por %p126, %p127
    %s129 = ssub.s32 %s11, %s18
    %p130 = scmp.eq.s32.totalorder %s129, 0
    %s132 = sadd.s32 %s131, 1
    %s133 = scalar_select %p130, %s131, %s132
    %p136 = pneg %p130
    %p137 = scmp.eq.s32.totalorder %s11, 1
    %p138 = por %p136, %p137
    %p139 = scmp.ne.s32.totalorder %s131, %s134
    %p140 = scmp.eq.s32.totalorder %s11, 0
    %p141 = por %p139, %p140
    %p142 = scmp.ne.s32.totalorder %s131, %s134
    %p143 = scmp.eq.s32.totalorder %s16, 1
    %p144 = por %p142, %p143
    %p145 = scmp.ne.s32.totalorder %s134, %s135
    %p146 = scmp.eq.s32.totalorder %s16, 0
    %p147 = por %p145, %p146
    %p148 = scmp.ne.s32.totalorder %s134, %s135
    %p149 = scmp.eq.s32.totalorder %s17, 1
    %p150 = por %p148, %p149
    %p152 = scmp.ne.s32.totalorder %s135, %s151
    %p153 = scmp.eq.s32.totalorder %s17, 0
    %p154 = por %p152, %p153
    %p155 = scmp.le.s32.totalorder 1, %s11
    %p156 = scmp.lt.s32.totalorder %s11, 3
    %p157 = pnand %p155, %p156
    %p158 = pneg %p157
    // Predicated region
    $region9: #{transformer_forward.11} parent=5 // pred_check
      _
    $region10: #{transformer_forward.11} parent=5 // pred_check_branch
      %160 = sbr.rel (%p157) target = $region12
    $region11: #{transformer_forward.11} parent=5 // pred_region
      %s161 = ssub.s32 %s11, 1
      // Predicated region
      $region13: #{transformer_forward.11} parent=11 // pred_check
        %p162 = pneg %p58
      $region14: #{transformer_forward.11} parent=11 // pred_check_branch
        %164 = sbr.rel (%p162) target = $region16
      $region15: #{transformer_forward.11} parent=11 // pred_region
        _
      $region16: #{transformer_forward.11} parent=11 // pred_fallthru
        _
      // Predicated region
      $region17: #{transformer_forward.11} parent=11 // pred_check
        %p165 = pneg %p79
      $region18: #{transformer_forward.11} parent=11 // pred_check_branch
        %167 = sbr.rel (%p165) target = $region20
      $region19: #{transformer_forward.11} parent=11 // pred_region
        _
      $region20: #{transformer_forward.11} parent=11 // pred_fallthru
        _
      // Predicated region
      $region21: #{transformer_forward.11} parent=11 // pred_check
        %p168 = pneg %p100
      $region22: #{transformer_forward.11} parent=11 // pred_check_branch
        %170 = sbr.rel (%p168) target = $region24
      $region23: #{transformer_forward.11} parent=11 // pred_region
        _
      $region24: #{transformer_forward.11} parent=11 // pred_fallthru
        _
      // Predicated region
      $region25: #{transformer_forward.11} parent=11 // pred_check
        %p171 = pneg %p121
      $region26: #{transformer_forward.11} parent=11 // pred_check_branch
        %173 = sbr.rel (%p171) target = $region28
      $region27: #{transformer_forward.11} parent=11 // pred_region
        _
      $region28: #{transformer_forward.11} parent=11 // pred_fallthru
        _
    $region12: #{transformer_forward.11} parent=5 // pred_fallthru
      _
    %p174 = scmp.lt.s32.totalorder %s11, 2
    // Predicated region
    $region29: #{transformer_forward.11} parent=5 // pred_check
      %p175 = pneg %p174
    $region30: #{transformer_forward.11} parent=5 // pred_check_branch
      %177 = sbr.rel (%p175) target = $region32
    $region31: #{transformer_forward.11} parent=5 // pred_region
      // Predicated region
      $region33: #{transformer_forward.11} parent=31 // pred_check
        %p178 = pneg %p31
      $region34: #{transformer_forward.11} parent=31 // pred_check_branch
        %180 = sbr.rel (%p178) target = $region36
      $region35: #{transformer_forward.11} parent=31 // pred_region
        %p181 = scmp.lt.s32.totalorder %s11, 1
        %s182 = scalar_select %p181, %s11, 1
        %s183 = smul.addr %s182, 4
        %s184 = scalar_lea.vmem %s0, %s183
      $region36: #{transformer_forward.11} parent=31 // pred_fallthru
        _
    $region32: #{transformer_forward.11} parent=5 // pred_fallthru
      _
    %p185 = scmp.le.s32.totalorder 1, %s11
    %p186 = scmp.lt.s32.totalorder %s11, 3
    %p187 = pnand %p185, %p186
    %p188 = pneg %p187
    // Predicated region
    $region37: #{transformer_forward.11} parent=5 // pred_check
      _
    $region38: #{transformer_forward.11} parent=5 // pred_check_branch
      %190 = sbr.rel (%p187) target = $region40
    $region39: #{transformer_forward.11} parent=5 // pred_region
      %s191 = ssub.s32 %s11, 1
      %p192 = scmp.lt.s32.totalorder %s16, 1
      %s193 = scalar_select %p192, %s16, 1
      %s194 = smul.addr %s193, 4
      %s195 = scalar_lea.vmem %s0, %s194
      %p196 = pneg %p37
      %p197 = pneg %p34
      %p198 = pneg %p58
      %p199 = pneg %p55
      %p200 = pneg %p79
      %p201 = pneg %p76
      %p202 = pneg %p100
      %p203 = pneg %p97
      %p204 = pneg %p121
      %p205 = pneg %p118
      %p206 = pneg %p147
      %p207 = pneg %p144
      %p208 = scmp.lt.s32.totalorder %s16, 1
      %s209 = scalar_select %p208, %s16, 1
      %s210 = smul.addr %s209, 8
      %s211 = scalar_lea.vmem %s5, %s210
      %p212 = scmp.lt.s32.totalorder %s16, 1
      %s213 = scalar_select %p212, %s16, 1
      %s214 = smul.addr %s213, 4
      %s215 = scalar_lea.vmem %s0, %s214
      %p216 = scmp.lt.s32.totalorder %s16, 1
      %s217 = scalar_select %p216, %s16, 1
      %s218 = smul.addr %s217, 8
      %s219 = scalar_lea.vmem %s5, %s218
      %v221 = vld [vmem:[%s215] sm:$0xf]
      %v222 = vld [vmem:[%s1] sm:$0xf]
      %v223 = vld [vmem:[%s1 + $0x4] sm:$0xf]
      %v224 = vld [vmem:[%s1 + $0x8] sm:$0xf]
      %v225 = vld [vmem:[%s1 + $0xc] sm:$0xf]
      %v226 = vld [vmem:[%s2] sm:$0x1]
      %v228 = vperm.slane %v226, 0
      %v234 = vunpack.c.l.b16 %v222
      %v235 = vunpack.c.l.b16 %v223
      %v236 = vunpack.c.l.b16 %v224
      %v237 = vunpack.c.l.b16 %v225
      %v238 = vpack.c.b16 %v235, %v234
      %v239 = vpack.c.b16 %v237, %v236
      %vm242 = vcmask 261120
      %v244 = vsel %vm242, %v221, 0
      %246 = vmatpush.bf16.msra.mxu0 0
      %247 = vmatpush.bf16.msra.mxu0 0
      %248 = vmatpush.bf16.msra.mxu0 0
      %249 = vmatpush.bf16.msra.mxu0 0
      %250 = vmatpush.bf16.msra.mxu0 0
      %251 = vmatpush.bf16.msra.mxu0 0
      %252 = vmatpush.bf16.msra.mxu0 %v239
      %253 = vmatpush.bf16.msra.mxu0 %v238
      %254 = vmatmul.bf16.gmra.mxu0 %v244
      %v255 = vpop.f32.mrf.mxu0
      %v256 = vadd.f32 %v228, %v255
      %v257 = vpop.f32.mrf.mxu0
      %258 = vdwg.mxu0
      %v259 = vmul.f32 %v256, 0.5
      %v260 = vmul.f32 %v256, 0.70710677
      %v261 = vand.u32 2147483647, %v260
      %v262 = vmul.f32 %v261, 0.3275911
      %v263 = vadd.f32 %v262, 1.0
      %v264 = vrcp.pop %v263
      %v265 = vmul.f32 %v263, %v264
      %v266 = vsub.f32 1.0, %v265
      %v267 = vmul.f32 %v264, %v266
      %v268 = vadd.f32 %v264, %v267
      %vm269 = vweird.f32 %v263
      %vm270 = vweird.f32 %v264
      %vm271 = vmor %vm269, %vm270
      %v272 = vsel %vm271, %v264, %v268
      %v273 = vand.u32 2147483647, %v263
      %vm274 = vcmp.eq.f32.partialorder %v273, 8.507059e+37
      %v275 = vand.u32 %v263, 2147483648
      %v276 = vor.u32 1.1754944e-38, %v275
      %v277 = vsel %vm274, %v276, %v272
      %v278 = vmul.f32 1.0, %v277
      %v279 = vmul.f32 %v278, 1.0614054
      %v280 = vadd.f32 %v279, -1.4531521
      %v281 = vmul.f32 %v280, %v278
      %v282 = vadd.f32 %v281, 1.4214138
      %v283 = vmul.f32 %v282, %v278
      %v284 = vadd.f32 %v283, -0.28449672
      %v285 = vmul.f32 %v284, %v278
      %v286 = vadd.f32 %v285, 0.2548296
      %v287 = vmul.f32 %v286, %v278
      %v288 = vsub.f32 0.0, %v261
      %v289 = vmul.f32 %v288, %v261
      %v290 = vmul.f32 %v289, 1.442695
      %v291 = vpow.pop %v290
      %v292 = vmul.f32 %v287, %v291
      %v293 = vsub.f32 1.0, %v292
      %vm294 = vcmp.ge.f32.partialorder %v260, 0.0
      %v295 = vsub.f32 0.0, %v293
      %v296 = vsel %vm294, %v293, %v295
      %v297 = vadd.f32 %v296, 1.0
      %v298 = vmul.f32 %v259, %v297
      %v299 = vpack.c.bf16 %v298, %v298
      %v300 = vld [vmem:[%s3] sm:$0xf]
      %v301 = vld [vmem:[%s3 + $0x4] sm:$0xf]
      %v302 = vld [vmem:[%s3 + $0x8] sm:$0xf]
      %v303 = vld [vmem:[%s3 + $0xc] sm:$0xf]
      %v304 = vld [vmem:[%s3 + $0x10] sm:$0xf]
      %v305 = vld [vmem:[%s3 + $0x14] sm:$0xf]
      %v306 = vld [vmem:[%s3 + $0x18] sm:$0xf]
      %v307 = vld [vmem:[%s3 + $0x1c] sm:$0xf]
      %v308 = vld [vmem:[%s4] sm:$0x1]
      %v310 = vperm.slane %v308, 0
      %v320 = vunpack.c.l.b16 %v300
      %v321 = vunpack.c.l.b16 %v301
      %v322 = vunpack.c.l.b16 %v302
      %v323 = vunpack.c.l.b16 %v303
      %v324 = vunpack.c.l.b16 %v304
      %v325 = vunpack.c.l.b16 %v305
      %v326 = vunpack.c.l.b16 %v306
      %v327 = vunpack.c.l.b16 %v307
      %v328 = vpack.c.b16 %v321, %v320
      %v329 = vpack.c.b16 %v323, %v322
      %v330 = vpack.c.b16 %v325, %v324
      %v331 = vpack.c.b16 %v327, %v326
      %vm336 = vcmask 523264
      %v338 = vsel %vm336, %v299, 0
      %340 = vmatpush.bf16.msra.mxu0 0
      %341 = vmatpush.bf16.msra.mxu0 0
      %342 = vmatpush.bf16.msra.mxu0 0
      %343 = vmatpush.bf16.msra.mxu0 0
      %344 = vmatpush.bf16.msra.mxu0 %v331
      %345 = vmatpush.bf16.msra.mxu0 %v330
      %346 = vmatpush.bf16.msra.mxu0 %v329
      %347 = vmatpush.bf16.msra.mxu0 %v328
      %348 = vmatmul.bf16.gmra.mxu0 %v338
      %v349 = vpop.f32.mrf.mxu0
      %v350 = vadd.f32 %v310, %v349
      %v351 = vpop.f32.mrf.mxu0
      %352 = vdwg.mxu0
      %vm353 = vcmask 23552
      %354 = vst.msk [vmem:[%s219] sm:$0xff] %vm353, %v350
      %p355 = scmp.lt.s32.totalorder %s16, 1
      %s356 = scalar_select %p355, %s16, 1
      %s357 = smul.addr %s356, 8
      %s358 = scalar_lea.vmem %s5, %s357
      // Predicated region
      $region41: #{transformer_forward.11} parent=39 // pred_check
        %p359 = pneg %p144
      $region42: #{transformer_forward.11} parent=39 // pred_check_branch
        %361 = sbr.rel (%p359) target = $region44
      $region43: #{transformer_forward.11} parent=39 // pred_region
        _
      $region44: #{transformer_forward.11} parent=39 // pred_fallthru
        _
    $region40: #{transformer_forward.11} parent=5 // pred_fallthru
      _
    %p362 = scmp.le.s32.totalorder 2, %s11
    // Predicated region
    $region45: #{transformer_forward.11} parent=5 // pred_check
      %p363 = pneg %p362
    $region46: #{transformer_forward.11} parent=5 // pred_check_branch
      %365 = sbr.rel (%p363) target = $region48
    $region47: #{transformer_forward.11} parent=5 // pred_region
      %s366 = ssub.s32 %s11, 2
      // Predicated region
      $region49: #{transformer_forward.11} parent=47 // pred_check
        %p367 = pneg %p150
      $region50: #{transformer_forward.11} parent=47 // pred_check_branch
        %369 = sbr.rel (%p367) target = $region52
      $region51: #{transformer_forward.11} parent=47 // pred_region
        %p370 = scmp.lt.s32.totalorder %s17, 1
        %s371 = scalar_select %p370, %s17, 1
        %s372 = smul.addr %s371, 8
        %s373 = scalar_lea.vmem %s5, %s372
      $region52: #{transformer_forward.11} parent=47 // pred_fallthru
        _
    $region48: #{transformer_forward.11} parent=5 // pred_fallthru
      _
  $region6: #{transformer_forward.11} parent=0 // loop_footer
    %s15 = sadd.s32 1, %s11
  $region7: #{transformer_forward.11} parent=0 // loop_footer_branch
    %10 = sbr.rel target = $region3
  $region8: #{transformer_forward.11} parent=0 // loop_exit
    _

</llo_original>
